<compile_context>
chip_gen: v5e
topology: v5e:2x2
jax: 0.10.0
libtpu: 0.0.40
codegen_flags: <defaults>
</compile_context>

<pallas_src>
import jax
import jax.numpy as jnp
from jax import lax
from jax.experimental import pallas as pl
from jax.experimental.pallas import tpu as pltpu

BN_EPS = 1e-5
LRELU_SLOPE = 0.01          # F.leaky_relu_ default negative_slope
LANES = 128


def _round_up(x, m):
    return (x + m - 1) // m * m


def _hw_budget():
    """Generation-dependent VMEM limit + row-tile cap.
    v5e/v6e: 128 MiB physical -> 96 MiB scoped limit, 8192-row tiles;
    v7x:      64 MiB physical -> 48 MiB limit, 2048-row tiles."""
    try:
        info = pltpu.get_tpu_info()
        phys = int(getattr(info, "vmem_capacity_bytes", 64 * 1024 * 1024))
    except Exception:
        phys = 64 * 1024 * 1024
    if phys >= 100 * 1024 * 1024:
        return 96 * 1024 * 1024, 8192
    return (max(16 * 1024 * 1024,
                min(48 * 1024 * 1024, phys - 16 * 1024 * 1024)), 2048)


def _pick_row_tile(N, OH, OW, per_row_bytes, vmem_limit, mb_cap):
    """Largest TH dividing OH with (TH*OW) % 8 == 0 whose per-tile working set
    fits ~1/4 of the VMEM budget; fallback is the smallest legal tile."""
    cap = max(8, min(mb_cap, (vmem_limit // 4) // max(per_row_bytes, 1)))
    best = None
    for th in range(1, OH + 1):
        if OH % th == 0 and (th * OW) % 8 == 0 and th * OW <= cap:
            best = th
    if best is None:
        for th in range(1, OH + 1):          # smallest legal tile bounds VMEM
            if OH % th == 0 and (th * OW) % 8 == 0:
                best = th
                break
    if best is None:
        if N == 1:
            best = OH                        # single full-image tile is legal
        else:
            # TODO(synk): halo / ragged-edge row tiling for widths where no
            # multiple-of-8 row tile exists (odd OW with N > 1).
            raise NotImplementedError(
                f"no legal row tile for OH={OH}, OW={OW}, N={N}")
    return best


def _pick_m_tile(M, cap):
    best = M
    for tm in range(8, min(M, cap) + 1, 8):
        if M % tm == 0:
            best = tm
    return best


# --------------------------------------------------------------------------
# Conv (+ optional fused previous-stage BN/LeakyReLU) + per-tile BN stats
# --------------------------------------------------------------------------
def _conv_stats_call(N, HP, WP, C, OH, OW, K, Cp, TH, *, fuse_bn, vmem_limit):
    """Stride-1 KxK conv over a pre-padded (HP, WP, C) image per batch item.
    Emits the pre-BN result (bf16) plus per-(n, row-tile) sum / sum-of-squares
    partials (f32) for single-pass batch statistics.

    fuse_bn=True additionally applies the PREVIOUS stage's BN affine +
    LeakyReLU to the input window in VMEM and masks the 'same' zero-padding
    halo to exact zero, so the previous stage never writes normalized
    activations to HBM."""
    RT = OH // TH
    MB = TH * OW
    KKC = K * K * C
    WIN = TH + K - 1
    PAD = (K - 1) // 2
    wide = (C % LANES == 0)   # lane-aligned channels -> im2col + one wide-K matmul

    def kernel(*refs):
        i = 0
        x_ref = refs[i]; i += 1
        if fuse_bn:
            s_ref, b_ref = refs[i], refs[i + 1]; i += 2
        w_ref = refs[i]; i += 1
        y_ref, sum_ref, ssq_ref = refs[i], refs[i + 1], refs[i + 2]; i += 3
        act_ref = None
        patch_ref = None
        if fuse_bn:
            act_ref = refs[i]; i += 1
        if wide:
            patch_ref = refs[i]; i += 1

        row0 = pl.program_id(1) * TH
        if TH % 8 == 0:
            row0 = pl.multiple_of(row0, 8)

        if fuse_bn:
            # Fused previous-stage BN + LeakyReLU on the pre-BN input window;
            # the conv-'same' halo is forced to exact zero post-BN.
            win = x_ref[pl.ds(row0, WIN), :, :].astype(jnp.float32)
            a = (win * s_ref[...].reshape(1, 1, C)
                 + b_ref[...].reshape(1, 1, C))
            a = jnp.maximum(a, LRELU_SLOPE * a)
            gr = row0 + lax.broadcasted_iota(jnp.int32, (WIN, WP, C), 0)
            gc = lax.broadcasted_iota(jnp.int32, (WIN, WP, C), 1)
            halo = ((gr < PAD) | (gr >= OH + PAD)
                    | (gc < PAD) | (gc >= OW + PAD))
            act_ref[...] = jnp.where(halo, 0.0, a).astype(act_ref.dtype)
            src, base = act_ref, 0
        else:
            src, base = x_ref, row0

        if wide:
            # In-VMEM im2col: one wide-K MXU push (K = K*K*C) instead of K*K
            # thin ones; column writes are 128-lane aligned (C % 128 == 0).
            for kh in range(K):
                for kw in range(K):
                    col = (kh * K + kw) * C
                    tap = src[pl.ds(base + kh, TH), pl.ds(kw, OW), :]
                    patch_ref[:, col:col + C] = tap.reshape(MB, C)
            res = jnp.dot(patch_ref[...], w_ref[...],
                          preferred_element_type=jnp.float32)
        else:
            # Narrow-channel path (stage 1, C = 4*Cin): per-tap dots accumulated
            # in registers -- no scratch zero-init / re-read.
            res = None
            for kh in range(K):
                for kw in range(K):
                    tap = src[pl.ds(base + kh, TH), pl.ds(kw, OW), :]
                    part = jnp.dot(tap.reshape(MB, C), w_ref[kh * K + kw],
                                   preferred_element_type=jnp.float32)
                    res = part if res is None else res + part

        y_ref[...] = res.astype(y_ref.dtype)
        # Per-(n, r) stats partials: no cross-iteration state, so both grid
        # axes stay 'parallel' (v7x megacore shards them); host glue reduces.
        sum_ref[...] = jnp.sum(res, axis=0, keepdims=True)
        ssq_ref[...] = jnp.sum(res * res, axis=0, keepdims=True)

    vec = pl.BlockSpec((1, Cp), lambda n, r: (0, 0))
    in_specs = [
        # Whole padded image per batch item; block index constant across r so
        # it is DMA'd once per n.  TODO(synk): halo row-tiled input (manual DMA
        # or pl.Buffered(1)) for very large images under v7x's 64 MiB VMEM.
        pl.BlockSpec((None, HP, WP, C), lambda n, r: (n, 0, 0, 0)),
    ]
    if fuse_bn:
        in_specs += [vec, vec]
    # TODO(synk): single-buffer this constant-index weight block
    # (pipeline_mode=pl.Buffered(1)) once verified on the target jax version.
    if wide:
        in_specs.append(pl.BlockSpec((KKC, Cp), lambda n, r: (0, 0)))
    else:
        in_specs.append(pl.BlockSpec((K * K, C, Cp), lambda n, r: (0, 0, 0)))

    scratch = []
    if fuse_bn:
        scratch.append(pltpu.VMEM((WIN, WP, C), jnp.bfloat16))
    if wide:
        scratch.append(pltpu.VMEM((MB, KKC), jnp.bfloat16))

    return pl.pallas_call(
        kernel,
        grid=(N, RT),
        in_specs=in_specs,
        out_specs=[
            pl.BlockSpec((MB, Cp), lambda n, r: (n * RT + r, 0)),        # pre-BN y
            pl.BlockSpec((None, 1, Cp), lambda n, r: (n * RT + r, 0, 0)),  # sum
            pl.BlockSpec((None, 1, Cp), lambda n, r: (n * RT + r, 0, 0)),  # sumsq
        ],
        out_shape=(
            jax.ShapeDtypeStruct((N * OH * OW, Cp), jnp.bfloat16),
            jax.ShapeDtypeStruct((N * RT, 1, Cp), jnp.float32),
            jax.ShapeDtypeStruct((N * RT, 1, Cp), jnp.float32),
        ),
        scratch_shapes=scratch,
        compiler_params=pltpu.CompilerParams(
            dimension_semantics=("parallel", "parallel"),
            vmem_limit_bytes=vmem_limit,
        ),
    )


# --------------------------------------------------------------------------
# Final BatchNorm (scale/shift precomputed) + LeakyReLU, lane-dense & parallel
# --------------------------------------------------------------------------
def _bn_lrelu_call(M, Cp, TM, out_dtype, vmem_limit):
    def kernel(y_ref, s_ref, b_ref, o_ref):
        z = y_ref[...].astype(jnp.float32) * s_ref[...] + b_ref[...]
        o_ref[...] = jnp.maximum(z, LRELU_SLOPE * z).astype(o_ref.dtype)

    vec = pl.BlockSpec((1, Cp), lambda i: (0, 0))
    return pl.pallas_call(
        kernel,
        grid=(M // TM,),
        in_specs=[pl.BlockSpec((TM, Cp), lambda i: (i, 0)), vec, vec],
        out_specs=pl.BlockSpec((TM, Cp), lambda i: (i, 0)),
        out_shape=jax.ShapeDtypeStruct((M, Cp), out_dtype),
        compiler_params=pltpu.CompilerParams(
            dimension_semantics=("parallel",),
            vmem_limit_bytes=vmem_limit,
        ),
    )


# --------------------------------------------------------------------------
# Host-side weight / parameter prep (tiny glue)
# --------------------------------------------------------------------------
def _stage1_taps(w1, Cp):
    """[Cout,Cin,3,3] -> space-to-depth(2) stride-1 2x2 taps [4, 4*Cin, Cp]."""
    Cout, Cin, _, _ = w1.shape
    w_t = jnp.transpose(w1, (2, 3, 1, 0))                   # [kh, kw, ci, co]
    taps = jnp.zeros((2, 2, 2, 2, Cin, Cp), jnp.float32)    # [dh,dw,ph,pw,ci,co]
    for kh in range(3):
        dh, ph = divmod(kh, 2)
        for kw in range(3):
            dw, pw = divmod(kw, 2)
            taps = taps.at[dh, dw, ph, pw, :, :Cout].set(w_t[kh, kw])
    return taps.reshape(4, 4 * Cin, Cp).astype(jnp.bfloat16)


def _stage2_taps(w2, Cp):
    """[Cout,Cmid,3,3] -> im2col weights [9*Cp, Cp] (channels zero-padded)."""
    Cout, Cmid, _, _ = w2.shape
    w_t = jnp.transpose(w2, (2, 3, 1, 0)).reshape(9, Cmid, Cout)
    taps = jnp.zeros((9, Cp, Cp), jnp.float32)
    taps = taps.at[:, :Cmid, :Cout].set(w_t)
    return taps.reshape(9 * Cp, Cp).astype(jnp.bfloat16)


def _pad_vec(v, Cp, fill):
    out = jnp.full((1, Cp), fill, jnp.float32)
    return out.at[0, : v.shape[0]].set(v.astype(jnp.float32))


def _bn_affine(psum, pssq, M, gamma, beta, Cp):
    """Training-mode BN folded into y*scale + shift from sum / sumsq partials."""
    mean = jnp.sum(psum, axis=0) / M                       # (1, Cp)
    var = jnp.maximum(jnp.sum(pssq, axis=0) / M - mean * mean, 0.0)
    scale = _pad_vec(gamma, Cp, 1.0) * lax.rsqrt(var + BN_EPS)
    shift = _pad_vec(beta, Cp, 0.0) - mean * scale
    return scale, shift


# --------------------------------------------------------------------------
# ConvCell forward (NCHW in / NCHW out, PyTorch convention)
# --------------------------------------------------------------------------
def conv_cell_forward(x_nchw, params):
    # NOTE: conv biases (params['b1'], params['b2']) are intentionally unused:
    # a per-channel constant bias is cancelled exactly by the training-mode BN
    # batch-mean subtraction that immediately follows each conv.
    N, Cin, H, W = x_nchw.shape
    assert H % 2 == 0 and W % 2 == 0, "space-to-depth path assumes even H, W"
    Cout = params["w1"].shape[0]
    Cp = _round_up(Cout, LANES)            # lane-dense output channels
    vmem_limit, mb_cap = _hw_budget()

    # TODO(synk): fold the NCHW->NHWC transpose + pad + space-to-depth + bf16
    # cast into a Pallas relayout kernel (currently 1-2 fused XLA copies).
    x = jnp.transpose(x_nchw, (0, 2, 3, 1))                # NCHW -> NHWC
    xp = jnp.pad(x, ((0, 0), (1, 1), (1, 1), (0, 0)))      # conv1 padding=1
    GH, GW = (H + 2) // 2, (W + 2) // 2
    xs = (xp.reshape(N, GH, 2, GW, 2, Cin)
            .transpose(0, 1, 3, 2, 4, 5)
            .reshape(N, GH, GW, 4 * Cin)
            .astype(jnp.bfloat16))
    OH, OW = H // 2, W // 2
    M = N * OH * OW

    # ---- pass 1: conv1 (stride-2 3x3 == stride-1 2x2 over s2d input) + stats
    C1 = 4 * Cin
    w1_taps = _stage1_taps(params["w1"], Cp)
    if C1 % LANES == 0:                    # wide path expects flattened weights
        w1_taps = w1_taps.reshape(4 * C1, Cp)
    TH1 = _pick_row_tile(N, OH, OW, Cp * 6 + C1 * 4, vmem_limit, mb_cap)
    y1, s1, q1 = _conv_stats_call(N, GH, GW, C1, OH, OW, 2, Cp, TH1,
                                  fuse_bn=False, vmem_limit=vmem_limit)(
        xs, w1_taps)
    scale1, shift1 = _bn_affine(s1, q1, M, params["g1"], params["beta1"], Cp)

    # ---- pass 2: conv2 (3x3 'same') with stage-1 BN + LeakyReLU fused into
    # the input load.  y1 is zero-padded pre-BN; the kernel masks the halo to
    # exact zero after the fused BN, matching zero padding of the normalized
    # activations.
    y1p = jnp.pad(y1.reshape(N, OH, OW, Cp), ((0, 0), (1, 1), (1, 1), (0, 0)))
    TH2 = _pick_row_tile(N, OH, OW, 9 * Cp * 2 + Cp * 14, vmem_limit, mb_cap)
    y2, s2, q2 = _conv_stats_call(N, OH + 2, OW + 2, Cp, OH, OW, 3, Cp, TH2,
                                  fuse_bn=True, vmem_limit=vmem_limit)(
        y1p, scale1, shift1, _stage2_taps(params["w2"], Cp))
    scale2, shift2 = _bn_affine(s2, q2, M, params["g2"], params["beta2"], Cp)

    # ---- pass 3: final BN + LeakyReLU
    TM = _pick_m_tile(M, mb_cap)
    out = _bn_lrelu_call(M, Cp, TM, jnp.float32, vmem_limit)(y2, scale2, shift2)

    out = out.reshape(N, OH, OW, Cp)[..., :Cout]           # drop lane padding
    return jnp.transpose(out, (0, 3, 1, 2))                # NHWC -> NCHW


def init_params(key, input_dim, output_dim):
    k1, k2, k3, k4 = jax.random.split(key, 4)
    fan1 = input_dim * 9
    fan2 = output_dim * 9
    return {
        "w1": jax.random.uniform(k1, (output_dim, input_dim, 3, 3),
                                 minval=-1.0, maxval=1.0) / jnp.sqrt(fan1),
        "b1": jax.random.uniform(k2, (output_dim,),
                                 minval=-1.0, maxval=1.0) / jnp.sqrt(fan1),
        "g1": jnp.ones((output_dim,), jnp.float32),
        "beta1": jnp.zeros((output_dim,), jnp.float32),
        "w2": jax.random.uniform(k3, (output_dim, output_dim, 3, 3),
                                 minval=-1.0, maxval=1.0) / jnp.sqrt(fan2),
        "b2": jax.random.uniform(k4, (output_dim,),
                                 minval=-1.0, maxval=1.0) / jnp.sqrt(fan2),
        "g2": jnp.ones((output_dim,), jnp.float32),
        "beta2": jnp.zeros((output_dim,), jnp.float32),
    }


if __name__ == "__main__":
    key = jax.random.PRNGKey(0)
    kx, kp = jax.random.split(key)

    N, Cin, H, W = 2, 4, 16, 16
    Cout = 8
    x = jax.random.normal(kx, (N, Cin, H, W), dtype=jnp.float32)
    params = init_params(kp, Cin, Cout)

    out = jax.jit(conv_cell_forward)(x, params)
    out = jax.block_until_ready(out)

    assert out.shape == (N, Cout, H // 2, W // 2), out.shape
    assert bool(jnp.all(jnp.isfinite(out)))
    print("KERNEL_OK")
</pallas_src>

<mosaic_0001>
module attributes {stable_mosaic.version = 11 : i64} {
  func.func @kernel(%arg0: i32, %arg1: i32, %arg2: memref<1x9x9x16xbf16, #tpu.memory_space<vmem>>, %arg3: memref<4x16x128xbf16, #tpu.memory_space<vmem>>, %arg4: memref<64x128xbf16, #tpu.memory_space<vmem>>, %arg5: memref<1x1x128xf32, #tpu.memory_space<vmem>>, %arg6: memref<1x1x128xf32, #tpu.memory_space<vmem>>) attributes {dimension_semantics = [#tpu.dimension_semantics<parallel>, #tpu.dimension_semantics<parallel>], iteration_bounds = array<i64: 2, 1>, scalar_prefetch = 0 : i64, scratch_operands = 0 : i64, tpu.core_type = #tpu.core_type<tc>, window_params = [{transform_indices = @transform_0, window_bounds = array<i64: 1, 9, 9, 16>}, {pipeline_mode = #tpu.pipeline_mode<synchronous>, transform_indices = @transform_1, window_bounds = array<i64: 4, 16, 128>}, {transform_indices = @transform_2, window_bounds = array<i64: 64, 128>}, {transform_indices = @transform_3, window_bounds = array<i64: 1, 1, 128>}, {transform_indices = @transform_4, window_bounds = array<i64: 1, 1, 128>}]} {
    %c8_i32 = arith.constant 8 : i32
    %0 = arith.muli %arg1, %c8_i32 : i32
    %1 = tpu.assume_multiple %0, 8 : i32
    %c0_i32 = arith.constant 0 : i32
    %2 = arith.addi %1, %c0_i32 : i32
    %c0 = arith.constant 0 : index
    %3 = arith.index_cast %2 : i32 to index
    %c0_0 = arith.constant 0 : index
    %c0_1 = arith.constant 0 : index
    %4 = vector.load %arg2[%c0, %3, %c0_0, %c0_1] : memref<1x9x9x16xbf16, #tpu.memory_space<vmem>>, vector<1x8x8x16xbf16>
    %5 = vector.shape_cast %4 : vector<1x8x8x16xbf16> to vector<8x8x16xbf16>
    %6 = vector.shape_cast %5 : vector<8x8x16xbf16> to vector<64x16xbf16>
    %c0_2 = arith.constant 0 : index
    %c0_3 = arith.constant 0 : index
    %c0_4 = arith.constant 0 : index
    %7 = vector.load %arg3[%c0_2, %c0_3, %c0_4] : memref<4x16x128xbf16, #tpu.memory_space<vmem>>, vector<1x16x128xbf16>
    %8 = vector.shape_cast %7 : vector<1x16x128xbf16> to vector<16x128xbf16>
    %cst = arith.constant dense<0.000000e+00> : vector<64x128xf32>
    %9 = tpu.matmul %6, %8, %cst {dimension_numbers = #tpu.dot_dimension_numbers<[1], [0], [0], [1], [0, 0, 1, 1], [], []>} : vector<64x16xbf16>, vector<16x128xbf16>, vector<64x128xf32> -> vector<64x128xf32>
    %c0_i32_5 = arith.constant 0 : i32
    %10 = arith.addi %1, %c0_i32_5 : i32
    %c0_6 = arith.constant 0 : index
    %11 = arith.index_cast %10 : i32 to index
    %c1 = arith.constant 1 : index
    %c0_7 = arith.constant 0 : index
    %12 = vector.load %arg2[%c0_6, %11, %c1, %c0_7] : memref<1x9x9x16xbf16, #tpu.memory_space<vmem>>, vector<1x8x8x16xbf16>
    %13 = vector.shape_cast %12 : vector<1x8x8x16xbf16> to vector<8x8x16xbf16>
    %14 = vector.shape_cast %13 : vector<8x8x16xbf16> to vector<64x16xbf16>
    %c1_8 = arith.constant 1 : index
    %c0_9 = arith.constant 0 : index
    %c0_10 = arith.constant 0 : index
    %15 = vector.load %arg3[%c1_8, %c0_9, %c0_10] : memref<4x16x128xbf16, #tpu.memory_space<vmem>>, vector<1x16x128xbf16>
    %16 = vector.shape_cast %15 : vector<1x16x128xbf16> to vector<16x128xbf16>
    %cst_11 = arith.constant dense<0.000000e+00> : vector<64x128xf32>
    %17 = tpu.matmul %14, %16, %cst_11 {dimension_numbers = #tpu.dot_dimension_numbers<[1], [0], [0], [1], [0, 0, 1, 1], [], []>} : vector<64x16xbf16>, vector<16x128xbf16>, vector<64x128xf32> -> vector<64x128xf32>
    %18 = arith.addf %9, %17 : vector<64x128xf32>
    %c1_i32 = arith.constant 1 : i32
    %19 = arith.addi %1, %c1_i32 : i32
    %c0_12 = arith.constant 0 : index
    %20 = arith.index_cast %19 : i32 to index
    %c0_13 = arith.constant 0 : index
    %c0_14 = arith.constant 0 : index
    %21 = vector.load %arg2[%c0_12, %20, %c0_13, %c0_14] : memref<1x9x9x16xbf16, #tpu.memory_space<vmem>>, vector<1x8x8x16xbf16>
    %22 = vector.shape_cast %21 : vector<1x8x8x16xbf16> to vector<8x8x16xbf16>
    %23 = vector.shape_cast %22 : vector<8x8x16xbf16> to vector<64x16xbf16>
    %c2 = arith.constant 2 : index
    %c0_15 = arith.constant 0 : index
    %c0_16 = arith.constant 0 : index
    %24 = vector.load %arg3[%c2, %c0_15, %c0_16] : memref<4x16x128xbf16, #tpu.memory_space<vmem>>, vector<1x16x128xbf16>
    %25 = vector.shape_cast %24 : vector<1x16x128xbf16> to vector<16x128xbf16>
    %cst_17 = arith.constant dense<0.000000e+00> : vector<64x128xf32>
    %26 = tpu.matmul %23, %25, %cst_17 {dimension_numbers = #tpu.dot_dimension_numbers<[1], [0], [0], [1], [0, 0, 1, 1], [], []>} : vector<64x16xbf16>, vector<16x128xbf16>, vector<64x128xf32> -> vector<64x128xf32>
    %27 = arith.addf %18, %26 : vector<64x128xf32>
    %c1_i32_18 = arith.constant 1 : i32
    %28 = arith.addi %1, %c1_i32_18 : i32
    %c0_19 = arith.constant 0 : index
    %29 = arith.index_cast %28 : i32 to index
    %c1_20 = arith.constant 1 : index
    %c0_21 = arith.constant 0 : index
    %30 = vector.load %arg2[%c0_19, %29, %c1_20, %c0_21] : memref<1x9x9x16xbf16, #tpu.memory_space<vmem>>, vector<1x8x8x16xbf16>
    %31 = vector.shape_cast %30 : vector<1x8x8x16xbf16> to vector<8x8x16xbf16>
    %32 = vector.shape_cast %31 : vector<8x8x16xbf16> to vector<64x16xbf16>
    %c3 = arith.constant 3 : index
    %c0_22 = arith.constant 0 : index
    %c0_23 = arith.constant 0 : index
    %33 = vector.load %arg3[%c3, %c0_22, %c0_23] : memref<4x16x128xbf16, #tpu.memory_space<vmem>>, vector<1x16x128xbf16>
    %34 = vector.shape_cast %33 : vector<1x16x128xbf16> to vector<16x128xbf16>
    %cst_24 = arith.constant dense<0.000000e+00> : vector<64x128xf32>
    %35 = tpu.matmul %32, %34, %cst_24 {dimension_numbers = #tpu.dot_dimension_numbers<[1], [0], [0], [1], [0, 0, 1, 1], [], []>} : vector<64x16xbf16>, vector<16x128xbf16>, vector<64x128xf32> -> vector<64x128xf32>
    %36 = arith.addf %27, %35 : vector<64x128xf32>
    %37 = arith.truncf %36 : vector<64x128xf32> to vector<64x128xbf16>
    %c0_25 = arith.constant 0 : index
    %c0_26 = arith.constant 0 : index
    %38 = vector.load %arg4[%c0_25, %c0_26] : memref<64x128xbf16, #tpu.memory_space<vmem>>, vector<64x128xbf16>
    tpu.vector_store %arg4[%c0_25, %c0_26], %37 {strides = array<i32>} : memref<64x128xbf16, #tpu.memory_space<vmem>>, vector<64x128xbf16>,
    %cst_27 = arith.constant dense<0.000000e+00> : vector<128xf32>
    %39 = vector.multi_reduction <add>, %36, %cst_27 [0] : vector<64x128xf32> to vector<128xf32>
    %40 = vector.shape_cast %39 : vector<128xf32> to vector<1x128xf32>
    %c0_28 = arith.constant 0 : index
    %c0_29 = arith.constant 0 : index
    %c0_30 = arith.constant 0 : index
    %41 = vector.load %arg5[%c0_28, %c0_29, %c0_30] : memref<1x1x128xf32, #tpu.memory_space<vmem>>, vector<1x1x128xf32>
    %42 = vector.shape_cast %41 : vector<1x1x128xf32> to vector<1x128xf32>
    %43 = vector.shape_cast %40 : vector<1x128xf32> to vector<1x1x128xf32>
    tpu.vector_store %arg5[%c0_28, %c0_29, %c0_30], %43 {strides = array<i32>} : memref<1x1x128xf32, #tpu.memory_space<vmem>>, vector<1x1x128xf32>,
    %44 = arith.mulf %36, %36 : vector<64x128xf32>
    %cst_31 = arith.constant dense<0.000000e+00> : vector<128xf32>
    %45 = vector.multi_reduction <add>, %44, %cst_31 [0] : vector<64x128xf32> to vector<128xf32>
    %46 = vector.shape_cast %45 : vector<128xf32> to vector<1x128xf32>
    %c0_32 = arith.constant 0 : index
    %c0_33 = arith.constant 0 : index
    %c0_34 = arith.constant 0 : index
    %47 = vector.load %arg6[%c0_32, %c0_33, %c0_34] : memref<1x1x128xf32, #tpu.memory_space<vmem>>, vector<1x1x128xf32>
    %48 = vector.shape_cast %47 : vector<1x1x128xf32> to vector<1x128xf32>
    %49 = vector.shape_cast %46 : vector<1x128xf32> to vector<1x1x128xf32>
    tpu.vector_store %arg6[%c0_32, %c0_33, %c0_34], %49 {strides = array<i32>} : memref<1x1x128xf32, #tpu.memory_space<vmem>>, vector<1x1x128xf32>,
    return
  }
  func.func @transform_0(%arg0: i32, %arg1: i32) -> (i32, i32, i32, i32) {
    %c0_i32 = arith.constant 0 : i32
    %c0_i32_0 = arith.constant 0 : i32
    %c0_i32_1 = arith.constant 0 : i32
    %c0_i32_2 = arith.constant 0 : i32
    return %arg0, %c0_i32, %c0_i32_0, %c0_i32_1 : i32, i32, i32, i32
  }
  func.func @transform_1(%arg0: i32, %arg1: i32) -> (i32, i32, i32) {
    %c0_i32 = arith.constant 0 : i32
    %c0_i32_0 = arith.constant 0 : i32
    %c0_i32_1 = arith.constant 0 : i32
    %c0_i32_2 = arith.constant 0 : i32
    return %c0_i32, %c0_i32_0, %c0_i32_1 : i32, i32, i32
  }
  func.func @transform_2(%arg0: i32, %arg1: i32) -> (i32, i32) {
    %c1_i32 = arith.constant 1 : i32
    %0 = arith.muli %arg0, %c1_i32 : i32
    %1 = arith.addi %0, %arg1 : i32
    %c0_i32 = arith.constant 0 : i32
    %c0_i32_0 = arith.constant 0 : i32
    return %1, %c0_i32 : i32, i32
  }
  func.func @transform_3(%arg0: i32, %arg1: i32) -> (i32, i32, i32) {
    %c1_i32 = arith.constant 1 : i32
    %0 = arith.muli %arg0, %c1_i32 : i32
    %1 = arith.addi %0, %arg1 : i32
    %c0_i32 = arith.constant 0 : i32
    %c0_i32_0 = arith.constant 0 : i32
    %c0_i32_1 = arith.constant 0 : i32
    return %1, %c0_i32, %c0_i32_0 : i32, i32, i32
  }
  func.func @transform_4(%arg0: i32, %arg1: i32) -> (i32, i32, i32) {
    %c1_i32 = arith.constant 1 : i32
    %0 = arith.muli %arg0, %c1_i32 : i32
    %1 = arith.addi %0, %arg1 : i32
    %c0_i32 = arith.constant 0 : i32
    %c0_i32_0 = arith.constant 0 : i32
    %c0_i32_1 = arith.constant 0 : i32
    return %1, %c0_i32, %c0_i32_0 : i32, i32, i32
  }
}

module attributes {stable_mosaic.version = 11 : i64} {
  func.func @kernel(%arg0: i32, %arg1: memref<128x128xbf16, #tpu.memory_space<vmem>>, %arg2: memref<1x128xf32, #tpu.memory_space<vmem>>, %arg3: memref<1x128xf32, #tpu.memory_space<vmem>>, %arg4: memref<128x128xf32, #tpu.memory_space<vmem>>) attributes {dimension_semantics = [#tpu.dimension_semantics<parallel>], iteration_bounds = array<i64: 1>, scalar_prefetch = 0 : i64, scratch_operands = 0 : i64, tpu.core_type = #tpu.core_type<tc>, window_params = [{transform_indices = @transform_0, window_bounds = array<i64: 128, 128>}, {pipeline_mode = #tpu.pipeline_mode<synchronous>, transform_indices = @transform_1, window_bounds = array<i64: 1, 128>}, {pipeline_mode = #tpu.pipeline_mode<synchronous>, transform_indices = @transform_2, window_bounds = array<i64: 1, 128>}, {transform_indices = @transform_3, window_bounds = array<i64: 128, 128>}]} {
    %c0 = arith.constant 0 : index
    %c0_0 = arith.constant 0 : index
    %0 = vector.load %arg1[%c0, %c0_0] : memref<128x128xbf16, #tpu.memory_space<vmem>>, vector<128x128xbf16>
    %1 = arith.extf %0 : vector<128x128xbf16> to vector<128x128xf32>
    %c0_1 = arith.constant 0 : index
    %c0_2 = arith.constant 0 : index
    %2 = vector.load %arg2[%c0_1, %c0_2] : memref<1x128xf32, #tpu.memory_space<vmem>>, vector<1x128xf32>
    %3 = vector.broadcast %2 : vector<1x128xf32> to vector<128x128xf32>
    %4 = arith.mulf %1, %3 : vector<128x128xf32>
    %c0_3 = arith.constant 0 : index
    %c0_4 = arith.constant 0 : index
    %5 = vector.load %arg3[%c0_3, %c0_4] : memref<1x128xf32, #tpu.memory_space<vmem>>, vector<1x128xf32>
    %6 = vector.broadcast %5 : vector<1x128xf32> to vector<128x128xf32>
    %7 = arith.addf %4, %6 : vector<128x128xf32>
    %cst = arith.constant 0.00999999977 : f32
    %8 = vector.broadcast %cst : f32 to vector<128x128xf32>
    %9 = arith.mulf %8, %7 : vector<128x128xf32>
    %10 = arith.maximumf %7, %9 : vector<128x128xf32>
    %c0_5 = arith.constant 0 : index
    %c0_6 = arith.constant 0 : index
    %11 = vector.load %arg4[%c0_5, %c0_6] : memref<128x128xf32, #tpu.memory_space<vmem>>, vector<128x128xf32>
    tpu.vector_store %arg4[%c0_5, %c0_6], %10 {strides = array<i32>} : memref<128x128xf32, #tpu.memory_space<vmem>>, vector<128x128xf32>,
    return
  }
  func.func @transform_0(%arg0: i32) -> (i32, i32) {
    %c0_i32 = arith.constant 0 : i32
    %c0_i32_0 = arith.constant 0 : i32
    return %arg0, %c0_i32 : i32, i32
  }
  func.func @transform_1(%arg0: i32) -> (i32, i32) {
    %c0_i32 = arith.constant 0 : i32
    %c0_i32_0 = arith.constant 0 : i32
    %c0_i32_1 = arith.constant 0 : i32
    return %c0_i32, %c0_i32_0 : i32, i32
  }
  func.func @transform_2(%arg0: i32) -> (i32, i32) {
    %c0_i32 = arith.constant 0 : i32
    %c0_i32_0 = arith.constant 0 : i32
    %c0_i32_1 = arith.constant 0 : i32
    return %c0_i32, %c0_i32_0 : i32, i32
  }
  func.func @transform_3(%arg0: i32) -> (i32, i32) {
    %c0_i32 = arith.constant 0 : i32
    %c0_i32_0 = arith.constant 0 : i32
    return %arg0, %c0_i32 : i32, i32
  }
}

module attributes {stable_mosaic.version = 11 : i64} {
  func.func @kernel(%arg0: i32, %arg1: i32, %arg2: memref<1x10x10x128xbf16, #tpu.memory_space<vmem>>, %arg3: memref<1x128xf32, #tpu.memory_space<vmem>>, %arg4: memref<1x128xf32, #tpu.memory_space<vmem>>, %arg5: memref<1152x128xbf16, #tpu.memory_space<vmem>>, %arg6: memref<64x128xbf16, #tpu.memory_space<vmem>>, %arg7: memref<1x1x128xf32, #tpu.memory_space<vmem>>, %arg8: memref<1x1x128xf32, #tpu.memory_space<vmem>>, %arg9: memref<10x10x128xbf16, #tpu.memory_space<vmem>>, %arg10: memref<64x1152xbf16, #tpu.memory_space<vmem>>) attributes {dimension_semantics = [#tpu.dimension_semantics<parallel>, #tpu.dimension_semantics<parallel>], iteration_bounds = array<i64: 2, 1>, scalar_prefetch = 0 : i64, scratch_operands = 2 : i64, tpu.core_type = #tpu.core_type<tc>, window_params = [{transform_indices = @transform_0, window_bounds = array<i64: 1, 10, 10, 128>}, {pipeline_mode = #tpu.pipeline_mode<synchronous>, transform_indices = @transform_1, window_bounds = array<i64: 1, 128>}, {pipeline_mode = #tpu.pipeline_mode<synchronous>, transform_indices = @transform_2, window_bounds = array<i64: 1, 128>}, {pipeline_mode = #tpu.pipeline_mode<synchronous>, transform_indices = @transform_3, window_bounds = array<i64: 1152, 128>}, {transform_indices = @transform_4, window_bounds = array<i64: 64, 128>}, {transform_indices = @transform_5, window_bounds = array<i64: 1, 1, 128>}, {transform_indices = @transform_6, window_bounds = array<i64: 1, 1, 128>}]} {
    %c8_i32 = arith.constant 8 : i32
    %0 = arith.muli %arg1, %c8_i32 : i32
    %1 = tpu.assume_multiple %0, 8 : i32
    %c0 = arith.constant 0 : index
    %2 = arith.index_cast %1 : i32 to index
    %c0_0 = arith.constant 0 : index
    %c0_1 = arith.constant 0 : index
    %3 = vector.load %arg2[%c0, %2, %c0_0, %c0_1] : memref<1x10x10x128xbf16, #tpu.memory_space<vmem>>, vector<1x10x10x128xbf16>
    %4 = vector.shape_cast %3 : vector<1x10x10x128xbf16> to vector<10x10x128xbf16>
    %5 = arith.extf %4 : vector<10x10x128xbf16> to vector<10x10x128xf32>
    %c0_2 = arith.constant 0 : index
    %c0_3 = arith.constant 0 : index
    %6 = vector.load %arg3[%c0_2, %c0_3] : memref<1x128xf32, #tpu.memory_space<vmem>>, vector<1x128xf32>
    %7 = vector.shape_cast %6 : vector<1x128xf32> to vector<1x1x128xf32>
    %8 = vector.broadcast %7 : vector<1x1x128xf32> to vector<10x10x128xf32>
    %9 = arith.mulf %5, %8 : vector<10x10x128xf32>
    %c0_4 = arith.constant 0 : index
    %c0_5 = arith.constant 0 : index
    %10 = vector.load %arg4[%c0_4, %c0_5] : memref<1x128xf32, #tpu.memory_space<vmem>>, vector<1x128xf32>
    %11 = vector.shape_cast %10 : vector<1x128xf32> to vector<1x1x128xf32>
    %12 = vector.broadcast %11 : vector<1x1x128xf32> to vector<10x10x128xf32>
    %13 = arith.addf %9, %12 : vector<10x10x128xf32>
    %cst = arith.constant 0.00999999977 : f32
    %14 = vector.broadcast %cst : f32 to vector<10x10x128xf32>
    %15 = arith.mulf %14, %13 : vector<10x10x128xf32>
    %16 = arith.maximumf %13, %15 : vector<10x10x128xf32>
    %17 = tpu.iota {dimensions = array<i32: 0>} : vector<10x10x128xi32>
    %18 = vector.broadcast %1 : i32 to vector<10x10x128xi32>
    %19 = arith.addi %18, %17 : vector<10x10x128xi32>
    %20 = tpu.iota {dimensions = array<i32: 1>} : vector<10x10x128xi32>
    %c1_i32 = arith.constant 1 : i32
    %21 = vector.broadcast %c1_i32 : i32 to vector<10x10x128xi32>
    %22 = arith.cmpi slt, %19, %21 : vector<10x10x128xi32>
    %c9_i32 = arith.constant 9 : i32
    %23 = vector.broadcast %c9_i32 : i32 to vector<10x10x128xi32>
    %24 = arith.cmpi sge, %19, %23 : vector<10x10x128xi32>
    %25 = arith.ori %22, %24 : vector<10x10x128xi1>
    %c1_i32_6 = arith.constant 1 : i32
    %26 = vector.broadcast %c1_i32_6 : i32 to vector<10x10x128xi32>
    %27 = arith.cmpi slt, %20, %26 : vector<10x10x128xi32>
    %28 = arith.ori %25, %27 : vector<10x10x128xi1>
    %c9_i32_7 = arith.constant 9 : i32
    %29 = vector.broadcast %c9_i32_7 : i32 to vector<10x10x128xi32>
    %30 = arith.cmpi sge, %20, %29 : vector<10x10x128xi32>
    %31 = arith.ori %28, %30 : vector<10x10x128xi1>
    %cst_8 = arith.constant 0.000000e+00 : f32
    %32 = vector.broadcast %cst_8 : f32 to vector<10x10x128xf32>
    %33 = arith.select %31, %32, %16 : vector<10x10x128xi1>, vector<10x10x128xf32>
    %34 = arith.truncf %33 : vector<10x10x128xf32> to vector<10x10x128xbf16>
    %c0_9 = arith.constant 0 : index
    %c0_10 = arith.constant 0 : index
    %c0_11 = arith.constant 0 : index
    %35 = vector.load %arg9[%c0_9, %c0_10, %c0_11] : memref<10x10x128xbf16, #tpu.memory_space<vmem>>, vector<10x10x128xbf16>
    tpu.vector_store %arg9[%c0_9, %c0_10, %c0_11], %34 {strides = array<i32>} : memref<10x10x128xbf16, #tpu.memory_space<vmem>>, vector<10x10x128xbf16>,
    %c0_12 = arith.constant 0 : index
    %c0_13 = arith.constant 0 : index
    %c0_14 = arith.constant 0 : index
    %36 = vector.load %arg9[%c0_12, %c0_13, %c0_14] : memref<10x10x128xbf16, #tpu.memory_space<vmem>>, vector<8x8x128xbf16>
    %37 = vector.shape_cast %36 : vector<8x8x128xbf16> to vector<64x128xbf16>
    %c0_15 = arith.constant 0 : index
    %c0_16 = arith.constant 0 : index
    %38 = vector.load %arg10[%c0_15, %c0_16] : memref<64x1152xbf16, #tpu.memory_space<vmem>>, vector<64x128xbf16>
    tpu.vector_store %arg10[%c0_15, %c0_16], %37 {strides = array<i32>} : memref<64x1152xbf16, #tpu.memory_space<vmem>>, vector<64x128xbf16>,
    %c0_17 = arith.constant 0 : index
    %c1 = arith.constant 1 : index
    %c0_18 = arith.constant 0 : index
    %39 = vector.load %arg9[%c0_17, %c1, %c0_18] : memref<10x10x128xbf16, #tpu.memory_space<vmem>>, vector<8x8x128xbf16>
    %40 = vector.shape_cast %39 : vector<8x8x128xbf16> to vector<64x128xbf16>
    %c0_19 = arith.constant 0 : index
    %c128 = arith.constant 128 : index
    %41 = vector.load %arg10[%c0_19, %c128] : memref<64x1152xbf16, #tpu.memory_space<vmem>>, vector<64x128xbf16>
    tpu.vector_store %arg10[%c0_19, %c128], %40 {strides = array<i32>} : memref<64x1152xbf16, #tpu.memory_space<vmem>>, vector<64x128xbf16>,
    %c0_20 = arith.constant 0 : index
    %c2 = arith.constant 2 : index
    %c0_21 = arith.constant 0 : index
    %42 = vector.load %arg9[%c0_20, %c2, %c0_21] : memref<10x10x128xbf16, #tpu.memory_space<vmem>>, vector<8x8x128xbf16>
    %43 = vector.shape_cast %42 : vector<8x8x128xbf16> to vector<64x128xbf16>
    %c0_22 = arith.constant 0 : index
    %c256 = arith.constant 256 : index
    %44 = vector.load %arg10[%c0_22, %c256] : memref<64x1152xbf16, #tpu.memory_space<vmem>>, vector<64x128xbf16>
    tpu.vector_store %arg10[%c0_22, %c256], %43 {strides = array<i32>} : memref<64x1152xbf16, #tpu.memory_space<vmem>>, vector<64x128xbf16>,
    %c1_23 = arith.constant 1 : index
    %c0_24 = arith.constant 0 : index
    %c0_25 = arith.constant 0 : index
    %45 = vector.load %arg9[%c1_23, %c0_24, %c0_25] : memref<10x10x128xbf16, #tpu.memory_space<vmem>>, vector<8x8x128xbf16>
    %46 = vector.shape_cast %45 : vector<8x8x128xbf16> to vector<64x128xbf16>
    %c0_26 = arith.constant 0 : index
    %c384 = arith.constant 384 : index
    %47 = vector.load %arg10[%c0_26, %c384] : memref<64x1152xbf16, #tpu.memory_space<vmem>>, vector<64x128xbf16>
    tpu.vector_store %arg10[%c0_26, %c384], %46 {strides = array<i32>} : memref<64x1152xbf16, #tpu.memory_space<vmem>>, vector<64x128xbf16>,
    %c1_27 = arith.constant 1 : index
    %c1_28 = arith.constant 1 : index
    %c0_29 = arith.constant 0 : index
    %48 = vector.load %arg9[%c1_27, %c1_28, %c0_29] : memref<10x10x128xbf16, #tpu.memory_space<vmem>>, vector<8x8x128xbf16>
    %49 = vector.shape_cast %48 : vector<8x8x128xbf16> to vector<64x128xbf16>
    %c0_30 = arith.constant 0 : index
    %c512 = arith.constant 512 : index
    %50 = vector.load %arg10[%c0_30, %c512] : memref<64x1152xbf16, #tpu.memory_space<vmem>>, vector<64x128xbf16>
    tpu.vector_store %arg10[%c0_30, %c512], %49 {strides = array<i32>} : memref<64x1152xbf16, #tpu.memory_space<vmem>>, vector<64x128xbf16>,
    %c1_31 = arith.constant 1 : index
    %c2_32 = arith.constant 2 : index
    %c0_33 = arith.constant 0 : index
    %51 = vector.load %arg9[%c1_31, %c2_32, %c0_33] : memref<10x10x128xbf16, #tpu.memory_space<vmem>>, vector<8x8x128xbf16>
    %52 = vector.shape_cast %51 : vector<8x8x128xbf16> to vector<64x128xbf16>
    %c0_34 = arith.constant 0 : index
    %c640 = arith.constant 640 : index
    %53 = vector.load %arg10[%c0_34, %c640] : memref<64x1152xbf16, #tpu.memory_space<vmem>>, vector<64x128xbf16>
    tpu.vector_store %arg10[%c0_34, %c640], %52 {strides = array<i32>} : memref<64x1152xbf16, #tpu.memory_space<vmem>>, vector<64x128xbf16>,
    %c2_35 = arith.constant 2 : index
    %c0_36 = arith.constant 0 : index
    %c0_37 = arith.constant 0 : index
    %54 = vector.load %arg9[%c2_35, %c0_36, %c0_37] : memref<10x10x128xbf16, #tpu.memory_space<vmem>>, vector<8x8x128xbf16>
    %55 = vector.shape_cast %54 : vector<8x8x128xbf16> to vector<64x128xbf16>
    %c0_38 = arith.constant 0 : index
    %c768 = arith.constant 768 : index
    %56 = vector.load %arg10[%c0_38, %c768] : memref<64x1152xbf16, #tpu.memory_space<vmem>>, vector<64x128xbf16>
    tpu.vector_store %arg10[%c0_38, %c768], %55 {strides = array<i32>} : memref<64x1152xbf16, #tpu.memory_space<vmem>>, vector<64x128xbf16>,
    %c2_39 = arith.constant 2 : index
    %c1_40 = arith.constant 1 : index
    %c0_41 = arith.constant 0 : index
    %57 = vector.load %arg9[%c2_39, %c1_40, %c0_41] : memref<10x10x128xbf16, #tpu.memory_space<vmem>>, vector<8x8x128xbf16>
    %58 = vector.shape_cast %57 : vector<8x8x128xbf16> to vector<64x128xbf16>
    %c0_42 = arith.constant 0 : index
    %c896 = arith.constant 896 : index
    %59 = vector.load %arg10[%c0_42, %c896] : memref<64x1152xbf16, #tpu.memory_space<vmem>>, vector<64x128xbf16>
    tpu.vector_store %arg10[%c0_42, %c896], %58 {strides = array<i32>} : memref<64x1152xbf16, #tpu.memory_space<vmem>>, vector<64x128xbf16>,
    %c2_43 = arith.constant 2 : index
    %c2_44 = arith.constant 2 : index
    %c0_45 = arith.constant 0 : index
    %60 = vector.load %arg9[%c2_43, %c2_44, %c0_45] : memref<10x10x128xbf16, #tpu.memory_space<vmem>>, vector<8x8x128xbf16>
    %61 = vector.shape_cast %60 : vector<8x8x128xbf16> to vector<64x128xbf16>
    %c0_46 = arith.constant 0 : index
    %c1024 = arith.constant 1024 : index
    %62 = vector.load %arg10[%c0_46, %c1024] : memref<64x1152xbf16, #tpu.memory_space<vmem>>, vector<64x128xbf16>
    tpu.vector_store %arg10[%c0_46, %c1024], %61 {strides = array<i32>} : memref<64x1152xbf16, #tpu.memory_space<vmem>>, vector<64x128xbf16>,
    %c0_47 = arith.constant 0 : index
    %c0_48 = arith.constant 0 : index
    %63 = vector.load %arg10[%c0_47, %c0_48] : memref<64x1152xbf16, #tpu.memory_space<vmem>>, vector<64x1152xbf16>
    %c0_49 = arith.constant 0 : index
    %c0_50 = arith.constant 0 : index
    %64 = vector.load %arg5[%c0_49, %c0_50] : memref<1152x128xbf16, #tpu.memory_space<vmem>>, vector<1152x128xbf16>
    %cst_51 = arith.constant dense<0.000000e+00> : vector<64x128xf32>
    %65 = tpu.matmul %63, %64, %cst_51 {dimension_numbers = #tpu.dot_dimension_numbers<[1], [0], [0], [1], [0, 0, 1, 1], [], []>} : vector<64x1152xbf16>, vector<1152x128xbf16>, vector<64x128xf32> -> vector<64x128xf32>
    %66 = arith.truncf %65 : vector<64x128xf32> to vector<64x128xbf16>
    %c0_52 = arith.constant 0 : index
    %c0_53 = arith.constant 0 : index
    %67 = vector.load %arg6[%c0_52, %c0_53] : memref<64x128xbf16, #tpu.memory_space<vmem>>, vector<64x128xbf16>
    tpu.vector_store %arg6[%c0_52, %c0_53], %66 {strides = array<i32>} : memref<64x128xbf16, #tpu.memory_space<vmem>>, vector<64x128xbf16>,
    %cst_54 = arith.constant dense<0.000000e+00> : vector<128xf32>
    %68 = vector.multi_reduction <add>, %65, %cst_54 [0] : vector<64x128xf32> to vector<128xf32>
    %69 = vector.shape_cast %68 : vector<128xf32> to vector<1x128xf32>
    %c0_55 = arith.constant 0 : index
    %c0_56 = arith.constant 0 : index
    %c0_57 = arith.constant 0 : index
    %70 = vector.load %arg7[%c0_55, %c0_56, %c0_57] : memref<1x1x128xf32, #tpu.memory_space<vmem>>, vector<1x1x128xf32>
    %71 = vector.shape_cast %70 : vector<1x1x128xf32> to vector<1x128xf32>
    %72 = vector.shape_cast %69 : vector<1x128xf32> to vector<1x1x128xf32>
    tpu.vector_store %arg7[%c0_55, %c0_56, %c0_57], %72 {strides = array<i32>} : memref<1x1x128xf32, #tpu.memory_space<vmem>>, vector<1x1x128xf32>,
    %73 = arith.mulf %65, %65 : vector<64x128xf32>
    %cst_58 = arith.constant dense<0.000000e+00> : vector<128xf32>
    %74 = vector.multi_reduction <add>, %73, %cst_58 [0] : vector<64x128xf32> to vector<128xf32>
    %75 = vector.shape_cast %74 : vector<128xf32> to vector<1x128xf32>
    %c0_59 = arith.constant 0 : index
    %c0_60 = arith.constant 0 : index
    %c0_61 = arith.constant 0 : index
    %76 = vector.load %arg8[%c0_59, %c0_60, %c0_61] : memref<1x1x128xf32, #tpu.memory_space<vmem>>, vector<1x1x128xf32>
    %77 = vector.shape_cast %76 : vector<1x1x128xf32> to vector<1x128xf32>
    %78 = vector.shape_cast %75 : vector<1x128xf32> to vector<1x1x128xf32>
    tpu.vector_store %arg8[%c0_59, %c0_60, %c0_61], %78 {strides = array<i32>} : memref<1x1x128xf32, #tpu.memory_space<vmem>>, vector<1x1x128xf32>,
    return
  }
  func.func @transform_0(%arg0: i32, %arg1: i32) -> (i32, i32, i32, i32) {
    %c0_i32 = arith.constant 0 : i32
    %c0_i32_0 = arith.constant 0 : i32
    %c0_i32_1 = arith.constant 0 : i32
    %c0_i32_2 = arith.constant 0 : i32
    return %arg0, %c0_i32, %c0_i32_0, %c0_i32_1 : i32, i32, i32, i32
  }
  func.func @transform_1(%arg0: i32, %arg1: i32) -> (i32, i32) {
    %c0_i32 = arith.constant 0 : i32
    %c0_i32_0 = arith.constant 0 : i32
    %c0_i32_1 = arith.constant 0 : i32
    return %c0_i32, %c0_i32_0 : i32, i32
  }
  func.func @transform_2(%arg0: i32, %arg1: i32) -> (i32, i32) {
    %c0_i32 = arith.constant 0 : i32
    %c0_i32_0 = arith.constant 0 : i32
    %c0_i32_1 = arith.constant 0 : i32
    return %c0_i32, %c0_i32_0 : i32, i32
  }
  func.func @transform_3(%arg0: i32, %arg1: i32) -> (i32, i32) {
    %c0_i32 = arith.constant 0 : i32
    %c0_i32_0 = arith.constant 0 : i32
    %c0_i32_1 = arith.constant 0 : i32
    return %c0_i32, %c0_i32_0 : i32, i32
  }
  func.func @transform_4(%arg0: i32, %arg1: i32) -> (i32, i32) {
    %c1_i32 = arith.constant 1 : i32
    %0 = arith.muli %arg0, %c1_i32 : i32
    %1 = arith.addi %0, %arg1 : i32
    %c0_i32 = arith.constant 0 : i32
    %c0_i32_0 = arith.constant 0 : i32
    return %1, %c0_i32 : i32, i32
  }
  func.func @transform_5(%arg0: i32, %arg1: i32) -> (i32, i32, i32) {
    %c1_i32 = arith.constant 1 : i32
    %0 = arith.muli %arg0, %c1_i32 : i32
    %1 = arith.addi %0, %arg1 : i32
    %c0_i32 = arith.constant 0 : i32
    %c0_i32_0 = arith.constant 0 : i32
    %c0_i32_1 = arith.constant 0 : i32
    return %1, %c0_i32, %c0_i32_0 : i32, i32, i32
  }
  func.func @transform_6(%arg0: i32, %arg1: i32) -> (i32, i32, i32) {
    %c1_i32 = arith.constant 1 : i32
    %0 = arith.muli %arg0, %c1_i32 : i32
    %1 = arith.addi %0, %arg1 : i32
    %c0_i32 = arith.constant 0 : i32
    %c0_i32_0 = arith.constant 0 : i32
    %c0_i32_1 = arith.constant 0 : i32
    return %1, %c0_i32, %c0_i32_0 : i32, i32, i32
  }
}

</mosaic_0001>

<llo_original>
// kernel: conv_cell_forward.5
$region0: #{conv_cell_forward.5}
  #allocation0 [shape = 'u32[]', space=smem, size = 0x4, offset = 0x4, fixed_abs, tag = 'smem constant byte address 0x4 - core index']
  #allocation1 [shape = 'u32[72,128]{1,0:T(1,128)}', space=vmem, size = 0x9000, scoped, tag = 'internal scratch']
  %s0 = inlined_call_operand.vmem [shape: bf16[128,128], index: 0, kind: input, shape index: {}]
  %s1 = inlined_call_operand.vmem [shape: f32[1,128], index: 1, kind: input, shape index: {}]
  %s2 = inlined_call_operand.vmem [shape: f32[1,128], index: 2, kind: input, shape index: {}]
  %s3 = inlined_call_operand.vmem [shape: f32[128,128], index: 3, kind: output, shape index: {}]
  %s4 = sld [smem:[#allocation0]]
  $region22: #{conv_cell_forward.5} parent=0
    _
  %s6 = ssub.s32 1, %s4
  %s7 = scalar_select 0, %s6, %s4
  // Predicated region
  $region2: #{conv_cell_forward.5} parent=0 // pred_check
    _
  $region3: #{conv_cell_forward.5} parent=0 // pred_check_branch
    %9 = sbr.rel (0) target = $region5
  $region4: #{conv_cell_forward.5} parent=0 // pred_region
    _
  $region5: #{conv_cell_forward.5} parent=0 // pred_fallthru
    _
  // Predicated region
  $region6: #{conv_cell_forward.5} parent=0 // pred_check
    _
  $region7: #{conv_cell_forward.5} parent=0 // pred_check_branch
    %11 = sbr.rel (0) target = $region9
  $region8: #{conv_cell_forward.5} parent=0 // pred_region
    _
  $region9: #{conv_cell_forward.5} parent=0 // pred_fallthru
    _
  // Predicated region
  $region10: #{conv_cell_forward.5} parent=0 // pred_check
    _
  $region11: #{conv_cell_forward.5} parent=0 // pred_check_branch
    %13 = sbr.rel (0) target = $region13
  $region12: #{conv_cell_forward.5} parent=0 // pred_region
    _
  $region13: #{conv_cell_forward.5} parent=0 // pred_fallthru
    _
  %v14 = vld [vmem:[%s0] sm:$0xf]
  %v15 = vld [vmem:[%s0 + $0x4] sm:$0xf]
  %v16 = vld [vmem:[%s0 + $0x8] sm:$0xf]
  %v17 = vld [vmem:[%s0 + $0xc] sm:$0xf]
  %v18 = vld [vmem:[%s0 + $0x10] sm:$0xf]
  %v19 = vld [vmem:[%s0 + $0x14] sm:$0xf]
  %v20 = vld [vmem:[%s0 + $0x18] sm:$0xf]
  %v21 = vld [vmem:[%s0 + $0x1c] sm:$0xf]
  %v22 = vld [vmem:[%s0 + $0x20] sm:$0xf]
  %v23 = vld [vmem:[%s0 + $0x24] sm:$0xf]
  %v24 = vld [vmem:[%s0 + $0x28] sm:$0xf]
  %v25 = vld [vmem:[%s0 + $0x2c] sm:$0xf]
  %v26 = vld [vmem:[%s0 + $0x30] sm:$0xf]
  %v27 = vld [vmem:[%s0 + $0x34] sm:$0xf]
  %v28 = vld [vmem:[%s0 + $0x38] sm:$0xf]
  %v29 = vld [vmem:[%s0 + $0x3c] sm:$0xf]
  %v30 = vunpack.c.l.bf16 %v14
  %v31 = vunpack.c.l.bf16 %v15
  %v32 = vunpack.c.l.bf16 %v16
  %v33 = vunpack.c.l.bf16 %v17
  %v34 = vunpack.c.l.bf16 %v18
  %v35 = vunpack.c.l.bf16 %v19
  %v36 = vunpack.c.l.bf16 %v20
  %v37 = vunpack.c.l.bf16 %v21
  %v38 = vunpack.c.l.bf16 %v22
  %v39 = vunpack.c.l.bf16 %v23
  %v40 = vunpack.c.l.bf16 %v24
  %v41 = vunpack.c.l.bf16 %v25
  %v42 = vunpack.c.l.bf16 %v26
  %v43 = vunpack.c.l.bf16 %v27
  %v44 = vunpack.c.l.bf16 %v28
  %v45 = vunpack.c.l.bf16 %v29
  %v46 = vld [vmem:[%s1] sm:$0x1]
  %v48 = vperm.slane %v46, 0
  %v50 = vmul.f32 %v30, %v48
  %v51 = vmul.f32 %v31, %v48
  %v52 = vmul.f32 %v32, %v48
  %v53 = vmul.f32 %v33, %v48
  %v54 = vmul.f32 %v34, %v48
  %v55 = vmul.f32 %v35, %v48
  %v56 = vmul.f32 %v36, %v48
  %v57 = vmul.f32 %v37, %v48
  %v58 = vmul.f32 %v38, %v48
  %v59 = vmul.f32 %v39, %v48
  %v60 = vmul.f32 %v40, %v48
  %v61 = vmul.f32 %v41, %v48
  %v62 = vmul.f32 %v42, %v48
  %v63 = vmul.f32 %v43, %v48
  %v64 = vmul.f32 %v44, %v48
  %v65 = vmul.f32 %v45, %v48
  %v66 = vld [vmem:[%s2] sm:$0x1]
  %v68 = vperm.slane %v66, 0
  %v70 = vadd.f32 %v50, %v68
  %v71 = vadd.f32 %v51, %v68
  %v72 = vadd.f32 %v52, %v68
  %v73 = vadd.f32 %v53, %v68
  %v74 = vadd.f32 %v54, %v68
  %v75 = vadd.f32 %v55, %v68
  %v76 = vadd.f32 %v56, %v68
  %v77 = vadd.f32 %v57, %v68
  %v78 = vadd.f32 %v58, %v68
  %v79 = vadd.f32 %v59, %v68
  %v80 = vadd.f32 %v60, %v68
  %v81 = vadd.f32 %v61, %v68
  %v82 = vadd.f32 %v62, %v68
  %v83 = vadd.f32 %v63, %v68
  %v84 = vadd.f32 %v64, %v68
  %v85 = vadd.f32 %v65, %v68
  %v86 = vmul.f32 %v70, 0.01
  %v87 = vmul.f32 %v71, 0.01
  %v88 = vmul.f32 %v72, 0.01
  %v89 = vmul.f32 %v73, 0.01
  %v90 = vmul.f32 %v74, 0.01
  %v91 = vmul.f32 %v75, 0.01
  %v92 = vmul.f32 %v76, 0.01
  %v93 = vmul.f32 %v77, 0.01
  %v94 = vmul.f32 %v78, 0.01
  %v95 = vmul.f32 %v79, 0.01
  %v96 = vmul.f32 %v80, 0.01
  %v97 = vmul.f32 %v81, 0.01
  %v98 = vmul.f32 %v82, 0.01
  %v99 = vmul.f32 %v83, 0.01
  %v100 = vmul.f32 %v84, 0.01
  %v101 = vmul.f32 %v85, 0.01
  %v102 = vmax.f32 %v70, %v86
  %v103 = vmax.f32 %v71, %v87
  %v104 = vmax.f32 %v72, %v88
  %v105 = vmax.f32 %v73, %v89
  %v106 = vmax.f32 %v74, %v90
  %v107 = vmax.f32 %v75, %v91
  %v108 = vmax.f32 %v76, %v92
  %v109 = vmax.f32 %v77, %v93
  %v110 = vmax.f32 %v78, %v94
  %v111 = vmax.f32 %v79, %v95
  %v112 = vmax.f32 %v80, %v96
  %v113 = vmax.f32 %v81, %v97
  %v114 = vmax.f32 %v82, %v98
  %v115 = vmax.f32 %v83, %v99
  %v116 = vmax.f32 %v84, %v100
  %v117 = vmax.f32 %v85, %v101
  %118 = vst [vmem:[%s3] sm:$0xff] %v102
  %119 = vst [vmem:[%s3 + $0x8] sm:$0xff] %v103
  %120 = vst [vmem:[%s3 + $0x10] sm:$0xff] %v104
  %121 = vst [vmem:[%s3 + $0x18] sm:$0xff] %v105
  %122 = vst [vmem:[%s3 + $0x20] sm:$0xff] %v106
  %123 = vst [vmem:[%s3 + $0x28] sm:$0xff] %v107
  %124 = vst [vmem:[%s3 + $0x30] sm:$0xff] %v108
  %125 = vst [vmem:[%s3 + $0x38] sm:$0xff] %v109
  %126 = vst [vmem:[%s3 + $0x40] sm:$0xff] %v110
  %127 = vst [vmem:[%s3 + $0x48] sm:$0xff] %v111
  %128 = vst [vmem:[%s3 + $0x50] sm:$0xff] %v112
  %129 = vst [vmem:[%s3 + $0x58] sm:$0xff] %v113
  %130 = vst [vmem:[%s3 + $0x60] sm:$0xff] %v114
  %131 = vst [vmem:[%s3 + $0x68] sm:$0xff] %v115
  %132 = vst [vmem:[%s3 + $0x70] sm:$0xff] %v116
  %133 = vst [vmem:[%s3 + $0x78] sm:$0xff] %v117
  // Predicated region
  $region14: #{conv_cell_forward.5} parent=0 // pred_check
    _
  $region15: #{conv_cell_forward.5} parent=0 // pred_check_branch
    %135 = sbr.rel (0) target = $region17
  $region16: #{conv_cell_forward.5} parent=0 // pred_region
    _
  $region17: #{conv_cell_forward.5} parent=0 // pred_fallthru
    _
  // Predicated region
  $region18: #{conv_cell_forward.5} parent=0 // pred_check
    _
  $region19: #{conv_cell_forward.5} parent=0 // pred_check_branch
    %137 = sbr.rel (0) target = $region21
  $region20: #{conv_cell_forward.5} parent=0 // pred_region
    _
  $region21: #{conv_cell_forward.5} parent=0 // pred_fallthru
    _

// kernel: conv_cell_forward.3
$region0: #{conv_cell_forward.3}
  #allocation0 [shape = 'u32[]', space=smem, size = 0x4, offset = 0x4, fixed_abs, tag = 'smem constant byte address 0x4 - core index']
  #allocation1 [shape = 'u32[72,128]{1,0:T(1,128)}', space=vmem, size = 0x9000, scoped, tag = 'internal scratch']
  %s0 = inlined_call_operand.vmem [shape: bf16[2,9,9,16], index: 0, kind: input, shape index: {}]
  %s1 = inlined_call_operand.vmem [shape: bf16[4,16,128], index: 1, kind: input, shape index: {}]
  %s2 = inlined_call_operand.vmem [shape: bf16[128,128], index: 2, kind: output, shape index: {0}]
  %s3 = inlined_call_operand.vmem [shape: f32[2,1,128], index: 3, kind: output, shape index: {1}]
  %s4 = inlined_call_operand.vmem [shape: f32[2,1,128], index: 4, kind: output, shape index: {2}]
  %5 = xla_tuple %s2, %s3, %s4
  %s6 = sld [smem:[#allocation0]]
  $region57: #{conv_cell_forward.3} parent=0
    _
  %s8 = ssub.s32 1, %s6
  %s9 = scalar_select 0, %s8, %s6
  loop: start=0, step=1, limit=4
  $region2: #{conv_cell_forward.3} parent=0 // loop_pre_header
    _
  $region3: #{conv_cell_forward.3} parent=0 // loop_header
    %s11 = sphi 0, %s15
    %p12 = scmp.ge.s32.totalorder %s11, 4
    %s18 = sphi 0, %s30
    %s19 = sphi 0, %s26
    %s20 = sphi 0, %s18
    %s21 = sphi 0, %s19
    %s22 = sphi 0, %s20
    %s23 = sphi 0, %s21
    %s33 = sphi 0, %s35
    %s36 = sphi 0, %s33
    %s37 = sphi 0, %s36
    %s53 = sphi 0, %s37
    %s57 = sphi 0, %s57
    %s59 = sphi 0, %s57
    %s60 = sphi 0, %s59
    %s74 = sphi 0, %s60
    %s82 = sphi 0, %s84
    %s85 = sphi 0, %s82
    %s86 = sphi 0, %s85
    %s102 = sphi 0, %s86
    %s110 = sphi 0, %s112
    %s113 = sphi 0, %s110
    %s114 = sphi 0, %s113
    %s130 = sphi 0, %s114
    %s138 = sphi 0, %s140
    %s141 = sphi 0, %s138
    %s142 = sphi 0, %s141
    %s158 = sphi 0, %s142
  $region4: #{conv_cell_forward.3} parent=0 // loop_header_branch
    %14 = sbr.rel (%p12) target = $region8
  $region5: #{conv_cell_forward.3} parent=0 // loop_body
    %s16 = ssub.s32 %s11, 1
    %s17 = ssub.s32 %s11, 2
    %s24 = sadd.s32 1, %s19
    %p25 = scmp.ge.s32.totalorder %s24, 1
    %s26 = scalar_select %p25, 0, %s24
    %s27 = sadd.s32 1, %s18
    %s28 = scalar_select %p25, %s27, %s18
    %p29 = scmp.ge.s32.totalorder %s28, 2
    %s30 = scalar_select %p29, 0, %s28
    %s31 = ssub.s32 %s18, %s30
    %p32 = scmp.eq.s32.totalorder %s31, 0
    %s34 = sadd.s32 %s33, 1
    %s35 = scalar_select %p32, %s33, %s34
    %p38 = pneg %p32
    %p39 = scmp.eq.s32.totalorder %s11, 1
    %p40 = por %p38, %p39
    %p41 = scmp.ne.s32.totalorder %s33, %s36
    %p42 = scmp.eq.s32.totalorder %s11, 0
    %p43 = por %p41, %p42
    %p44 = scmp.ne.s32.totalorder %s33, %s36
    %p45 = scmp.eq.s32.totalorder %s16, 1
    %p46 = por %p44, %p45
    %p47 = scmp.ne.s32.totalorder %s36, %s37
    %p48 = scmp.eq.s32.totalorder %s16, 0
    %p49 = por %p47, %p48
    %p50 = scmp.ne.s32.totalorder %s36, %s37
    %p51 = scmp.eq.s32.totalorder %s17, 1
    %p52 = por %p50, %p51
    %p54 = scmp.ne.s32.totalorder %s37, %s53
    %p55 = scmp.eq.s32.totalorder %s17, 0
    %p56 = por %p54, %p55
    %s58 = sadd.s32 %s57, 1
    %p61 = scmp.eq.s32.totalorder %s11, 1
    %p62 = scmp.ne.s32.totalorder %s57, %s59
    %p63 = scmp.eq.s32.totalorder %s11, 0
    %p64 = por %p62, %p63
    %p65 = scmp.ne.s32.totalorder %s57, %s59
    %p66 = scmp.eq.s32.totalorder %s16, 1
    %p67 = por %p65, %p66
    %p68 = scmp.ne.s32.totalorder %s59, %s60
    %p69 = scmp.eq.s32.totalorder %s16, 0
    %p70 = por %p68, %p69
    %p71 = scmp.ne.s32.totalorder %s59, %s60
    %p72 = scmp.eq.s32.totalorder %s17, 1
    %p73 = por %p71, %p72
    %p75 = scmp.ne.s32.totalorder %s60, %s74
    %p76 = scmp.eq.s32.totalorder %s17, 0
    %p77 = por %p75, %p76
    %s78 = sadd.s32 %s18, %s19
    %s79 = sadd.s32 %s30, %s26
    %s80 = ssub.s32 %s78, %s79
    %p81 = scmp.eq.s32.totalorder %s80, 0
    %s83 = sadd.s32 %s82, 1
    %s84 = scalar_select %p81, %s82, %s83
    %p87 = pneg %p81
    %p88 = scmp.eq.s32.totalorder %s11, 1
    %p89 = por %p87, %p88
    %p90 = scmp.ne.s32.totalorder %s82, %s85
    %p91 = scmp.eq.s32.totalorder %s11, 0
    %p92 = por %p90, %p91
    %p93 = scmp.ne.s32.totalorder %s82, %s85
    %p94 = scmp.eq.s32.totalorder %s16, 1
    %p95 = por %p93, %p94
    %p96 = scmp.ne.s32.totalorder %s85, %s86
    %p97 = scmp.eq.s32.totalorder %s16, 0
    %p98 = por %p96, %p97
    %p99 = scmp.ne.s32.totalorder %s85, %s86
    %p100 = scmp.eq.s32.totalorder %s17, 1
    %p101 = por %p99, %p100
    %p103 = scmp.ne.s32.totalorder %s86, %s102
    %p104 = scmp.eq.s32.totalorder %s17, 0
    %p105 = por %p103, %p104
    %s106 = sadd.s32 %s18, %s19
    %s107 = sadd.s32 %s30, %s26
    %s108 = ssub.s32 %s106, %s107
    %p109 = scmp.eq.s32.totalorder %s108, 0
    %s111 = sadd.s32 %s110, 1
    %s112 = scalar_select %p109, %s110, %s111
    %p115 = pneg %p109
    %p116 = scmp.eq.s32.totalorder %s11, 1
    %p117 = por %p115, %p116
    %p118 = scmp.ne.s32.totalorder %s110, %s113
    %p119 = scmp.eq.s32.totalorder %s11, 0
    %p120 = por %p118, %p119
    %p121 = scmp.ne.s32.totalorder %s110, %s113
    %p122 = scmp.eq.s32.totalorder %s16, 1
    %p123 = por %p121, %p122
    %p124 = scmp.ne.s32.totalorder %s113, %s114
    %p125 = scmp.eq.s32.totalorder %s16, 0
    %p126 = por %p124, %p125
    %p127 = scmp.ne.s32.totalorder %s113, %s114
    %p128 = scmp.eq.s32.totalorder %s17, 1
    %p129 = por %p127, %p128
    %p131 = scmp.ne.s32.totalorder %s114, %s130
    %p132 = scmp.eq.s32.totalorder %s17, 0
    %p133 = por %p131, %p132
    %s134 = sadd.s32 %s18, %s19
    %s135 = sadd.s32 %s30, %s26
    %s136 = ssub.s32 %s134, %s135
    %p137 = scmp.eq.s32.totalorder %s136, 0
    %s139 = sadd.s32 %s138, 1
    %s140 = scalar_select %p137, %s138, %s139
    %p143 = pneg %p137
    %p144 = scmp.eq.s32.totalorder %s11, 1
    %p145 = por %p143, %p144
    %p146 = scmp.ne.s32.totalorder %s138, %s141
    %p147 = scmp.eq.s32.totalorder %s11, 0
    %p148 = por %p146, %p147
    %p149 = scmp.ne.s32.totalorder %s138, %s141
    %p150 = scmp.eq.s32.totalorder %s16, 1
    %p151 = por %p149, %p150
    %p152 = scmp.ne.s32.totalorder %s141, %s142
    %p153 = scmp.eq.s32.totalorder %s16, 0
    %p154 = por %p152, %p153
    %p155 = scmp.ne.s32.totalorder %s141, %s142
    %p156 = scmp.eq.s32.totalorder %s17, 1
    %p157 = por %p155, %p156
    %p159 = scmp.ne.s32.totalorder %s142, %s158
    %p160 = scmp.eq.s32.totalorder %s17, 0
    %p161 = por %p159, %p160
    %p162 = scmp.le.s32.totalorder 1, %s11
    %p163 = scmp.lt.s32.totalorder %s11, 3
    %p164 = pnand %p162, %p163
    %p165 = pneg %p164
    // Predicated region
    $region9: #{conv_cell_forward.3} parent=5 // pred_check
      _
    $region10: #{conv_cell_forward.3} parent=5 // pred_check_branch
      %167 = sbr.rel (%p164) target = $region12
    $region11: #{conv_cell_forward.3} parent=5 // pred_region
      %s168 = ssub.s32 %s11, 1
      // Predicated region
      $region13: #{conv_cell_forward.3} parent=11 // pred_check
        %p169 = pneg %p70
      $region14: #{conv_cell_forward.3} parent=11 // pred_check_branch
        %171 = sbr.rel (%p169) target = $region16
      $region15: #{conv_cell_forward.3} parent=11 // pred_region
        _
      $region16: #{conv_cell_forward.3} parent=11 // pred_fallthru
        _
    $region12: #{conv_cell_forward.3} parent=5 // pred_fallthru
      _
    %p172 = scmp.lt.s32.totalorder %s11, 2
    // Predicated region
    $region17: #{conv_cell_forward.3} parent=5 // pred_check
      %p173 = pneg %p172
    $region18: #{conv_cell_forward.3} parent=5 // pred_check_branch
      %175 = sbr.rel (%p173) target = $region20
    $region19: #{conv_cell_forward.3} parent=5 // pred_region
      // Predicated region
      $region21: #{conv_cell_forward.3} parent=19 // pred_check
        %p176 = pneg %p43
      $region22: #{conv_cell_forward.3} parent=19 // pred_check_branch
        %178 = sbr.rel (%p176) target = $region24
      $region23: #{conv_cell_forward.3} parent=19 // pred_region
        %p179 = scmp.lt.s32.totalorder %s18, 1
        %s180 = scalar_select %p179, %s18, 1
        %s181 = smul.addr %s180, 18
        %s182 = smul.addr %s181, 4
        %s183 = scalar_lea.vmem %s0, %s182
      $region24: #{conv_cell_forward.3} parent=19 // pred_fallthru
        _
    $region20: #{conv_cell_forward.3} parent=5 // pred_fallthru
      _
    %p184 = scmp.le.s32.totalorder 1, %s11
    %p185 = scmp.lt.s32.totalorder %s11, 3
    %p186 = pnand %p184, %p185
    %p187 = pneg %p186
    // Predicated region
    $region25: #{conv_cell_forward.3} parent=5 // pred_check
      _
    $region26: #{conv_cell_forward.3} parent=5 // pred_check_branch
      %189 = sbr.rel (%p186) target = $region28
    $region27: #{conv_cell_forward.3} parent=5 // pred_region
      %s190 = ssub.s32 %s11, 1
      %p191 = scmp.lt.s32.totalorder %s20, 1
      %s192 = scalar_select %p191, %s20, 1
      %s193 = smul.addr %s192, 18
      %s194 = smul.addr %s193, 4
      %s195 = scalar_lea.vmem %s0, %s194
      %p196 = pneg %p49
      %p197 = pneg %p46
      %p198 = pneg %p70
      %p199 = pneg %p67
      %p200 = pneg %p98
      %p201 = pneg %p95
      %s202 = sadd.s32 %s20, %s21
      %s203 = smul.u32 8, %s202
      %p204 = scmp.lt.s32.totalorder %s203, 15
      %s205 = scalar_select %p204, %s203, 15
      %s206 = smul.addr %s205, 4
      %s207 = scalar_lea.vmem %s2, %s206
      %p208 = pneg %p126
      %p209 = pneg %p123
      %s210 = sadd.s32 %s20, %s21
      %p211 = scmp.lt.s32.totalorder %s210, 1
      %s212 = scalar_select %p211, %s210, 1
      %s213 = scalar_lea.vmem %s3, %s212
      %p214 = pneg %p154
      %p215 = pneg %p151
      %s216 = sadd.s32 %s20, %s21
      %p217 = scmp.lt.s32.totalorder %s216, 1
      %s218 = scalar_select %p217, %s216, 1
      %s219 = scalar_lea.vmem %s4, %s218
      %p220 = scmp.lt.s32.totalorder %s20, 1
      %s221 = scalar_select %p220, %s20, 1
      %s222 = smul.addr %s221, 18
      %s223 = smul.addr %s222, 4
      %s224 = scalar_lea.vmem %s0, %s223
      %s225 = sadd.s32 %s20, %s21
      %s226 = smul.u32 8, %s225
      %p227 = scmp.lt.s32.totalorder %s226, 15
      %s228 = scalar_select %p227, %s226, 15
      %s229 = smul.addr %s228, 4
      %s230 = scalar_lea.vmem %s2, %s229
      %s231 = sadd.s32 %s20, %s21
      %s232 = smul.u32 8, %s231
      %s233 = sadd.s32 %s20, %s21
      %p234 = scmp.lt.s32.totalorder %s233, 1
      %s235 = scalar_select %p234, %s233, 1
      %s236 = scalar_lea.vmem %s3, %s235
      %s237 = sadd.s32 %s20, %s21
      %s238 = sadd.s32 %s20, %s21
      %p239 = scmp.lt.s32.totalorder %s238, 1
      %s240 = scalar_select %p239, %s238, 1
      %s241 = scalar_lea.vmem %s4, %s240
      %s242 = sadd.s32 %s20, %s21
      %s244 = smul.u32 %s21, 8
      %s245 = smul.u32 %s244, 2
      %s246 = smul.addr %s245, 4
      %s247 = scalar_lea.vmem %s224, %s246
      %v248 = vld [vmem:[%s247] sm:$0xf]
      %v249 = vld [vmem:[%s247 + $0x8] sm:$0xf]
      %v250 = vld [vmem:[%s247 + $0x10] sm:$0xf]
      %v251 = vld [vmem:[%s247 + $0x18] sm:$0xf]
      %v252 = vld [vmem:[%s247 + $0x20] sm:$0xf]
      %v253 = vld [vmem:[%s247 + $0x28] sm:$0xf]
      %v254 = vld [vmem:[%s247 + $0x30] sm:$0xf]
      %v255 = vld [vmem:[%s247 + $0x38] sm:$0xf]
      %v256 = vld [vmem:[%s1] sm:$0xf]
      %v257 = vld [vmem:[%s1 + $0x4] sm:$0xf]
      %v258 = vld [vmem:[%s247 + $0x4] sm:$0x1]
      %v259 = vld [vmem:[%s247 + $0xc] sm:$0x1]
      %v260 = vld [vmem:[%s247 + $0x14] sm:$0x1]
      %v261 = vld [vmem:[%s247 + $0x1c] sm:$0x1]
      %v262 = vld [vmem:[%s247 + $0x24] sm:$0x1]
      %v263 = vld [vmem:[%s247 + $0x2c] sm:$0x1]
      %v264 = vld [vmem:[%s247 + $0x34] sm:$0x1]
      %v265 = vld [vmem:[%s247 + $0x3c] sm:$0x1]
      %vm266 = vsmask.f32 3328
      %vm267 = vsmask.f32 7440
      %vm268 = vmor %vm266, %vm267
      %v270 = vshrl.u32 %v248, 16
      %v272 = vrot.slane %v270, 4
      %v273 = vshll.u32 %v248, 16
      %v275 = vrot.slane %v273, 5
      %v276 = vor.u32 %v272, %v275
      %v277 = vrot.slane %v276, 4
      %v279 = vshll.u32 %v258, 16
      %v281 = vrot.slane %v279, 5
      %v282 = vsel %vm268, %v277, %v281
      %v284 = vshrl.u32 %v249, 16
      %v286 = vrot.slane %v284, 4
      %v287 = vshll.u32 %v249, 16
      %v289 = vrot.slane %v287, 5
      %v290 = vor.u32 %v286, %v289
      %v291 = vrot.slane %v290, 4
      %v293 = vshll.u32 %v259, 16
      %v295 = vrot.slane %v293, 5
      %v296 = vsel %vm268, %v291, %v295
      %v298 = vshrl.u32 %v250, 16
      %v300 = vrot.slane %v298, 4
      %v301 = vshll.u32 %v250, 16
      %v303 = vrot.slane %v301, 5
      %v304 = vor.u32 %v300, %v303
      %v305 = vrot.slane %v304, 4
      %v307 = vshll.u32 %v260, 16
      %v309 = vrot.slane %v307, 5
      %v310 = vsel %vm268, %v305, %v309
      %v312 = vshrl.u32 %v251, 16
      %v314 = vrot.slane %v312, 4
      %v315 = vshll.u32 %v251, 16
      %v317 = vrot.slane %v315, 5
      %v318 = vor.u32 %v314, %v317
      %v319 = vrot.slane %v318, 4
      %v321 = vshll.u32 %v261, 16
      %v323 = vrot.slane %v321, 5
      %v324 = vsel %vm268, %v319, %v323
      %v326 = vshrl.u32 %v252, 16
      %v328 = vrot.slane %v326, 4
      %v329 = vshll.u32 %v252, 16
      %v331 = vrot.slane %v329, 5
      %v332 = vor.u32 %v328, %v331
      %v333 = vrot.slane %v332, 4
      %v335 = vshll.u32 %v262, 16
      %v337 = vrot.slane %v335, 5
      %v338 = vsel %vm268, %v333, %v337
      %v340 = vshrl.u32 %v253, 16
      %v342 = vrot.slane %v340, 4
      %v343 = vshll.u32 %v253, 16
      %v345 = vrot.slane %v343, 5
      %v346 = vor.u32 %v342, %v345
      %v347 = vrot.slane %v346, 4
      %v349 = vshll.u32 %v263, 16
      %v351 = vrot.slane %v349, 5
      %v352 = vsel %vm268, %v347, %v351
      %v354 = vshrl.u32 %v254, 16
      %v356 = vrot.slane %v354, 4
      %v357 = vshll.u32 %v254, 16
      %v359 = vrot.slane %v357, 5
      %v360 = vor.u32 %v356, %v359
      %v361 = vrot.slane %v360, 4
      %v363 = vshll.u32 %v264, 16
      %v365 = vrot.slane %v363, 5
      %v366 = vsel %vm268, %v361, %v365
      %v368 = vshrl.u32 %v255, 16
      %v370 = vrot.slane %v368, 4
      %v371 = vshll.u32 %v255, 16
      %v373 = vrot.slane %v371, 5
      %v374 = vor.u32 %v370, %v373
      %v375 = vrot.slane %v374, 4
      %v377 = vshll.u32 %v265, 16
      %v379 = vrot.slane %v377, 5
      %v380 = vsel %vm268, %v375, %v379
      %s381 = scalar_lea.vmem %s1, 8
      %v382 = vld [vmem:[%s381] sm:$0xf]
      %v383 = vld [vmem:[%s381 + $0x4] sm:$0xf]
      %v384 = vunpack.c.l.b16 %v282
      %v385 = vunpack.c.l.b16 %v296
      %v386 = vunpack.c.l.b16 %v310
      %v387 = vunpack.c.l.b16 %v324
      %v388 = vunpack.c.l.b16 %v338
      %v389 = vunpack.c.l.b16 %v352
      %v390 = vunpack.c.l.b16 %v366
      %v391 = vunpack.c.l.b16 %v380
      %v392 = vpack.c.b16 %v385, %v384
      %v393 = vpack.c.b16 %v387, %v386
      %v394 = vpack.c.b16 %v389, %v388
      %v395 = vpack.c.b16 %v391, %v390
      %v398 = vunpack.c.l.b16 %v382
      %v399 = vunpack.c.l.b16 %v383
      %v400 = vpack.c.b16 %v399, %v398
      %vm402 = vcmask 130048
      %v404 = vsel %vm402, %v392, 0
      %v407 = vsel %vm402, %v393, 0
      %v410 = vsel %vm402, %v394, 0
      %v413 = vsel %vm402, %v395, 0
      %415 = vmatpush.bf16.msra.mxu0 0
      %416 = vmatpush.bf16.msra.mxu0 0
      %417 = vmatpush.bf16.msra.mxu0 0
      %418 = vmatpush.bf16.msra.mxu0 0
      %419 = vmatpush.bf16.msra.mxu0 0
      %420 = vmatpush.bf16.msra.mxu0 0
      %421 = vmatpush.bf16.msra.mxu0 0
      %422 = vmatpush.bf16.msra.mxu0 %v400
      %423 = vmatmul.bf16.gmra.mxu0 %v404
      %v424 = vpop.f32.mrf.mxu0
      %v425 = vadd.f32 0.0, %v424
      %v426 = vpop.f32.mrf.mxu0
      %v427 = vadd.f32 0.0, %v426
      %428 = vmatmul.bf16.gmra.mxu0 %v407
      %v429 = vpop.f32.mrf.mxu0
      %v430 = vadd.f32 0.0, %v429
      %v431 = vpop.f32.mrf.mxu0
      %v432 = vadd.f32 0.0, %v431
      %433 = vmatmul.bf16.gmra.mxu0 %v410
      %v434 = vpop.f32.mrf.mxu0
      %v435 = vadd.f32 0.0, %v434
      %v436 = vpop.f32.mrf.mxu0
      %v437 = vadd.f32 0.0, %v436
      %438 = vmatmul.bf16.gmra.mxu0 %v413
      %v439 = vpop.f32.mrf.mxu0
      %v440 = vadd.f32 0.0, %v439
      %v441 = vpop.f32.mrf.mxu0
      %v442 = vadd.f32 0.0, %v441
      %443 = vdwg.mxu0
      %v452 = vunpack.c.l.b16 %v248
      %v453 = vunpack.c.l.b16 %v249
      %v454 = vunpack.c.l.b16 %v250
      %v455 = vunpack.c.l.b16 %v251
      %v456 = vunpack.c.l.b16 %v252
      %v457 = vunpack.c.l.b16 %v253
      %v458 = vunpack.c.l.b16 %v254
      %v459 = vunpack.c.l.b16 %v255
      %v460 = vpack.c.b16 %v453, %v452
      %v461 = vpack.c.b16 %v455, %v454
      %v462 = vpack.c.b16 %v457, %v456
      %v463 = vpack.c.b16 %v459, %v458
      %v466 = vunpack.c.l.b16 %v256
      %v467 = vunpack.c.l.b16 %v257
      %v468 = vpack.c.b16 %v467, %v466
      %v471 = vsel %vm402, %v460, 0
      %v474 = vsel %vm402, %v461, 0
      %v477 = vsel %vm402, %v462, 0
      %v480 = vsel %vm402, %v463, 0
      %482 = vmatpush.bf16.msra.mxu0 0
      %483 = vmatpush.bf16.msra.mxu0 0
      %484 = vmatpush.bf16.msra.mxu0 0
      %485 = vmatpush.bf16.msra.mxu0 0
      %486 = vmatpush.bf16.msra.mxu0 0
      %487 = vmatpush.bf16.msra.mxu0 0
      %488 = vmatpush.bf16.msra.mxu0 0
      %489 = vmatpush.bf16.msra.mxu0 %v468
      %490 = vmatmul.bf16.gmra.mxu0 %v471
      %v491 = vpop.f32.mrf.mxu0
      %v492 = vadd.f32 %v425, %v491
      %v493 = vpop.f32.mrf.mxu0
      %v494 = vadd.f32 %v427, %v493
      %495 = vmatmul.bf16.gmra.mxu0 %v474
      %v496 = vpop.f32.mrf.mxu0
      %v497 = vadd.f32 %v430, %v496
      %v498 = vpop.f32.mrf.mxu0
      %v499 = vadd.f32 %v432, %v498
      %500 = vmatmul.bf16.gmra.mxu0 %v477
      %v501 = vpop.f32.mrf.mxu0
      %v502 = vadd.f32 %v435, %v501
      %v503 = vpop.f32.mrf.mxu0
      %v504 = vadd.f32 %v437, %v503
      %505 = vmatmul.bf16.gmra.mxu0 %v480
      %v506 = vpop.f32.mrf.mxu0
      %v507 = vadd.f32 %v440, %v506
      %v508 = vpop.f32.mrf.mxu0
      %v509 = vadd.f32 %v442, %v508
      %510 = vdwg.mxu0
      %s511 = sadd.s32 %s244, 1
      %s512 = smul.u32 %s511, 2
      %s513 = smul.addr %s512, 4
      %s514 = scalar_lea.vmem %s224, %s513
      %v515 = vld [vmem:[%s514] sm:$0xf]
      %v516 = vld [vmem:[%s514 + $0x8] sm:$0xf]
      %v517 = vld [vmem:[%s514 + $0x10] sm:$0xf]
      %v518 = vld [vmem:[%s514 + $0x18] sm:$0xf]
      %v519 = vld [vmem:[%s514 + $0x20] sm:$0xf]
      %v520 = vld [vmem:[%s514 + $0x28] sm:$0xf]
      %v521 = vld [vmem:[%s514 + $0x30] sm:$0xf]
      %v522 = vld [vmem:[%s514 + $0x38] sm:$0xf]
      %s523 = scalar_lea.vmem %s1, 16
      %v524 = vld [vmem:[%s523] sm:$0xf]
      %v525 = vld [vmem:[%s523 + $0x4] sm:$0xf]
      %v534 = vunpack.c.l.b16 %v515
      %v535 = vunpack.c.l.b16 %v516
      %v536 = vunpack.c.l.b16 %v517
      %v537 = vunpack.c.l.b16 %v518
      %v538 = vunpack.c.l.b16 %v519
      %v539 = vunpack.c.l.b16 %v520
      %v540 = vunpack.c.l.b16 %v521
      %v541 = vunpack.c.l.b16 %v522
      %v542 = vpack.c.b16 %v535, %v534
      %v543 = vpack.c.b16 %v537, %v536
      %v544 = vpack.c.b16 %v539, %v538
      %v545 = vpack.c.b16 %v541, %v540
      %v548 = vunpack.c.l.b16 %v524
      %v549 = vunpack.c.l.b16 %v525
      %v550 = vpack.c.b16 %v549, %v548
      %v553 = vsel %vm402, %v542, 0
      %v556 = vsel %vm402, %v543, 0
      %v559 = vsel %vm402, %v544, 0
      %v562 = vsel %vm402, %v545, 0
      %564 = vmatpush.bf16.msra.mxu0 0
      %565 = vmatpush.bf16.msra.mxu0 0
      %566 = vmatpush.bf16.msra.mxu0 0
      %567 = vmatpush.bf16.msra.mxu0 0
      %568 = vmatpush.bf16.msra.mxu0 0
      %569 = vmatpush.bf16.msra.mxu0 0
      %570 = vmatpush.bf16.msra.mxu0 0
      %571 = vmatpush.bf16.msra.mxu0 %v550
      %572 = vmatmul.bf16.gmra.mxu0 %v553
      %v573 = vpop.f32.mrf.mxu0
      %v574 = vadd.f32 0.0, %v573
      %v575 = vpop.f32.mrf.mxu0
      %v576 = vadd.f32 0.0, %v575
      %577 = vmatmul.bf16.gmra.mxu0 %v556
      %v578 = vpop.f32.mrf.mxu0
      %v579 = vadd.f32 0.0, %v578
      %v580 = vpop.f32.mrf.mxu0
      %v581 = vadd.f32 0.0, %v580
      %582 = vmatmul.bf16.gmra.mxu0 %v559
      %v583 = vpop.f32.mrf.mxu0
      %v584 = vadd.f32 0.0, %v583
      %v585 = vpop.f32.mrf.mxu0
      %v586 = vadd.f32 0.0, %v585
      %587 = vmatmul.bf16.gmra.mxu0 %v562
      %v588 = vpop.f32.mrf.mxu0
      %v589 = vadd.f32 0.0, %v588
      %v590 = vpop.f32.mrf.mxu0
      %v591 = vadd.f32 0.0, %v590
      %592 = vdwg.mxu0
      %v593 = vadd.f32 %v492, %v574
      %v594 = vadd.f32 %v494, %v576
      %v595 = vadd.f32 %v497, %v579
      %v596 = vadd.f32 %v499, %v581
      %v597 = vadd.f32 %v502, %v584
      %v598 = vadd.f32 %v504, %v586
      %v599 = vadd.f32 %v507, %v589
      %v600 = vadd.f32 %v509, %v591
      %v601 = vld [vmem:[%s514] sm:$0xf]
      %v602 = vld [vmem:[%s514 + $0x4] sm:$0x1]
      %v603 = vld [vmem:[%s514 + $0x8] sm:$0xf]
      %v604 = vld [vmem:[%s514 + $0xc] sm:$0x1]
      %v605 = vld [vmem:[%s514 + $0x10] sm:$0xf]
      %v606 = vld [vmem:[%s514 + $0x14] sm:$0x1]
      %v607 = vld [vmem:[%s514 + $0x18] sm:$0xf]
      %v608 = vld [vmem:[%s514 + $0x1c] sm:$0x1]
      %v609 = vld [vmem:[%s514 + $0x20] sm:$0xf]
      %v610 = vld [vmem:[%s514 + $0x24] sm:$0x1]
      %v611 = vld [vmem:[%s514 + $0x28] sm:$0xf]
      %v612 = vld [vmem:[%s514 + $0x2c] sm:$0x1]
      %v613 = vld [vmem:[%s514 + $0x30] sm:$0xf]
      %v614 = vld [vmem:[%s514 + $0x34] sm:$0x1]
      %v615 = vld [vmem:[%s514 + $0x38] sm:$0xf]
      %v616 = vld [vmem:[%s514 + $0x3c] sm:$0x1]
      %v618 = vshrl.u32 %v601, 16
      %v620 = vrot.slane %v618, 4
      %v621 = vshll.u32 %v601, 16
      %v623 = vrot.slane %v621, 5
      %v624 = vor.u32 %v620, %v623
      %v625 = vrot.slane %v624, 4
      %v627 = vshll.u32 %v602, 16
      %v629 = vrot.slane %v627, 5
      %v630 = vsel %vm268, %v625, %v629
      %v632 = vshrl.u32 %v603, 16
      %v634 = vrot.slane %v632, 4
      %v635 = vshll.u32 %v603, 16
      %v637 = vrot.slane %v635, 5
      %v638 = vor.u32 %v634, %v637
      %v639 = vrot.slane %v638, 4
      %v641 = vshll.u32 %v604, 16
      %v643 = vrot.slane %v641, 5
      %v644 = vsel %vm268, %v639, %v643
      %v646 = vshrl.u32 %v605, 16
      %v648 = vrot.slane %v646, 4
      %v649 = vshll.u32 %v605, 16
      %v651 = vrot.slane %v649, 5
      %v652 = vor.u32 %v648, %v651
      %v653 = vrot.slane %v652, 4
      %v655 = vshll.u32 %v606, 16
      %v657 = vrot.slane %v655, 5
      %v658 = vsel %vm268, %v653, %v657
      %v660 = vshrl.u32 %v607, 16
      %v662 = vrot.slane %v660, 4
      %v663 = vshll.u32 %v607, 16
      %v665 = vrot.slane %v663, 5
      %v666 = vor.u32 %v662, %v665
      %v667 = vrot.slane %v666, 4
      %v669 = vshll.u32 %v608, 16
      %v671 = vrot.slane %v669, 5
      %v672 = vsel %vm268, %v667, %v671
      %v674 = vshrl.u32 %v609, 16
      %v676 = vrot.slane %v674, 4
      %v677 = vshll.u32 %v609, 16
      %v679 = vrot.slane %v677, 5
      %v680 = vor.u32 %v676, %v679
      %v681 = vrot.slane %v680, 4
      %v683 = vshll.u32 %v610, 16
      %v685 = vrot.slane %v683, 5
      %v686 = vsel %vm268, %v681, %v685
      %v688 = vshrl.u32 %v611, 16
      %v690 = vrot.slane %v688, 4
      %v691 = vshll.u32 %v611, 16
      %v693 = vrot.slane %v691, 5
      %v694 = vor.u32 %v690, %v693
      %v695 = vrot.slane %v694, 4
      %v697 = vshll.u32 %v612, 16
      %v699 = vrot.slane %v697, 5
      %v700 = vsel %vm268, %v695, %v699
      %v702 = vshrl.u32 %v613, 16
      %v704 = vrot.slane %v702, 4
      %v705 = vshll.u32 %v613, 16
      %v707 = vrot.slane %v705, 5
      %v708 = vor.u32 %v704, %v707
      %v709 = vrot.slane %v708, 4
      %v711 = vshll.u32 %v614, 16
      %v713 = vrot.slane %v711, 5
      %v714 = vsel %vm268, %v709, %v713
      %v716 = vshrl.u32 %v615, 16
      %v718 = vrot.slane %v716, 4
      %v719 = vshll.u32 %v615, 16
      %v721 = vrot.slane %v719, 5
      %v722 = vor.u32 %v718, %v721
      %v723 = vrot.slane %v722, 4
      %v725 = vshll.u32 %v616, 16
      %v727 = vrot.slane %v725, 5
      %v728 = vsel %vm268, %v723, %v727
      %s729 = scalar_lea.vmem %s1, 24
      %v730 = vld [vmem:[%s729] sm:$0xf]
      %v731 = vld [vmem:[%s729 + $0x4] sm:$0xf]
      %v732 = vunpack.c.l.b16 %v630
      %v733 = vunpack.c.l.b16 %v644
      %v734 = vunpack.c.l.b16 %v658
      %v735 = vunpack.c.l.b16 %v672
      %v736 = vunpack.c.l.b16 %v686
      %v737 = vunpack.c.l.b16 %v700
      %v738 = vunpack.c.l.b16 %v714
      %v739 = vunpack.c.l.b16 %v728
      %v740 = vpack.c.b16 %v733, %v732
      %v741 = vpack.c.b16 %v735, %v734
      %v742 = vpack.c.b16 %v737, %v736
      %v743 = vpack.c.b16 %v739, %v738
      %v746 = vunpack.c.l.b16 %v730
      %v747 = vunpack.c.l.b16 %v731
      %v748 = vpack.c.b16 %v747, %v746
      %v751 = vsel %vm402, %v740, 0
      %v754 = vsel %vm402, %v741, 0
      %v757 = vsel %vm402, %v742, 0
      %v760 = vsel %vm402, %v743, 0
      %762 = vmatpush.bf16.msra.mxu0 0
      %763 = vmatpush.bf16.msra.mxu0 0
      %764 = vmatpush.bf16.msra.mxu0 0
      %765 = vmatpush.bf16.msra.mxu0 0
      %766 = vmatpush.bf16.msra.mxu0 0
      %767 = vmatpush.bf16.msra.mxu0 0
      %768 = vmatpush.bf16.msra.mxu0 0
      %769 = vmatpush.bf16.msra.mxu0 %v748
      %770 = vmatmul.bf16.gmra.mxu0 %v751
      %v771 = vpop.f32.mrf.mxu0
      %v772 = vadd.f32 0.0, %v771
      %v773 = vpop.f32.mrf.mxu0
      %v774 = vadd.f32 0.0, %v773
      %775 = vmatmul.bf16.gmra.mxu0 %v754
      %v776 = vpop.f32.mrf.mxu0
      %v777 = vadd.f32 0.0, %v776
      %v778 = vpop.f32.mrf.mxu0
      %v779 = vadd.f32 0.0, %v778
      %780 = vmatmul.bf16.gmra.mxu0 %v757
      %v781 = vpop.f32.mrf.mxu0
      %v782 = vadd.f32 0.0, %v781
      %v783 = vpop.f32.mrf.mxu0
      %v784 = vadd.f32 0.0, %v783
      %785 = vmatmul.bf16.gmra.mxu0 %v760
      %v786 = vpop.f32.mrf.mxu0
      %v787 = vadd.f32 0.0, %v786
      %v788 = vpop.f32.mrf.mxu0
      %v789 = vadd.f32 0.0, %v788
      %790 = vdwg.mxu0
      %v791 = vadd.f32 %v593, %v772
      %v792 = vadd.f32 %v594, %v774
      %v793 = vadd.f32 %v595, %v777
      %v794 = vadd.f32 %v596, %v779
      %v795 = vadd.f32 %v597, %v782
      %v796 = vadd.f32 %v598, %v784
      %v797 = vadd.f32 %v599, %v787
      %v798 = vadd.f32 %v600, %v789
      %v799 = vpack.c.bf16 %v791, %v791
      %v800 = vpack.c.bf16 %v792, %v792
      %v801 = vpack.c.bf16 %v793, %v793
      %v802 = vpack.c.bf16 %v794, %v794
      %v803 = vpack.c.bf16 %v795, %v795
      %v804 = vpack.c.bf16 %v796, %v796
      %v805 = vpack.c.bf16 %v797, %v797
      %v806 = vpack.c.bf16 %v798, %v798
      %807 = vst [vmem:[%s230] sm:$0xf] %v799
      %808 = vst [vmem:[%s230 + $0x4] sm:$0xf] %v800
      %809 = vst [vmem:[%s230 + $0x8] sm:$0xf] %v801
      %810 = vst [vmem:[%s230 + $0xc] sm:$0xf] %v802
      %811 = vst [vmem:[%s230 + $0x10] sm:$0xf] %v803
      %812 = vst [vmem:[%s230 + $0x14] sm:$0xf] %v804
      %813 = vst [vmem:[%s230 + $0x18] sm:$0xf] %v805
      %814 = vst [vmem:[%s230 + $0x1c] sm:$0xf] %v806
      %v815 = vadd.f32 %v791, %v792
      %v816 = vadd.f32 %v815, %v793
      %v817 = vadd.f32 %v816, %v794
      %v818 = vadd.f32 %v817, %v795
      %v819 = vadd.f32 %v818, %v796
      %v820 = vadd.f32 %v819, %v797
      %v821 = vadd.f32 %v820, %v798
      %v822 = vrot.slane %v821, 4
      %v823 = vadd.f32 %v821, %v822
      %v824 = vrot.slane %v823, 2
      %v825 = vadd.f32 %v823, %v824
      %v826 = vrot.slane %v825, 1
      %v827 = vadd.f32 %v825, %v826
      %828 = vst [vmem:[%s236] sm:$0x1] %v827
      %v829 = vmul.f32 %v791, %v791
      %v830 = vmul.f32 %v792, %v792
      %v831 = vmul.f32 %v793, %v793
      %v832 = vmul.f32 %v794, %v794
      %v833 = vmul.f32 %v795, %v795
      %v834 = vmul.f32 %v796, %v796
      %v835 = vmul.f32 %v797, %v797
      %v836 = vmul.f32 %v798, %v798
      %v837 = vadd.f32 %v829, %v830
      %v838 = vadd.f32 %v837, %v831
      %v839 = vadd.f32 %v838, %v832
      %v840 = vadd.f32 %v839, %v833
      %v841 = vadd.f32 %v840, %v834
      %v842 = vadd.f32 %v841, %v835
      %v843 = vadd.f32 %v842, %v836
      %v844 = vrot.slane %v843, 4
      %v845 = vadd.f32 %v843, %v844
      %v846 = vrot.slane %v845, 2
      %v847 = vadd.f32 %v845, %v846
      %v848 = vrot.slane %v847, 1
      %v849 = vadd.f32 %v847, %v848
      %850 = vst [vmem:[%s241] sm:$0x1] %v849
      %s851 = sadd.s32 %s20, %s21
      %s852 = smul.u32 8, %s851
      %p853 = scmp.lt.s32.totalorder %s852, 15
      %s854 = scalar_select %p853, %s852, 15
      %s855 = smul.addr %s854, 4
      %s856 = scalar_lea.vmem %s2, %s855
      %s857 = sadd.s32 %s20, %s21
      %p858 = scmp.lt.s32.totalorder %s857, 1
      %s859 = scalar_select %p858, %s857, 1
      %s860 = scalar_lea.vmem %s3, %s859
      %s861 = sadd.s32 %s20, %s21
      %p862 = scmp.lt.s32.totalorder %s861, 1
      %s863 = scalar_select %p862, %s861, 1
      %s864 = scalar_lea.vmem %s4, %s863
      // Predicated region
      $region29: #{conv_cell_forward.3} parent=27 // pred_check
        %p865 = pneg %p95
      $region30: #{conv_cell_forward.3} parent=27 // pred_check_branch
        %867 = sbr.rel (%p865) target = $region32
      $region31: #{conv_cell_forward.3} parent=27 // pred_region
        %s868 = sadd.s32 %s20, %s21
        %s869 = smul.u32 8, %s868
      $region32: #{conv_cell_forward.3} parent=27 // pred_fallthru
        _
      // Predicated region
      $region33: #{conv_cell_forward.3} parent=27 // pred_check
        %p870 = pneg %p123
      $region34: #{conv_cell_forward.3} parent=27 // pred_check_branch
        %872 = sbr.rel (%p870) target = $region36
      $region35: #{conv_cell_forward.3} parent=27 // pred_region
        %s873 = sadd.s32 %s20, %s21
      $region36: #{conv_cell_forward.3} parent=27 // pred_fallthru
        _
      // Predicated region
      $region37: #{conv_cell_forward.3} parent=27 // pred_check
        %p874 = pneg %p151
      $region38: #{conv_cell_forward.3} parent=27 // pred_check_branch
        %876 = sbr.rel (%p874) target = $region40
      $region39: #{conv_cell_forward.3} parent=27 // pred_region
        %s877 = sadd.s32 %s20, %s21
      $region40: #{conv_cell_forward.3} parent=27 // pred_fallthru
        _
    $region28: #{conv_cell_forward.3} parent=5 // pred_fallthru
      _
    %p878 = scmp.le.s32.totalorder 2, %s11
    // Predicated region
    $region41: #{conv_cell_forward.3} parent=5 // pred_check
      %p879 = pneg %p878
    $region42: #{conv_cell_forward.3} parent=5 // pred_check_branch
      %881 = sbr.rel (%p879) target = $region44
    $region43: #{conv_cell_forward.3} parent=5 // pred_region
      %s882 = ssub.s32 %s11, 2
      // Predicated region
      $region45: #{conv_cell_forward.3} parent=43 // pred_check
        %p883 = pneg %p101
      $region46: #{conv_cell_forward.3} parent=43 // pred_check_branch
        %885 = sbr.rel (%p883) target = $region48
      $region47: #{conv_cell_forward.3} parent=43 // pred_region
        %s886 = sadd.s32 %s22, %s23
        %s887 = smul.u32 8, %s886
        %p888 = scmp.lt.s32.totalorder %s887, 15
        %s889 = scalar_select %p888, %s887, 15
        %s890 = smul.addr %s889, 4
        %s891 = scalar_lea.vmem %s2, %s890
      $region48: #{conv_cell_forward.3} parent=43 // pred_fallthru
        _
      // Predicated region
      $region49: #{conv_cell_forward.3} parent=43 // pred_check
        %p892 = pneg %p129
      $region50: #{conv_cell_forward.3} parent=43 // pred_check_branch
        %894 = sbr.rel (%p892) target = $region52
      $region51: #{conv_cell_forward.3} parent=43 // pred_region
        %s895 = sadd.s32 %s22, %s23
        %p896 = scmp.lt.s32.totalorder %s895, 1
        %s897 = scalar_select %p896, %s895, 1
        %s898 = scalar_lea.vmem %s3, %s897
      $region52: #{conv_cell_forward.3} parent=43 // pred_fallthru
        _
      // Predicated region
      $region53: #{conv_cell_forward.3} parent=43 // pred_check
        %p899 = pneg %p157
      $region54: #{conv_cell_forward.3} parent=43 // pred_check_branch
        %901 = sbr.rel (%p899) target = $region56
      $region55: #{conv_cell_forward.3} parent=43 // pred_region
        %s902 = sadd.s32 %s22, %s23
        %p903 = scmp.lt.s32.totalorder %s902, 1
        %s904 = scalar_select %p903, %s902, 1
        %s905 = scalar_lea.vmem %s4, %s904
      $region56: #{conv_cell_forward.3} parent=43 // pred_fallthru
        _
    $region44: #{conv_cell_forward.3} parent=5 // pred_fallthru
      _
  $region6: #{conv_cell_forward.3} parent=0 // loop_footer
    %s15 = sadd.s32 1, %s11
  $region7: #{conv_cell_forward.3} parent=0 // loop_footer_branch
    %10 = sbr.rel target = $region3
  $region8: #{conv_cell_forward.3} parent=0 // loop_exit
    _

// kernel: conv_cell_forward.4
$region0: #{conv_cell_forward.4}
  #allocation0 [shape = 'u32[]', space=smem, size = 0x4, offset = 0x4, fixed_abs, tag = 'smem constant byte address 0x4 - core index']
  #allocation1 [shape = 'u32[72,128]{1,0:T(1,128)}', space=vmem, size = 0x9000, scoped, tag = 'internal scratch']
  #allocation2 [shape = 'bf16[10,10,128]{2,1,0:T(8,128)(2,1)}', space=vmem, size = 0xa000, scoped, tag = 'scratch operand']
  #allocation3 [shape = 'bf16[64,1152]{1,0:T(8,128)(2,1)}', space=vmem, size = 0x24000, scoped, tag = 'scratch operand']
  %s0 = inlined_call_operand.vmem [shape: bf16[2,10,10,128], index: 0, kind: input, shape index: {}]
  %s1 = inlined_call_operand.vmem [shape: f32[1,128], index: 1, kind: input, shape index: {}]
  %s2 = inlined_call_operand.vmem [shape: f32[1,128], index: 2, kind: input, shape index: {}]
  %s3 = inlined_call_operand.vmem [shape: bf16[1152,128], index: 3, kind: input, shape index: {}]
  %s4 = inlined_call_operand.vmem [shape: bf16[128,128], index: 4, kind: output, shape index: {0}]
  %s5 = inlined_call_operand.vmem [shape: f32[2,1,128], index: 5, kind: output, shape index: {1}]
  %s6 = inlined_call_operand.vmem [shape: f32[2,1,128], index: 6, kind: output, shape index: {2}]
  %7 = xla_tuple %s4, %s5, %s6
  %s8 = sld [smem:[#allocation0]]
  $region65: #{conv_cell_forward.4} parent=0
    _
  %s10 = ssub.s32 1, %s8
  %s11 = scalar_select 0, %s10, %s8
  loop: start=0, step=1, limit=4
  $region2: #{conv_cell_forward.4} parent=0 // loop_pre_header
    _
  $region3: #{conv_cell_forward.4} parent=0 // loop_header
    %s13 = sphi 0, %s17
    %p14 = scmp.ge.s32.totalorder %s13, 4
    %s20 = sphi 0, %s32
    %s21 = sphi 0, %s28
    %s22 = sphi 0, %s20
    %s23 = sphi 0, %s21
    %s24 = sphi 0, %s22
    %s25 = sphi 0, %s23
    %s35 = sphi 0, %s37
    %s38 = sphi 0, %s35
    %s39 = sphi 0, %s38
    %s55 = sphi 0, %s39
    %s59 = sphi 0, %s59
    %s61 = sphi 0, %s59
    %s62 = sphi 0, %s61
    %s76 = sphi 0, %s62
    %s80 = sphi 0, %s80
    %s82 = sphi 0, %s80
    %s83 = sphi 0, %s82
    %s97 = sphi 0, %s83
    %s101 = sphi 0, %s101
    %s103 = sphi 0, %s101
    %s104 = sphi 0, %s103
    %s118 = sphi 0, %s104
    %s126 = sphi 0, %s128
    %s129 = sphi 0, %s126
    %s130 = sphi 0, %s129
    %s146 = sphi 0, %s130
    %s154 = sphi 0, %s156
    %s157 = sphi 0, %s154
    %s158 = sphi 0, %s157
    %s174 = sphi 0, %s158
    %s182 = sphi 0, %s184
    %s185 = sphi 0, %s182
    %s186 = sphi 0, %s185
    %s202 = sphi 0, %s186
  $region4: #{conv_cell_forward.4} parent=0 // loop_header_branch
    %16 = sbr.rel (%p14) target = $region8
  $region5: #{conv_cell_forward.4} parent=0 // loop_body
    %s18 = ssub.s32 %s13, 1
    %s19 = ssub.s32 %s13, 2
    %s26 = sadd.s32 1, %s21
    %p27 = scmp.ge.s32.totalorder %s26, 1
    %s28 = scalar_select %p27, 0, %s26
    %s29 = sadd.s32 1, %s20
    %s30 = scalar_select %p27, %s29, %s20
    %p31 = scmp.ge.s32.totalorder %s30, 2
    %s32 = scalar_select %p31, 0, %s30
    %s33 = ssub.s32 %s20, %s32
    %p34 = scmp.eq.s32.totalorder %s33, 0
    %s36 = sadd.s32 %s35, 1
    %s37 = scalar_select %p34, %s35, %s36
    %p40 = pneg %p34
    %p41 = scmp.eq.s32.totalorder %s13, 1
    %p42 = por %p40, %p41
    %p43 = scmp.ne.s32.totalorder %s35, %s38
    %p44 = scmp.eq.s32.totalorder %s13, 0
    %p45 = por %p43, %p44
    %p46 = scmp.ne.s32.totalorder %s35, %s38
    %p47 = scmp.eq.s32.totalorder %s18, 1
    %p48 = por %p46, %p47
    %p49 = scmp.ne.s32.totalorder %s38, %s39
    %p50 = scmp.eq.s32.totalorder %s18, 0
    %p51 = por %p49, %p50
    %p52 = scmp.ne.s32.totalorder %s38, %s39
    %p53 = scmp.eq.s32.totalorder %s19, 1
    %p54 = por %p52, %p53
    %p56 = scmp.ne.s32.totalorder %s39, %s55
    %p57 = scmp.eq.s32.totalorder %s19, 0
    %p58 = por %p56, %p57
    %s60 = sadd.s32 %s59, 1
    %p63 = scmp.eq.s32.totalorder %s13, 1
    %p64 = scmp.ne.s32.totalorder %s59, %s61
    %p65 = scmp.eq.s32.totalorder %s13, 0
    %p66 = por %p64, %p65
    %p67 = scmp.ne.s32.totalorder %s59, %s61
    %p68 = scmp.eq.s32.totalorder %s18, 1
    %p69 = por %p67, %p68
    %p70 = scmp.ne.s32.totalorder %s61, %s62
    %p71 = scmp.eq.s32.totalorder %s18, 0
    %p72 = por %p70, %p71
    %p73 = scmp.ne.s32.totalorder %s61, %s62
    %p74 = scmp.eq.s32.totalorder %s19, 1
    %p75 = por %p73, %p74
    %p77 = scmp.ne.s32.totalorder %s62, %s76
    %p78 = scmp.eq.s32.totalorder %s19, 0
    %p79 = por %p77, %p78
    %s81 = sadd.s32 %s80, 1
    %p84 = scmp.eq.s32.totalorder %s13, 1
    %p85 = scmp.ne.s32.totalorder %s80, %s82
    %p86 = scmp.eq.s32.totalorder %s13, 0
    %p87 = por %p85, %p86
    %p88 = scmp.ne.s32.totalorder %s80, %s82
    %p89 = scmp.eq.s32.totalorder %s18, 1
    %p90 = por %p88, %p89
    %p91 = scmp.ne.s32.totalorder %s82, %s83
    %p92 = scmp.eq.s32.totalorder %s18, 0
    %p93 = por %p91, %p92
    %p94 = scmp.ne.s32.totalorder %s82, %s83
    %p95 = scmp.eq.s32.totalorder %s19, 1
    %p96 = por %p94, %p95
    %p98 = scmp.ne.s32.totalorder %s83, %s97
    %p99 = scmp.eq.s32.totalorder %s19, 0
    %p100 = por %p98, %p99
    %s102 = sadd.s32 %s101, 1
    %p105 = scmp.eq.s32.totalorder %s13, 1
    %p106 = scmp.ne.s32.totalorder %s101, %s103
    %p107 = scmp.eq.s32.totalorder %s13, 0
    %p108 = por %p106, %p107
    %p109 = scmp.ne.s32.totalorder %s101, %s103
    %p110 = scmp.eq.s32.totalorder %s18, 1
    %p111 = por %p109, %p110
    %p112 = scmp.ne.s32.totalorder %s103, %s104
    %p113 = scmp.eq.s32.totalorder %s18, 0
    %p114 = por %p112, %p113
    %p115 = scmp.ne.s32.totalorder %s103, %s104
    %p116 = scmp.eq.s32.totalorder %s19, 1
    %p117 = por %p115, %p116
    %p119 = scmp.ne.s32.totalorder %s104, %s118
    %p120 = scmp.eq.s32.totalorder %s19, 0
    %p121 = por %p119, %p120
    %s122 = sadd.s32 %s20, %s21
    %s123 = sadd.s32 %s32, %s28
    %s124 = ssub.s32 %s122, %s123
    %p125 = scmp.eq.s32.totalorder %s124, 0
    %s127 = sadd.s32 %s126, 1
    %s128 = scalar_select %p125, %s126, %s127
    %p131 = pneg %p125
    %p132 = scmp.eq.s32.totalorder %s13, 1
    %p133 = por %p131, %p132
    %p134 = scmp.ne.s32.totalorder %s126, %s129
    %p135 = scmp.eq.s32.totalorder %s13, 0
    %p136 = por %p134, %p135
    %p137 = scmp.ne.s32.totalorder %s126, %s129
    %p138 = scmp.eq.s32.totalorder %s18, 1
    %p139 = por %p137, %p138
    %p140 = scmp.ne.s32.totalorder %s129, %s130
    %p141 = scmp.eq.s32.totalorder %s18, 0
    %p142 = por %p140, %p141
    %p143 = scmp.ne.s32.totalorder %s129, %s130
    %p144 = scmp.eq.s32.totalorder %s19, 1
    %p145 = por %p143, %p144
    %p147 = scmp.ne.s32.totalorder %s130, %s146
    %p148 = scmp.eq.s32.totalorder %s19, 0
    %p149 = por %p147, %p148
    %s150 = sadd.s32 %s20, %s21
    %s151 = sadd.s32 %s32, %s28
    %s152 = ssub.s32 %s150, %s151
    %p153 = scmp.eq.s32.totalorder %s152, 0
    %s155 = sadd.s32 %s154, 1
    %s156 = scalar_select %p153, %s154, %s155
    %p159 = pneg %p153
    %p160 = scmp.eq.s32.totalorder %s13, 1
    %p161 = por %p159, %p160
    %p162 = scmp.ne.s32.totalorder %s154, %s157
    %p163 = scmp.eq.s32.totalorder %s13, 0
    %p164 = por %p162, %p163
    %p165 = scmp.ne.s32.totalorder %s154, %s157
    %p166 = scmp.eq.s32.totalorder %s18, 1
    %p167 = por %p165, %p166
    %p168 = scmp.ne.s32.totalorder %s157, %s158
    %p169 = scmp.eq.s32.totalorder %s18, 0
    %p170 = por %p168, %p169
    %p171 = scmp.ne.s32.totalorder %s157, %s158
    %p172 = scmp.eq.s32.totalorder %s19, 1
    %p173 = por %p171, %p172
    %p175 = scmp.ne.s32.totalorder %s158, %s174
    %p176 = scmp.eq.s32.totalorder %s19, 0
    %p177 = por %p175, %p176
    %s178 = sadd.s32 %s20, %s21
    %s179 = sadd.s32 %s32, %s28
    %s180 = ssub.s32 %s178, %s179
    %p181 = scmp.eq.s32.totalorder %s180, 0
    %s183 = sadd.s32 %s182, 1
    %s184 = scalar_select %p181, %s182, %s183
    %p187 = pneg %p181
    %p188 = scmp.eq.s32.totalorder %s13, 1
    %p189 = por %p187, %p188
    %p190 = scmp.ne.s32.totalorder %s182, %s185
    %p191 = scmp.eq.s32.totalorder %s13, 0
    %p192 = por %p190, %p191
    %p193 = scmp.ne.s32.totalorder %s182, %s185
    %p194 = scmp.eq.s32.totalorder %s18, 1
    %p195 = por %p193, %p194
    %p196 = scmp.ne.s32.totalorder %s185, %s186
    %p197 = scmp.eq.s32.totalorder %s18, 0
    %p198 = por %p196, %p197
    %p199 = scmp.ne.s32.totalorder %s185, %s186
    %p200 = scmp.eq.s32.totalorder %s19, 1
    %p201 = por %p199, %p200
    %p203 = scmp.ne.s32.totalorder %s186, %s202
    %p204 = scmp.eq.s32.totalorder %s19, 0
    %p205 = por %p203, %p204
    %p206 = scmp.le.s32.totalorder 1, %s13
    %p207 = scmp.lt.s32.totalorder %s13, 3
    %p208 = pnand %p206, %p207
    %p209 = pneg %p208
    // Predicated region
    $region9: #{conv_cell_forward.4} parent=5 // pred_check
      _
    $region10: #{conv_cell_forward.4} parent=5 // pred_check_branch
      %211 = sbr.rel (%p208) target = $region12
    $region11: #{conv_cell_forward.4} parent=5 // pred_region
      %s212 = ssub.s32 %s13, 1
      // Predicated region
      $region13: #{conv_cell_forward.4} parent=11 // pred_check
        %p213 = pneg %p72
      $region14: #{conv_cell_forward.4} parent=11 // pred_check_branch
        %215 = sbr.rel (%p213) target = $region16
      $region15: #{conv_cell_forward.4} parent=11 // pred_region
        _
      $region16: #{conv_cell_forward.4} parent=11 // pred_fallthru
        _
      // Predicated region
      $region17: #{conv_cell_forward.4} parent=11 // pred_check
        %p216 = pneg %p93
      $region18: #{conv_cell_forward.4} parent=11 // pred_check_branch
        %218 = sbr.rel (%p216) target = $region20
      $region19: #{conv_cell_forward.4} parent=11 // pred_region
        _
      $region20: #{conv_cell_forward.4} parent=11 // pred_fallthru
        _
      // Predicated region
      $region21: #{conv_cell_forward.4} parent=11 // pred_check
        %p219 = pneg %p114
      $region22: #{conv_cell_forward.4} parent=11 // pred_check_branch
        %221 = sbr.rel (%p219) target = $region24
      $region23: #{conv_cell_forward.4} parent=11 // pred_region
        _
      $region24: #{conv_cell_forward.4} parent=11 // pred_fallthru
        _
    $region12: #{conv_cell_forward.4} parent=5 // pred_fallthru
      _
    %p222 = scmp.lt.s32.totalorder %s13, 2
    // Predicated region
    $region25: #{conv_cell_forward.4} parent=5 // pred_check
      %p223 = pneg %p222
    $region26: #{conv_cell_forward.4} parent=5 // pred_check_branch
      %225 = sbr.rel (%p223) target = $region28
    $region27: #{conv_cell_forward.4} parent=5 // pred_region
      // Predicated region
      $region29: #{conv_cell_forward.4} parent=27 // pred_check
        %p226 = pneg %p45
      $region30: #{conv_cell_forward.4} parent=27 // pred_check_branch
        %228 = sbr.rel (%p226) target = $region32
      $region31: #{conv_cell_forward.4} parent=27 // pred_region
        %p229 = scmp.lt.s32.totalorder %s20, 1
        %s230 = scalar_select %p229, %s20, 1
        %s231 = smul.addr %s230, 20
        %s232 = smul.addr %s231, 4
        %s233 = scalar_lea.vmem %s0, %s232
      $region32: #{conv_cell_forward.4} parent=27 // pred_fallthru
        _
    $region28: #{conv_cell_forward.4} parent=5 // pred_fallthru
      _
    %p234 = scmp.le.s32.totalorder 1, %s13
    %p235 = scmp.lt.s32.totalorder %s13, 3
    %p236 = pnand %p234, %p235
    %p237 = pneg %p236
    // Predicated region
    $region33: #{conv_cell_forward.4} parent=5 // pred_check
      _
    $region34: #{conv_cell_forward.4} parent=5 // pred_check_branch
      %239 = sbr.rel (%p236) target = $region36
    $region35: #{conv_cell_forward.4} parent=5 // pred_region
      %s240 = ssub.s32 %s13, 1
      %p241 = scmp.lt.s32.totalorder %s22, 1
      %s242 = scalar_select %p241, %s22, 1
      %s243 = smul.addr %s242, 20
      %s244 = smul.addr %s243, 4
      %s245 = scalar_lea.vmem %s0, %s244
      %p246 = pneg %p51
      %p247 = pneg %p48
      %p248 = pneg %p72
      %p249 = pneg %p69
      %p250 = pneg %p93
      %p251 = pneg %p90
      %p252 = pneg %p114
      %p253 = pneg %p111
      %p254 = pneg %p142
      %p255 = pneg %p139
      %s256 = sadd.s32 %s22, %s23
      %s257 = smul.u32 8, %s256
      %p258 = scmp.lt.s32.totalorder %s257, 15
      %s259 = scalar_select %p258, %s257, 15
      %s260 = smul.addr %s259, 4
      %s261 = scalar_lea.vmem %s4, %s260
      %p262 = pneg %p170
      %p263 = pneg %p167
      %s264 = sadd.s32 %s22, %s23
      %p265 = scmp.lt.s32.totalorder %s264, 1
      %s266 = scalar_select %p265, %s264, 1
      %s267 = scalar_lea.vmem %s5, %s266
      %p268 = pneg %p198
      %p269 = pneg %p195
      %s270 = sadd.s32 %s22, %s23
      %p271 = scmp.lt.s32.totalorder %s270, 1
      %s272 = scalar_select %p271, %s270, 1
      %s273 = scalar_lea.vmem %s6, %s272
      %p274 = scmp.lt.s32.totalorder %s22, 1
      %s275 = scalar_select %p274, %s22, 1
      %s276 = smul.addr %s275, 20
      %s277 = smul.addr %s276, 4
      %s278 = scalar_lea.vmem %s0, %s277
      %s279 = sadd.s32 %s22, %s23
      %s280 = smul.u32 8, %s279
      %p281 = scmp.lt.s32.totalorder %s280, 15
      %s282 = scalar_select %p281, %s280, 15
      %s283 = smul.addr %s282, 4
      %s284 = scalar_lea.vmem %s4, %s283
      %s285 = sadd.s32 %s22, %s23
      %s286 = smul.u32 8, %s285
      %s287 = sadd.s32 %s22, %s23
      %p288 = scmp.lt.s32.totalorder %s287, 1
      %s289 = scalar_select %p288, %s287, 1
      %s290 = scalar_lea.vmem %s5, %s289
      %s291 = sadd.s32 %s22, %s23
      %s292 = sadd.s32 %s22, %s23
      %p293 = scmp.lt.s32.totalorder %s292, 1
      %s294 = scalar_select %p293, %s292, 1
      %s295 = scalar_lea.vmem %s6, %s294
      %s296 = sadd.s32 %s22, %s23
      %s297 = smul.u32 %s23, 8
      %s298 = smul.u32 %s297, 2
      %s299 = smul.addr %s298, 4
      %s300 = scalar_lea.vmem %s278, %s299
      %v301 = vld [vmem:[%s300] sm:$0xf]
      %v302 = vld [vmem:[%s300 + $0x4] sm:$0x1]
      %v303 = vld [vmem:[%s300 + $0x8] sm:$0xf]
      %v304 = vld [vmem:[%s300 + $0xc] sm:$0x1]
      %v305 = vld [vmem:[%s300 + $0x10] sm:$0xf]
      %v306 = vld [vmem:[%s300 + $0x14] sm:$0x1]
      %v307 = vld [vmem:[%s300 + $0x18] sm:$0xf]
      %v308 = vld [vmem:[%s300 + $0x1c] sm:$0x1]
      %v309 = vld [vmem:[%s300 + $0x20] sm:$0xf]
      %v310 = vld [vmem:[%s300 + $0x24] sm:$0x1]
      %v311 = vld [vmem:[%s300 + $0x28] sm:$0xf]
      %v312 = vld [vmem:[%s300 + $0x2c] sm:$0x1]
      %v313 = vld [vmem:[%s300 + $0x30] sm:$0xf]
      %v314 = vld [vmem:[%s300 + $0x34] sm:$0x1]
      %v315 = vld [vmem:[%s300 + $0x38] sm:$0xf]
      %v316 = vld [vmem:[%s300 + $0x3c] sm:$0x1]
      %v317 = vld [vmem:[%s300 + $0x40] sm:$0xf]
      %v318 = vld [vmem:[%s300 + $0x44] sm:$0x1]
      %v319 = vld [vmem:[%s300 + $0x48] sm:$0xf]
      %v320 = vld [vmem:[%s300 + $0x4c] sm:$0x1]
      %v321 = vunpack.c.l.bf16 %v301
      %v322 = vunpack.c.l.bf16 %v302
      %v323 = vunpack.c.l.bf16 %v303
      %v324 = vunpack.c.l.bf16 %v304
      %v325 = vunpack.c.l.bf16 %v305
      %v326 = vunpack.c.l.bf16 %v306
      %v327 = vunpack.c.l.bf16 %v307
      %v328 = vunpack.c.l.bf16 %v308
      %v329 = vunpack.c.l.bf16 %v309
      %v330 = vunpack.c.l.bf16 %v310
      %v331 = vunpack.c.l.bf16 %v311
      %v332 = vunpack.c.l.bf16 %v312
      %v333 = vunpack.c.l.bf16 %v313
      %v334 = vunpack.c.l.bf16 %v314
      %v335 = vunpack.c.l.bf16 %v315
      %v336 = vunpack.c.l.bf16 %v316
      %v337 = vunpack.c.l.bf16 %v317
      %v338 = vunpack.c.l.bf16 %v318
      %v339 = vunpack.c.l.bf16 %v319
      %v340 = vunpack.c.l.bf16 %v320
      %v341 = vld [vmem:[%s1] sm:$0x1]
      %v343 = vperm.slane %v341, 0
      %v345 = vmul.f32 %v321, %v343
      %v346 = vmul.f32 %v322, %v343
      %v347 = vmul.f32 %v323, %v343
      %v348 = vmul.f32 %v324, %v343
      %v349 = vmul.f32 %v325, %v343
      %v350 = vmul.f32 %v326, %v343
      %v351 = vmul.f32 %v327, %v343
      %v352 = vmul.f32 %v328, %v343
      %v353 = vmul.f32 %v329, %v343
      %v354 = vmul.f32 %v330, %v343
      %v355 = vmul.f32 %v331, %v343
      %v356 = vmul.f32 %v332, %v343
      %v357 = vmul.f32 %v333, %v343
      %v358 = vmul.f32 %v334, %v343
      %v359 = vmul.f32 %v335, %v343
      %v360 = vmul.f32 %v336, %v343
      %v361 = vmul.f32 %v337, %v343
      %v362 = vmul.f32 %v338, %v343
      %v363 = vmul.f32 %v339, %v343
      %v364 = vmul.f32 %v340, %v343
      %v365 = vld [vmem:[%s2] sm:$0x1]
      %v367 = vperm.slane %v365, 0
      %v369 = vadd.f32 %v345, %v367
      %v370 = vadd.f32 %v346, %v367
      %v371 = vadd.f32 %v347, %v367
      %v372 = vadd.f32 %v348, %v367
      %v373 = vadd.f32 %v349, %v367
      %v374 = vadd.f32 %v350, %v367
      %v375 = vadd.f32 %v351, %v367
      %v376 = vadd.f32 %v352, %v367
      %v377 = vadd.f32 %v353, %v367
      %v378 = vadd.f32 %v354, %v367
      %v379 = vadd.f32 %v355, %v367
      %v380 = vadd.f32 %v356, %v367
      %v381 = vadd.f32 %v357, %v367
      %v382 = vadd.f32 %v358, %v367
      %v383 = vadd.f32 %v359, %v367
      %v384 = vadd.f32 %v360, %v367
      %v385 = vadd.f32 %v361, %v367
      %v386 = vadd.f32 %v362, %v367
      %v387 = vadd.f32 %v363, %v367
      %v388 = vadd.f32 %v364, %v367
      %v389 = vmul.f32 %v369, 0.01
      %v390 = vmul.f32 %v370, 0.01
      %v391 = vmul.f32 %v371, 0.01
      %v392 = vmul.f32 %v372, 0.01
      %v393 = vmul.f32 %v373, 0.01
      %v394 = vmul.f32 %v374, 0.01
      %v395 = vmul.f32 %v375, 0.01
      %v396 = vmul.f32 %v376, 0.01
      %v397 = vmul.f32 %v377, 0.01
      %v398 = vmul.f32 %v378, 0.01
      %v399 = vmul.f32 %v379, 0.01
      %v400 = vmul.f32 %v380, 0.01
      %v401 = vmul.f32 %v381, 0.01
      %v402 = vmul.f32 %v382, 0.01
      %v403 = vmul.f32 %v383, 0.01
      %v404 = vmul.f32 %v384, 0.01
      %v405 = vmul.f32 %v385, 0.01
      %v406 = vmul.f32 %v386, 0.01
      %v407 = vmul.f32 %v387, 0.01
      %v408 = vmul.f32 %v388, 0.01
      %v409 = vmax.f32 %v369, %v389
      %v410 = vmax.f32 %v370, %v390
      %v411 = vmax.f32 %v371, %v391
      %v412 = vmax.f32 %v372, %v392
      %v413 = vmax.f32 %v373, %v393
      %v414 = vmax.f32 %v374, %v394
      %v415 = vmax.f32 %v375, %v395
      %v416 = vmax.f32 %v376, %v396
      %v417 = vmax.f32 %v377, %v397
      %v418 = vmax.f32 %v378, %v398
      %v419 = vmax.f32 %v379, %v399
      %v420 = vmax.f32 %v380, %v400
      %v421 = vmax.f32 %v381, %v401
      %v422 = vmax.f32 %v382, %v402
      %v423 = vmax.f32 %v383, %v403
      %v424 = vmax.f32 %v384, %v404
      %v425 = vmax.f32 %v385, %v405
      %v426 = vmax.f32 %v386, %v406
      %v427 = vmax.f32 %v387, %v407
      %v428 = vmax.f32 %v388, %v408
      %v429 = vstv %s297
      %v430 = vadd.s32 %v429, 1
      %v431 = vadd.s32 %v429, 2
      %v432 = vadd.s32 %v429, 3
      %v433 = vadd.s32 %v429, 4
      %v434 = vadd.s32 %v429, 5
      %v435 = vadd.s32 %v429, 6
      %v436 = vadd.s32 %v429, 7
      %v437 = vadd.s32 %v429, 8
      %v438 = vadd.s32 %v429, 9
      %v439 = vlaneseq
      %v440 = vshrl.u32 %v439, 7
      %v441 = vadd.s32 %v440, 8
      %vm442 = vcmp.lt.s32.totalorder %v429, 1
      %vm443 = vcmp.lt.s32.totalorder %v430, 1
      %vm444 = vcmp.lt.s32.totalorder %v431, 1
      %vm445 = vcmp.lt.s32.totalorder %v432, 1
      %vm446 = vcmp.lt.s32.totalorder %v433, 1
      %vm447 = vcmp.lt.s32.totalorder %v434, 1
      %vm448 = vcmp.lt.s32.totalorder %v435, 1
      %vm449 = vcmp.lt.s32.totalorder %v436, 1
      %vm450 = vcmp.lt.s32.totalorder %v437, 1
      %vm451 = vcmp.lt.s32.totalorder %v438, 1
      %vm452 = vcmp.ge.s32.totalorder %v429, 9
      %vm453 = vcmp.ge.s32.totalorder %v430, 9
      %vm454 = vcmp.ge.s32.totalorder %v431, 9
      %vm455 = vcmp.ge.s32.totalorder %v432, 9
      %vm456 = vcmp.ge.s32.totalorder %v433, 9
      %vm457 = vcmp.ge.s32.totalorder %v434, 9
      %vm458 = vcmp.ge.s32.totalorder %v435, 9
      %vm459 = vcmp.ge.s32.totalorder %v436, 9
      %vm460 = vcmp.ge.s32.totalorder %v437, 9
      %vm461 = vcmp.ge.s32.totalorder %v438, 9
      %vm462 = vmor %vm442, %vm452
      %vm463 = vmor %vm443, %vm453
      %vm464 = vmor %vm444, %vm454
      %vm465 = vmor %vm445, %vm455
      %vm466 = vmor %vm446, %vm456
      %vm467 = vmor %vm447, %vm457
      %vm468 = vmor %vm448, %vm458
      %vm469 = vmor %vm449, %vm459
      %vm470 = vmor %vm450, %vm460
      %vm471 = vmor %vm451, %vm461
      %vm472 = vcmp.lt.s32.totalorder %v440, 1
      %vm473 = vcmp.lt.s32.totalorder %v441, 1
      %vm474 = vmor %vm462, %vm472
      %vm475 = vmor %vm462, %vm473
      %vm476 = vmor %vm463, %vm472
      %vm477 = vmor %vm463, %vm473
      %vm478 = vmor %vm464, %vm472
      %vm479 = vmor %vm464, %vm473
      %vm480 = vmor %vm465, %vm472
      %vm481 = vmor %vm465, %vm473
      %vm482 = vmor %vm466, %vm472
      %vm483 = vmor %vm466, %vm473
      %vm484 = vmor %vm467, %vm472
      %vm485 = vmor %vm467, %vm473
      %vm486 = vmor %vm468, %vm472
      %vm487 = vmor %vm468, %vm473
      %vm488 = vmor %vm469, %vm472
      %vm489 = vmor %vm469, %vm473
      %vm490 = vmor %vm470, %vm472
      %vm491 = vmor %vm470, %vm473
      %vm492 = vmor %vm471, %vm472
      %vm493 = vmor %vm471, %vm473
      %vm494 = vcmp.ge.s32.totalorder %v440, 9
      %vm495 = vcmp.ge.s32.totalorder %v441, 9
      %vm496 = vmor %vm474, %vm494
      %vm497 = vmor %vm475, %vm495
      %vm498 = vmor %vm476, %vm494
      %vm499 = vmor %vm477, %vm495
      %vm500 = vmor %vm478, %vm494
      %vm501 = vmor %vm479, %vm495
      %vm502 = vmor %vm480, %vm494
      %vm503 = vmor %vm481, %vm495
      %vm504 = vmor %vm482, %vm494
      %vm505 = vmor %vm483, %vm495
      %vm506 = vmor %vm484, %vm494
      %vm507 = vmor %vm485, %vm495
      %vm508 = vmor %vm486, %vm494
      %vm509 = vmor %vm487, %vm495
      %vm510 = vmor %vm488, %vm494
      %vm511 = vmor %vm489, %vm495
      %vm512 = vmor %vm490, %vm494
      %vm513 = vmor %vm491, %vm495
      %vm514 = vmor %vm492, %vm494
      %vm515 = vmor %vm493, %vm495
      %v516 = vsel %vm496, 0.0, %v409
      %v517 = vsel %vm497, 0.0, %v410
      %v518 = vsel %vm498, 0.0, %v411
      %v519 = vsel %vm499, 0.0, %v412
      %v520 = vsel %vm500, 0.0, %v413
      %v521 = vsel %vm501, 0.0, %v414
      %v522 = vsel %vm502, 0.0, %v415
      %v523 = vsel %vm503, 0.0, %v416
      %v524 = vsel %vm504, 0.0, %v417
      %v525 = vsel %vm505, 0.0, %v418
      %v526 = vsel %vm506, 0.0, %v419
      %v527 = vsel %vm507, 0.0, %v420
      %v528 = vsel %vm508, 0.0, %v421
      %v529 = vsel %vm509, 0.0, %v422
      %v530 = vsel %vm510, 0.0, %v423
      %v531 = vsel %vm511, 0.0, %v424
      %v532 = vsel %vm512, 0.0, %v425
      %v533 = vsel %vm513, 0.0, %v426
      %v534 = vsel %vm514, 0.0, %v427
      %v535 = vsel %vm515, 0.0, %v428
      %v536 = vpack.c.bf16 %v516, %v516
      %v537 = vpack.c.bf16 %v517, %v517
      %v538 = vpack.c.bf16 %v518, %v518
      %v539 = vpack.c.bf16 %v519, %v519
      %v540 = vpack.c.bf16 %v520, %v520
      %v541 = vpack.c.bf16 %v521, %v521
      %v542 = vpack.c.bf16 %v522, %v522
      %v543 = vpack.c.bf16 %v523, %v523
      %v544 = vpack.c.bf16 %v524, %v524
      %v545 = vpack.c.bf16 %v525, %v525
      %v546 = vpack.c.bf16 %v526, %v526
      %v547 = vpack.c.bf16 %v527, %v527
      %v548 = vpack.c.bf16 %v528, %v528
      %v549 = vpack.c.bf16 %v529, %v529
      %v550 = vpack.c.bf16 %v530, %v530
      %v551 = vpack.c.bf16 %v531, %v531
      %v552 = vpack.c.bf16 %v532, %v532
      %v553 = vpack.c.bf16 %v533, %v533
      %v554 = vpack.c.bf16 %v534, %v534
      %v555 = vpack.c.bf16 %v535, %v535
      %556 = vst [vmem:[#allocation2] sm:$0xf] %v536
      %557 = vst [vmem:[#allocation2 + $0x4] sm:$0x1] %v537
      %558 = vst [vmem:[#allocation2 + $0x8] sm:$0xf] %v538
      %559 = vst [vmem:[#allocation2 + $0xc] sm:$0x1] %v539
      %560 = vst [vmem:[#allocation2 + $0x10] sm:$0xf] %v540
      %561 = vst [vmem:[#allocation2 + $0x14] sm:$0x1] %v541
      %562 = vst [vmem:[#allocation2 + $0x18] sm:$0xf] %v542
      %563 = vst [vmem:[#allocation2 + $0x1c] sm:$0x1] %v543
      %564 = vst [vmem:[#allocation2 + $0x20] sm:$0xf] %v544
      %565 = vst [vmem:[#allocation2 + $0x24] sm:$0x1] %v545
      %566 = vst [vmem:[#allocation2 + $0x28] sm:$0xf] %v546
      %567 = vst [vmem:[#allocation2 + $0x2c] sm:$0x1] %v547
      %568 = vst [vmem:[#allocation2 + $0x30] sm:$0xf] %v548
      %569 = vst [vmem:[#allocation2 + $0x34] sm:$0x1] %v549
      %570 = vst [vmem:[#allocation2 + $0x38] sm:$0xf] %v550
      %571 = vst [vmem:[#allocation2 + $0x3c] sm:$0x1] %v551
      %572 = vst [vmem:[#allocation2 + $0x40] sm:$0xf] %v552
      %573 = vst [vmem:[#allocation2 + $0x44] sm:$0x1] %v553
      %574 = vst [vmem:[#allocation2 + $0x48] sm:$0xf] %v554
      %575 = vst [vmem:[#allocation2 + $0x4c] sm:$0x1] %v555
      %v576 = vld [vmem:[#allocation2] sm:$0xf]
      %v577 = vld [vmem:[#allocation2 + $0x8] sm:$0xf]
      %v578 = vld [vmem:[#allocation2 + $0x10] sm:$0xf]
      %v579 = vld [vmem:[#allocation2 + $0x18] sm:$0xf]
      %v580 = vld [vmem:[#allocation2 + $0x20] sm:$0xf]
      %v581 = vld [vmem:[#allocation2 + $0x28] sm:$0xf]
      %v582 = vld [vmem:[#allocation2 + $0x30] sm:$0xf]
      %v583 = vld [vmem:[#allocation2 + $0x38] sm:$0xf]
      %584 = vst [vmem:[#allocation3] sm:$0xf] %v576
      %585 = vst [vmem:[#allocation3 + $0x24] sm:$0xf] %v577
      %586 = vst [vmem:[#allocation3 + $0x48] sm:$0xf] %v578
      %587 = vst [vmem:[#allocation3 + $0x6c] sm:$0xf] %v579
      %588 = vst [vmem:[#allocation3 + $0x90] sm:$0xf] %v580
      %589 = vst [vmem:[#allocation3 + $0xb4] sm:$0xf] %v581
      %590 = vst [vmem:[#allocation3 + $0xd8] sm:$0xf] %v582
      %591 = vst [vmem:[#allocation3 + $0xfc] sm:$0xf] %v583
      %v592 = vld [vmem:[#allocation2] sm:$0xf]
      %v593 = vld [vmem:[#allocation2 + $0x4] sm:$0x1]
      %v594 = vld [vmem:[#allocation2 + $0x8] sm:$0xf]
      %v595 = vld [vmem:[#allocation2 + $0xc] sm:$0x1]
      %v596 = vld [vmem:[#allocation2 + $0x10] sm:$0xf]
      %v597 = vld [vmem:[#allocation2 + $0x14] sm:$0x1]
      %v598 = vld [vmem:[#allocation2 + $0x18] sm:$0xf]
      %v599 = vld [vmem:[#allocation2 + $0x1c] sm:$0x1]
      %v600 = vld [vmem:[#allocation2 + $0x20] sm:$0xf]
      %v601 = vld [vmem:[#allocation2 + $0x24] sm:$0x1]
      %v602 = vld [vmem:[#allocation2 + $0x28] sm:$0xf]
      %v603 = vld [vmem:[#allocation2 + $0x2c] sm:$0x1]
      %v604 = vld [vmem:[#allocation2 + $0x30] sm:$0xf]
      %v605 = vld [vmem:[#allocation2 + $0x34] sm:$0x1]
      %v606 = vld [vmem:[#allocation2 + $0x38] sm:$0xf]
      %v607 = vld [vmem:[#allocation2 + $0x3c] sm:$0x1]
      %vm608 = vsmask.f32 3328
      %vm609 = vsmask.f32 7440
      %vm610 = vmor %vm608, %vm609
      %v612 = vshrl.u32 %v592, 16
      %v614 = vrot.slane %v612, 4
      %v615 = vshll.u32 %v592, 16
      %v617 = vrot.slane %v615, 5
      %v618 = vor.u32 %v614, %v617
      %v619 = vrot.slane %v618, 4
      %v621 = vshll.u32 %v593, 16
      %v623 = vrot.slane %v621, 5
      %v624 = vsel %vm610, %v619, %v623
      %v626 = vshrl.u32 %v594, 16
      %v628 = vrot.slane %v626, 4
      %v629 = vshll.u32 %v594, 16
      %v631 = vrot.slane %v629, 5
      %v632 = vor.u32 %v628, %v631
      %v633 = vrot.slane %v632, 4
      %v635 = vshll.u32 %v595, 16
      %v637 = vrot.slane %v635, 5
      %v638 = vsel %vm610, %v633, %v637
      %v640 = vshrl.u32 %v596, 16
      %v642 = vrot.slane %v640, 4
      %v643 = vshll.u32 %v596, 16
      %v645 = vrot.slane %v643, 5
      %v646 = vor.u32 %v642, %v645
      %v647 = vrot.slane %v646, 4
      %v649 = vshll.u32 %v597, 16
      %v651 = vrot.slane %v649, 5
      %v652 = vsel %vm610, %v647, %v651
      %v654 = vshrl.u32 %v598, 16
      %v656 = vrot.slane %v654, 4
      %v657 = vshll.u32 %v598, 16
      %v659 = vrot.slane %v657, 5
      %v660 = vor.u32 %v656, %v659
      %v661 = vrot.slane %v660, 4
      %v663 = vshll.u32 %v599, 16
      %v665 = vrot.slane %v663, 5
      %v666 = vsel %vm610, %v661, %v665
      %v668 = vshrl.u32 %v600, 16
      %v670 = vrot.slane %v668, 4
      %v671 = vshll.u32 %v600, 16
      %v673 = vrot.slane %v671, 5
      %v674 = vor.u32 %v670, %v673
      %v675 = vrot.slane %v674, 4
      %v677 = vshll.u32 %v601, 16
      %v679 = vrot.slane %v677, 5
      %v680 = vsel %vm610, %v675, %v679
      %v682 = vshrl.u32 %v602, 16
      %v684 = vrot.slane %v682, 4
      %v685 = vshll.u32 %v602, 16
      %v687 = vrot.slane %v685, 5
      %v688 = vor.u32 %v684, %v687
      %v689 = vrot.slane %v688, 4
      %v691 = vshll.u32 %v603, 16
      %v693 = vrot.slane %v691, 5
      %v694 = vsel %vm610, %v689, %v693
      %v696 = vshrl.u32 %v604, 16
      %v698 = vrot.slane %v696, 4
      %v699 = vshll.u32 %v604, 16
      %v701 = vrot.slane %v699, 5
      %v702 = vor.u32 %v698, %v701
      %v703 = vrot.slane %v702, 4
      %v705 = vshll.u32 %v605, 16
      %v707 = vrot.slane %v705, 5
      %v708 = vsel %vm610, %v703, %v707
      %v710 = vshrl.u32 %v606, 16
      %v712 = vrot.slane %v710, 4
      %v713 = vshll.u32 %v606, 16
      %v715 = vrot.slane %v713, 5
      %v716 = vor.u32 %v712, %v715
      %v717 = vrot.slane %v716, 4
      %v719 = vshll.u32 %v607, 16
      %v721 = vrot.slane %v719, 5
      %v722 = vsel %vm610, %v717, %v721
      %731 = vst [vmem:[#allocation3 + $0x4] sm:$0xf] %v624
      %732 = vst [vmem:[#allocation3 + $0x28] sm:$0xf] %v638
      %733 = vst [vmem:[#allocation3 + $0x4c] sm:$0xf] %v652
      %734 = vst [vmem:[#allocation3 + $0x70] sm:$0xf] %v666
      %735 = vst [vmem:[#allocation3 + $0x94] sm:$0xf] %v680
      %736 = vst [vmem:[#allocation3 + $0xb8] sm:$0xf] %v694
      %737 = vst [vmem:[#allocation3 + $0xdc] sm:$0xf] %v708
      %738 = vst [vmem:[#allocation3 + $0x100] sm:$0xf] %v722
      %v739 = vld [vmem:[#allocation2] sm:$0xe]
      %v740 = vld [vmem:[#allocation2 + $0x4] sm:$0x1]
      %v741 = vld [vmem:[#allocation2 + $0x8] sm:$0xe]
      %v742 = vld [vmem:[#allocation2 + $0xc] sm:$0x1]
      %v743 = vld [vmem:[#allocation2 + $0x10] sm:$0xe]
      %v744 = vld [vmem:[#allocation2 + $0x14] sm:$0x1]
      %v745 = vld [vmem:[#allocation2 + $0x18] sm:$0xe]
      %v746 = vld [vmem:[#allocation2 + $0x1c] sm:$0x1]
      %v747 = vld [vmem:[#allocation2 + $0x20] sm:$0xe]
      %v748 = vld [vmem:[#allocation2 + $0x24] sm:$0x1]
      %v749 = vld [vmem:[#allocation2 + $0x28] sm:$0xe]
      %v750 = vld [vmem:[#allocation2 + $0x2c] sm:$0x1]
      %v751 = vld [vmem:[#allocation2 + $0x30] sm:$0xe]
      %v752 = vld [vmem:[#allocation2 + $0x34] sm:$0x1]
      %v753 = vld [vmem:[#allocation2 + $0x38] sm:$0xe]
      %v754 = vld [vmem:[#allocation2 + $0x3c] sm:$0x1]
      %vm771 = vcmask 1042432
      %vm772 = vcmask 1046532
      %vm773 = vmor %vm771, %vm772
      %v774 = vrot.slane %v739, 5
      %v775 = vrot.slane %v774, 4
      %v776 = vrot.slane %v740, 5
      %v777 = vsel %vm773, %v775, %v776
      %v778 = vrot.slane %v741, 5
      %v779 = vrot.slane %v778, 4
      %v780 = vrot.slane %v742, 5
      %v781 = vsel %vm773, %v779, %v780
      %v782 = vrot.slane %v743, 5
      %v783 = vrot.slane %v782, 4
      %v784 = vrot.slane %v744, 5
      %v785 = vsel %vm773, %v783, %v784
      %v786 = vrot.slane %v745, 5
      %v787 = vrot.slane %v786, 4
      %v788 = vrot.slane %v746, 5
      %v789 = vsel %vm773, %v787, %v788
      %v790 = vrot.slane %v747, 5
      %v791 = vrot.slane %v790, 4
      %v792 = vrot.slane %v748, 5
      %v793 = vsel %vm773, %v791, %v792
      %v794 = vrot.slane %v749, 5
      %v795 = vrot.slane %v794, 4
      %v796 = vrot.slane %v750, 5
      %v797 = vsel %vm773, %v795, %v796
      %v798 = vrot.slane %v751, 5
      %v799 = vrot.slane %v798, 4
      %v800 = vrot.slane %v752, 5
      %v801 = vsel %vm773, %v799, %v800
      %v802 = vrot.slane %v753, 5
      %v803 = vrot.slane %v802, 4
      %v804 = vrot.slane %v754, 5
      %v805 = vsel %vm773, %v803, %v804
      %814 = vst [vmem:[#allocation3 + $0x8] sm:$0xf] %v777
      %815 = vst [vmem:[#allocation3 + $0x2c] sm:$0xf] %v781
      %816 = vst [vmem:[#allocation3 + $0x50] sm:$0xf] %v785
      %817 = vst [vmem:[#allocation3 + $0x74] sm:$0xf] %v789
      %818 = vst [vmem:[#allocation3 + $0x98] sm:$0xf] %v793
      %819 = vst [vmem:[#allocation3 + $0xbc] sm:$0xf] %v797
      %820 = vst [vmem:[#allocation3 + $0xe0] sm:$0xf] %v801
      %821 = vst [vmem:[#allocation3 + $0x104] sm:$0xf] %v805
      %s822 = scalar_lea.vmem [#allocation2], 8
      %v823 = vld [vmem:[%s822] sm:$0xf]
      %v824 = vld [vmem:[%s822 + $0x8] sm:$0xf]
      %v825 = vld [vmem:[%s822 + $0x10] sm:$0xf]
      %v826 = vld [vmem:[%s822 + $0x18] sm:$0xf]
      %v827 = vld [vmem:[%s822 + $0x20] sm:$0xf]
      %v828 = vld [vmem:[%s822 + $0x28] sm:$0xf]
      %v829 = vld [vmem:[%s822 + $0x30] sm:$0xf]
      %v830 = vld [vmem:[%s822 + $0x38] sm:$0xf]
      %831 = vst [vmem:[#allocation3 + $0xc] sm:$0xf] %v823
      %832 = vst [vmem:[#allocation3 + $0x30] sm:$0xf] %v824
      %833 = vst [vmem:[#allocation3 + $0x54] sm:$0xf] %v825
      %834 = vst [vmem:[#allocation3 + $0x78] sm:$0xf] %v826
      %835 = vst [vmem:[#allocation3 + $0x9c] sm:$0xf] %v827
      %836 = vst [vmem:[#allocation3 + $0xc0] sm:$0xf] %v828
      %837 = vst [vmem:[#allocation3 + $0xe4] sm:$0xf] %v829
      %838 = vst [vmem:[#allocation3 + $0x108] sm:$0xf] %v830
      %v839 = vld [vmem:[%s822] sm:$0xf]
      %v840 = vld [vmem:[%s822 + $0x4] sm:$0x1]
      %v841 = vld [vmem:[%s822 + $0x8] sm:$0xf]
      %v842 = vld [vmem:[%s822 + $0xc] sm:$0x1]
      %v843 = vld [vmem:[%s822 + $0x10] sm:$0xf]
      %v844 = vld [vmem:[%s822 + $0x14] sm:$0x1]
      %v845 = vld [vmem:[%s822 + $0x18] sm:$0xf]
      %v846 = vld [vmem:[%s822 + $0x1c] sm:$0x1]
      %v847 = vld [vmem:[%s822 + $0x20] sm:$0xf]
      %v848 = vld [vmem:[%s822 + $0x24] sm:$0x1]
      %v849 = vld [vmem:[%s822 + $0x28] sm:$0xf]
      %v850 = vld [vmem:[%s822 + $0x2c] sm:$0x1]
      %v851 = vld [vmem:[%s822 + $0x30] sm:$0xf]
      %v852 = vld [vmem:[%s822 + $0x34] sm:$0x1]
      %v853 = vld [vmem:[%s822 + $0x38] sm:$0xf]
      %v854 = vld [vmem:[%s822 + $0x3c] sm:$0x1]
      %v856 = vshrl.u32 %v839, 16
      %v858 = vrot.slane %v856, 4
      %v859 = vshll.u32 %v839, 16
      %v861 = vrot.slane %v859, 5
      %v862 = vor.u32 %v858, %v861
      %v863 = vrot.slane %v862, 4
      %v865 = vshll.u32 %v840, 16
      %v867 = vrot.slane %v865, 5
      %v868 = vsel %vm610, %v863, %v867
      %v870 = vshrl.u32 %v841, 16
      %v872 = vrot.slane %v870, 4
      %v873 = vshll.u32 %v841, 16
      %v875 = vrot.slane %v873, 5
      %v876 = vor.u32 %v872, %v875
      %v877 = vrot.slane %v876, 4
      %v879 = vshll.u32 %v842, 16
      %v881 = vrot.slane %v879, 5
      %v882 = vsel %vm610, %v877, %v881
      %v884 = vshrl.u32 %v843, 16
      %v886 = vrot.slane %v884, 4
      %v887 = vshll.u32 %v843, 16
      %v889 = vrot.slane %v887, 5
      %v890 = vor.u32 %v886, %v889
      %v891 = vrot.slane %v890, 4
      %v893 = vshll.u32 %v844, 16
      %v895 = vrot.slane %v893, 5
      %v896 = vsel %vm610, %v891, %v895
      %v898 = vshrl.u32 %v845, 16
      %v900 = vrot.slane %v898, 4
      %v901 = vshll.u32 %v845, 16
      %v903 = vrot.slane %v901, 5
      %v904 = vor.u32 %v900, %v903
      %v905 = vrot.slane %v904, 4
      %v907 = vshll.u32 %v846, 16
      %v909 = vrot.slane %v907, 5
      %v910 = vsel %vm610, %v905, %v909
      %v912 = vshrl.u32 %v847, 16
      %v914 = vrot.slane %v912, 4
      %v915 = vshll.u32 %v847, 16
      %v917 = vrot.slane %v915, 5
      %v918 = vor.u32 %v914, %v917
      %v919 = vrot.slane %v918, 4
      %v921 = vshll.u32 %v848, 16
      %v923 = vrot.slane %v921, 5
      %v924 = vsel %vm610, %v919, %v923
      %v926 = vshrl.u32 %v849, 16
      %v928 = vrot.slane %v926, 4
      %v929 = vshll.u32 %v849, 16
      %v931 = vrot.slane %v929, 5
      %v932 = vor.u32 %v928, %v931
      %v933 = vrot.slane %v932, 4
      %v935 = vshll.u32 %v850, 16
      %v937 = vrot.slane %v935, 5
      %v938 = vsel %vm610, %v933, %v937
      %v940 = vshrl.u32 %v851, 16
      %v942 = vrot.slane %v940, 4
      %v943 = vshll.u32 %v851, 16
      %v945 = vrot.slane %v943, 5
      %v946 = vor.u32 %v942, %v945
      %v947 = vrot.slane %v946, 4
      %v949 = vshll.u32 %v852, 16
      %v951 = vrot.slane %v949, 5
      %v952 = vsel %vm610, %v947, %v951
      %v954 = vshrl.u32 %v853, 16
      %v956 = vrot.slane %v954, 4
      %v957 = vshll.u32 %v853, 16
      %v959 = vrot.slane %v957, 5
      %v960 = vor.u32 %v956, %v959
      %v961 = vrot.slane %v960, 4
      %v963 = vshll.u32 %v854, 16
      %v965 = vrot.slane %v963, 5
      %v966 = vsel %vm610, %v961, %v965
      %975 = vst [vmem:[#allocation3 + $0x10] sm:$0xf] %v868
      %976 = vst [vmem:[#allocation3 + $0x34] sm:$0xf] %v882
      %977 = vst [vmem:[#allocation3 + $0x58] sm:$0xf] %v896
      %978 = vst [vmem:[#allocation3 + $0x7c] sm:$0xf] %v910
      %979 = vst [vmem:[#allocation3 + $0xa0] sm:$0xf] %v924
      %980 = vst [vmem:[#allocation3 + $0xc4] sm:$0xf] %v938
      %981 = vst [vmem:[#allocation3 + $0xe8] sm:$0xf] %v952
      %982 = vst [vmem:[#allocation3 + $0x10c] sm:$0xf] %v966
      %v983 = vld [vmem:[%s822] sm:$0xe]
      %v984 = vld [vmem:[%s822 + $0x4] sm:$0x1]
      %v985 = vld [vmem:[%s822 + $0x8] sm:$0xe]
      %v986 = vld [vmem:[%s822 + $0xc] sm:$0x1]
      %v987 = vld [vmem:[%s822 + $0x10] sm:$0xe]
      %v988 = vld [vmem:[%s822 + $0x14] sm:$0x1]
      %v989 = vld [vmem:[%s822 + $0x18] sm:$0xe]
      %v990 = vld [vmem:[%s822 + $0x1c] sm:$0x1]
      %v991 = vld [vmem:[%s822 + $0x20] sm:$0xe]
      %v992 = vld [vmem:[%s822 + $0x24] sm:$0x1]
      %v993 = vld [vmem:[%s822 + $0x28] sm:$0xe]
      %v994 = vld [vmem:[%s822 + $0x2c] sm:$0x1]
      %v995 = vld [vmem:[%s822 + $0x30] sm:$0xe]
      %v996 = vld [vmem:[%s822 + $0x34] sm:$0x1]
      %v997 = vld [vmem:[%s822 + $0x38] sm:$0xe]
      %v998 = vld [vmem:[%s822 + $0x3c] sm:$0x1]
      %v1015 = vrot.slane %v983, 5
      %v1016 = vrot.slane %v1015, 4
      %v1017 = vrot.slane %v984, 5
      %v1018 = vsel %vm773, %v1016, %v1017
      %v1019 = vrot.slane %v985, 5
      %v1020 = vrot.slane %v1019, 4
      %v1021 = vrot.slane %v986, 5
      %v1022 = vsel %vm773, %v1020, %v1021
      %v1023 = vrot.slane %v987, 5
      %v1024 = vrot.slane %v1023, 4
      %v1025 = vrot.slane %v988, 5
      %v1026 = vsel %vm773, %v1024, %v1025
      %v1027 = vrot.slane %v989, 5
      %v1028 = vrot.slane %v1027, 4
      %v1029 = vrot.slane %v990, 5
      %v1030 = vsel %vm773, %v1028, %v1029
      %v1031 = vrot.slane %v991, 5
      %v1032 = vrot.slane %v1031, 4
      %v1033 = vrot.slane %v992, 5
      %v1034 = vsel %vm773, %v1032, %v1033
      %v1035 = vrot.slane %v993, 5
      %v1036 = vrot.slane %v1035, 4
      %v1037 = vrot.slane %v994, 5
      %v1038 = vsel %vm773, %v1036, %v1037
      %v1039 = vrot.slane %v995, 5
      %v1040 = vrot.slane %v1039, 4
      %v1041 = vrot.slane %v996, 5
      %v1042 = vsel %vm773, %v1040, %v1041
      %v1043 = vrot.slane %v997, 5
      %v1044 = vrot.slane %v1043, 4
      %v1045 = vrot.slane %v998, 5
      %v1046 = vsel %vm773, %v1044, %v1045
      %1055 = vst [vmem:[#allocation3 + $0x14] sm:$0xf] %v1018
      %1056 = vst [vmem:[#allocation3 + $0x38] sm:$0xf] %v1022
      %1057 = vst [vmem:[#allocation3 + $0x5c] sm:$0xf] %v1026
      %1058 = vst [vmem:[#allocation3 + $0x80] sm:$0xf] %v1030
      %1059 = vst [vmem:[#allocation3 + $0xa4] sm:$0xf] %v1034
      %1060 = vst [vmem:[#allocation3 + $0xc8] sm:$0xf] %v1038
      %1061 = vst [vmem:[#allocation3 + $0xec] sm:$0xf] %v1042
      %1062 = vst [vmem:[#allocation3 + $0x110] sm:$0xf] %v1046
      %s1063 = scalar_lea.vmem [#allocation2], 16
      %v1064 = vld [vmem:[%s1063] sm:$0xf]
      %v1065 = vld [vmem:[%s1063 + $0x8] sm:$0xf]
      %v1066 = vld [vmem:[%s1063 + $0x10] sm:$0xf]
      %v1067 = vld [vmem:[%s1063 + $0x18] sm:$0xf]
      %v1068 = vld [vmem:[%s1063 + $0x20] sm:$0xf]
      %v1069 = vld [vmem:[%s1063 + $0x28] sm:$0xf]
      %v1070 = vld [vmem:[%s1063 + $0x30] sm:$0xf]
      %v1071 = vld [vmem:[%s1063 + $0x38] sm:$0xf]
      %1072 = vst [vmem:[#allocation3 + $0x18] sm:$0xf] %v1064
      %1073 = vst [vmem:[#allocation3 + $0x3c] sm:$0xf] %v1065
      %1074 = vst [vmem:[#allocation3 + $0x60] sm:$0xf] %v1066
      %1075 = vst [vmem:[#allocation3 + $0x84] sm:$0xf] %v1067
      %1076 = vst [vmem:[#allocation3 + $0xa8] sm:$0xf] %v1068
      %1077 = vst [vmem:[#allocation3 + $0xcc] sm:$0xf] %v1069
      %1078 = vst [vmem:[#allocation3 + $0xf0] sm:$0xf] %v1070
      %1079 = vst [vmem:[#allocation3 + $0x114] sm:$0xf] %v1071
      %v1080 = vld [vmem:[%s1063] sm:$0xf]
      %v1081 = vld [vmem:[%s1063 + $0x4] sm:$0x1]
      %v1082 = vld [vmem:[%s1063 + $0x8] sm:$0xf]
      %v1083 = vld [vmem:[%s1063 + $0xc] sm:$0x1]
      %v1084 = vld [vmem:[%s1063 + $0x10] sm:$0xf]
      %v1085 = vld [vmem:[%s1063 + $0x14] sm:$0x1]
      %v1086 = vld [vmem:[%s1063 + $0x18] sm:$0xf]
      %v1087 = vld [vmem:[%s1063 + $0x1c] sm:$0x1]
      %v1088 = vld [vmem:[%s1063 + $0x20] sm:$0xf]
      %v1089 = vld [vmem:[%s1063 + $0x24] sm:$0x1]
      %v1090 = vld [vmem:[%s1063 + $0x28] sm:$0xf]
      %v1091 = vld [vmem:[%s1063 + $0x2c] sm:$0x1]
      %v1092 = vld [vmem:[%s1063 + $0x30] sm:$0xf]
      %v1093 = vld [vmem:[%s1063 + $0x34] sm:$0x1]
      %v1094 = vld [vmem:[%s1063 + $0x38] sm:$0xf]
      %v1095 = vld [vmem:[%s1063 + $0x3c] sm:$0x1]
      %v1097 = vshrl.u32 %v1080, 16
      %v1099 = vrot.slane %v1097, 4
      %v1100 = vshll.u32 %v1080, 16
      %v1102 = vrot.slane %v1100, 5
      %v1103 = vor.u32 %v1099, %v1102
      %v1104 = vrot.slane %v1103, 4
      %v1106 = vshll.u32 %v1081, 16
      %v1108 = vrot.slane %v1106, 5
      %v1109 = vsel %vm610, %v1104, %v1108
      %v1111 = vshrl.u32 %v1082, 16
      %v1113 = vrot.slane %v1111, 4
      %v1114 = vshll.u32 %v1082, 16
      %v1116 = vrot.slane %v1114, 5
      %v1117 = vor.u32 %v1113, %v1116
      %v1118 = vrot.slane %v1117, 4
      %v1120 = vshll.u32 %v1083, 16
      %v1122 = vrot.slane %v1120, 5
      %v1123 = vsel %vm610, %v1118, %v1122
      %v1125 = vshrl.u32 %v1084, 16
      %v1127 = vrot.slane %v1125, 4
      %v1128 = vshll.u32 %v1084, 16
      %v1130 = vrot.slane %v1128, 5
      %v1131 = vor.u32 %v1127, %v1130
      %v1132 = vrot.slane %v1131, 4
      %v1134 = vshll.u32 %v1085, 16
      %v1136 = vrot.slane %v1134, 5
      %v1137 = vsel %vm610, %v1132, %v1136
      %v1139 = vshrl.u32 %v1086, 16
      %v1141 = vrot.slane %v1139, 4
      %v1142 = vshll.u32 %v1086, 16
      %v1144 = vrot.slane %v1142, 5
      %v1145 = vor.u32 %v1141, %v1144
      %v1146 = vrot.slane %v1145, 4
      %v1148 = vshll.u32 %v1087, 16
      %v1150 = vrot.slane %v1148, 5
      %v1151 = vsel %vm610, %v1146, %v1150
      %v1153 = vshrl.u32 %v1088, 16
      %v1155 = vrot.slane %v1153, 4
      %v1156 = vshll.u32 %v1088, 16
      %v1158 = vrot.slane %v1156, 5
      %v1159 = vor.u32 %v1155, %v1158
      %v1160 = vrot.slane %v1159, 4
      %v1162 = vshll.u32 %v1089, 16
      %v1164 = vrot.slane %v1162, 5
      %v1165 = vsel %vm610, %v1160, %v1164
      %v1167 = vshrl.u32 %v1090, 16
      %v1169 = vrot.slane %v1167, 4
      %v1170 = vshll.u32 %v1090, 16
      %v1172 = vrot.slane %v1170, 5
      %v1173 = vor.u32 %v1169, %v1172
      %v1174 = vrot.slane %v1173, 4
      %v1176 = vshll.u32 %v1091, 16
      %v1178 = vrot.slane %v1176, 5
      %v1179 = vsel %vm610, %v1174, %v1178
      %v1181 = vshrl.u32 %v1092, 16
      %v1183 = vrot.slane %v1181, 4
      %v1184 = vshll.u32 %v1092, 16
      %v1186 = vrot.slane %v1184, 5
      %v1187 = vor.u32 %v1183, %v1186
      %v1188 = vrot.slane %v1187, 4
      %v1190 = vshll.u32 %v1093, 16
      %v1192 = vrot.slane %v1190, 5
      %v1193 = vsel %vm610, %v1188, %v1192
      %v1195 = vshrl.u32 %v1094, 16
      %v1197 = vrot.slane %v1195, 4
      %v1198 = vshll.u32 %v1094, 16
      %v1200 = vrot.slane %v1198, 5
      %v1201 = vor.u32 %v1197, %v1200
      %v1202 = vrot.slane %v1201, 4
      %v1204 = vshll.u32 %v1095, 16
      %v1206 = vrot.slane %v1204, 5
      %v1207 = vsel %vm610, %v1202, %v1206
      %1216 = vst [vmem:[#allocation3 + $0x1c] sm:$0xf] %v1109
      %1217 = vst [vmem:[#allocation3 + $0x40] sm:$0xf] %v1123
      %1218 = vst [vmem:[#allocation3 + $0x64] sm:$0xf] %v1137
      %1219 = vst [vmem:[#allocation3 + $0x88] sm:$0xf] %v1151
      %1220 = vst [vmem:[#allocation3 + $0xac] sm:$0xf] %v1165
      %1221 = vst [vmem:[#allocation3 + $0xd0] sm:$0xf] %v1179
      %1222 = vst [vmem:[#allocation3 + $0xf4] sm:$0xf] %v1193
      %1223 = vst [vmem:[#allocation3 + $0x118] sm:$0xf] %v1207
      %v1224 = vld [vmem:[%s1063] sm:$0xe]
      %v1225 = vld [vmem:[%s1063 + $0x4] sm:$0x1]
      %v1226 = vld [vmem:[%s1063 + $0x8] sm:$0xe]
      %v1227 = vld [vmem:[%s1063 + $0xc] sm:$0x1]
      %v1228 = vld [vmem:[%s1063 + $0x10] sm:$0xe]
      %v1229 = vld [vmem:[%s1063 + $0x14] sm:$0x1]
      %v1230 = vld [vmem:[%s1063 + $0x18] sm:$0xe]
      %v1231 = vld [vmem:[%s1063 + $0x1c] sm:$0x1]
      %v1232 = vld [vmem:[%s1063 + $0x20] sm:$0xe]
      %v1233 = vld [vmem:[%s1063 + $0x24] sm:$0x1]
      %v1234 = vld [vmem:[%s1063 + $0x28] sm:$0xe]
      %v1235 = vld [vmem:[%s1063 + $0x2c] sm:$0x1]
      %v1236 = vld [vmem:[%s1063 + $0x30] sm:$0xe]
      %v1237 = vld [vmem:[%s1063 + $0x34] sm:$0x1]
      %v1238 = vld [vmem:[%s1063 + $0x38] sm:$0xe]
      %v1239 = vld [vmem:[%s1063 + $0x3c] sm:$0x1]
      %v1256 = vrot.slane %v1224, 5
      %v1257 = vrot.slane %v1256, 4
      %v1258 = vrot.slane %v1225, 5
      %v1259 = vsel %vm773, %v1257, %v1258
      %v1260 = vrot.slane %v1226, 5
      %v1261 = vrot.slane %v1260, 4
      %v1262 = vrot.slane %v1227, 5
      %v1263 = vsel %vm773, %v1261, %v1262
      %v1264 = vrot.slane %v1228, 5
      %v1265 = vrot.slane %v1264, 4
      %v1266 = vrot.slane %v1229, 5
      %v1267 = vsel %vm773, %v1265, %v1266
      %v1268 = vrot.slane %v1230, 5
      %v1269 = vrot.slane %v1268, 4
      %v1270 = vrot.slane %v1231, 5
      %v1271 = vsel %vm773, %v1269, %v1270
      %v1272 = vrot.slane %v1232, 5
      %v1273 = vrot.slane %v1272, 4
      %v1274 = vrot.slane %v1233, 5
      %v1275 = vsel %vm773, %v1273, %v1274
      %v1276 = vrot.slane %v1234, 5
      %v1277 = vrot.slane %v1276, 4
      %v1278 = vrot.slane %v1235, 5
      %v1279 = vsel %vm773, %v1277, %v1278
      %v1280 = vrot.slane %v1236, 5
      %v1281 = vrot.slane %v1280, 4
      %v1282 = vrot.slane %v1237, 5
      %v1283 = vsel %vm773, %v1281, %v1282
      %v1284 = vrot.slane %v1238, 5
      %v1285 = vrot.slane %v1284, 4
      %v1286 = vrot.slane %v1239, 5
      %v1287 = vsel %vm773, %v1285, %v1286
      %1296 = vst [vmem:[#allocation3 + $0x20] sm:$0xf] %v1259
      %1297 = vst [vmem:[#allocation3 + $0x44] sm:$0xf] %v1263
      %1298 = vst [vmem:[#allocation3 + $0x68] sm:$0xf] %v1267
      %1299 = vst [vmem:[#allocation3 + $0x8c] sm:$0xf] %v1271
      %1300 = vst [vmem:[#allocation3 + $0xb0] sm:$0xf] %v1275
      %1301 = vst [vmem:[#allocation3 + $0xd4] sm:$0xf] %v1279
      %1302 = vst [vmem:[#allocation3 + $0xf8] sm:$0xf] %v1283
      %1303 = vst [vmem:[#allocation3 + $0x11c] sm:$0xf] %v1287
      %v1304 = vld [vmem:[#allocation3] sm:$0xff]
      %v1305 = vld [vmem:[#allocation3 + $0x8] sm:$0xff]
      %v1306 = vld [vmem:[#allocation3 + $0x10] sm:$0xff]
      %v1307 = vld [vmem:[#allocation3 + $0x18] sm:$0xff]
      %v1308 = vld [vmem:[#allocation3 + $0x20] sm:$0xf]
      %v1309 = vld [vmem:[#allocation3 + $0x24] sm:$0xff]
      %v1310 = vld [vmem:[#allocation3 + $0x2c] sm:$0xff]
      %v1311 = vld [vmem:[#allocation3 + $0x34] sm:$0xff]
      %v1312 = vld [vmem:[#allocation3 + $0x3c] sm:$0xff]
      %v1313 = vld [vmem:[#allocation3 + $0x44] sm:$0xf]
      %v1314 = vld [vmem:[#allocation3 + $0x48] sm:$0xff]
      %v1315 = vld [vmem:[#allocation3 + $0x50] sm:$0xff]
      %v1316 = vld [vmem:[#allocation3 + $0x58] sm:$0xff]
      %v1317 = vld [vmem:[#allocation3 + $0x60] sm:$0xff]
      %v1318 = vld [vmem:[#allocation3 + $0x68] sm:$0xf]
      %v1319 = vld [vmem:[#allocation3 + $0x6c] sm:$0xff]
      %v1320 = vld [vmem:[#allocation3 + $0x74] sm:$0xff]
      %v1321 = vld [vmem:[#allocation3 + $0x7c] sm:$0xff]
      %v1322 = vld [vmem:[#allocation3 + $0x84] sm:$0xff]
      %v1323 = vld [vmem:[#allocation3 + $0x8c] sm:$0xf]
      %v1324 = vld [vmem:[#allocation3 + $0x90] sm:$0xff]
      %v1325 = vld [vmem:[#allocation3 + $0x98] sm:$0xff]
      %v1326 = vld [vmem:[#allocation3 + $0xa0] sm:$0xff]
      %v1327 = vld [vmem:[#allocation3 + $0xa8] sm:$0xff]
      %v1328 = vld [vmem:[#allocation3 + $0xb0] sm:$0xf]
      %v1329 = vld [vmem:[#allocation3 + $0xb4] sm:$0xff]
      %v1330 = vld [vmem:[#allocation3 + $0xbc] sm:$0xff]
      %v1331 = vld [vmem:[#allocation3 + $0xc4] sm:$0xff]
      %v1332 = vld [vmem:[#allocation3 + $0xcc] sm:$0xff]
      %v1333 = vld [vmem:[#allocation3 + $0xd4] sm:$0xf]
      %v1334 = vld [vmem:[#allocation3 + $0xd8] sm:$0xff]
      %v1335 = vld [vmem:[#allocation3 + $0xe0] sm:$0xff]
      %v1336 = vld [vmem:[#allocation3 + $0xe8] sm:$0xff]
      %v1337 = vld [vmem:[#allocation3 + $0xf0] sm:$0xff]
      %v1338 = vld [vmem:[#allocation3 + $0xf8] sm:$0xf]
      %v1339 = vld [vmem:[#allocation3 + $0xfc] sm:$0xff]
      %v1340 = vld [vmem:[#allocation3 + $0x104] sm:$0xff]
      %v1341 = vld [vmem:[#allocation3 + $0x10c] sm:$0xff]
      %v1342 = vld [vmem:[#allocation3 + $0x114] sm:$0xff]
      %v1343 = vld [vmem:[#allocation3 + $0x11c] sm:$0xf]
      %v1344 = vld [vmem:[%s3] sm:$0xf]
      %v1345 = vld [vmem:[%s3 + $0x4] sm:$0xf]
      %v1346 = vld [vmem:[%s3 + $0x8] sm:$0xf]
      %v1347 = vld [vmem:[%s3 + $0xc] sm:$0xf]
      %v1348 = vld [vmem:[%s3 + $0x10] sm:$0xf]
      %v1349 = vld [vmem:[%s3 + $0x14] sm:$0xf]
      %v1350 = vld [vmem:[%s3 + $0x18] sm:$0xf]
      %v1351 = vld [vmem:[%s3 + $0x1c] sm:$0xf]
      %v1352 = vld [vmem:[%s3 + $0x20] sm:$0xf]
      %v1353 = vld [vmem:[%s3 + $0x24] sm:$0xf]
      %v1354 = vld [vmem:[%s3 + $0x28] sm:$0xf]
      %v1355 = vld [vmem:[%s3 + $0x2c] sm:$0xf]
      %v1356 = vld [vmem:[%s3 + $0x30] sm:$0xf]
      %v1357 = vld [vmem:[%s3 + $0x34] sm:$0xf]
      %v1358 = vld [vmem:[%s3 + $0x38] sm:$0xf]
      %v1359 = vld [vmem:[%s3 + $0x3c] sm:$0xf]
      %v1360 = vld [vmem:[%s3 + $0x40] sm:$0xf]
      %v1361 = vld [vmem:[%s3 + $0x44] sm:$0xf]
      %v1362 = vld [vmem:[%s3 + $0x48] sm:$0xf]
      %v1363 = vld [vmem:[%s3 + $0x4c] sm:$0xf]
      %v1364 = vld [vmem:[%s3 + $0x50] sm:$0xf]
      %v1365 = vld [vmem:[%s3 + $0x54] sm:$0xf]
      %v1366 = vld [vmem:[%s3 + $0x58] sm:$0xf]
      %v1367 = vld [vmem:[%s3 + $0x5c] sm:$0xf]
      %v1368 = vld [vmem:[%s3 + $0x60] sm:$0xf]
      %v1369 = vld [vmem:[%s3 + $0x64] sm:$0xf]
      %v1370 = vld [vmem:[%s3 + $0x68] sm:$0xf]
      %v1371 = vld [vmem:[%s3 + $0x6c] sm:$0xf]
      %v1372 = vld [vmem:[%s3 + $0x70] sm:$0xf]
      %v1373 = vld [vmem:[%s3 + $0x74] sm:$0xf]
      %v1374 = vld [vmem:[%s3 + $0x78] sm:$0xf]
      %v1375 = vld [vmem:[%s3 + $0x7c] sm:$0xf]
      %v1376 = vld [vmem:[%s3 + $0x80] sm:$0xf]
      %v1377 = vld [vmem:[%s3 + $0x84] sm:$0xf]
      %v1378 = vld [vmem:[%s3 + $0x88] sm:$0xf]
      %v1379 = vld [vmem:[%s3 + $0x8c] sm:$0xf]
      %v1380 = vld [vmem:[%s3 + $0x90] sm:$0xf]
      %v1381 = vld [vmem:[%s3 + $0x94] sm:$0xf]
      %v1382 = vld [vmem:[%s3 + $0x98] sm:$0xf]
      %v1383 = vld [vmem:[%s3 + $0x9c] sm:$0xf]
      %v1384 = vld [vmem:[%s3 + $0xa0] sm:$0xf]
      %v1385 = vld [vmem:[%s3 + $0xa4] sm:$0xf]
      %v1386 = vld [vmem:[%s3 + $0xa8] sm:$0xf]
      %v1387 = vld [vmem:[%s3 + $0xac] sm:$0xf]
      %v1388 = vld [vmem:[%s3 + $0xb0] sm:$0xf]
      %v1389 = vld [vmem:[%s3 + $0xb4] sm:$0xf]
      %v1390 = vld [vmem:[%s3 + $0xb8] sm:$0xf]
      %v1391 = vld [vmem:[%s3 + $0xbc] sm:$0xf]
      %v1392 = vld [vmem:[%s3 + $0xc0] sm:$0xf]
      %v1393 = vld [vmem:[%s3 + $0xc4] sm:$0xf]
      %v1394 = vld [vmem:[%s3 + $0xc8] sm:$0xf]
      %v1395 = vld [vmem:[%s3 + $0xcc] sm:$0xf]
      %v1396 = vld [vmem:[%s3 + $0xd0] sm:$0xf]
      %v1397 = vld [vmem:[%s3 + $0xd4] sm:$0xf]
      %v1398 = vld [vmem:[%s3 + $0xd8] sm:$0xf]
      %v1399 = vld [vmem:[%s3 + $0xdc] sm:$0xf]
      %v1400 = vld [vmem:[%s3 + $0xe0] sm:$0xf]
      %v1401 = vld [vmem:[%s3 + $0xe4] sm:$0xf]
      %v1402 = vld [vmem:[%s3 + $0xe8] sm:$0xf]
      %v1403 = vld [vmem:[%s3 + $0xec] sm:$0xf]
      %v1404 = vld [vmem:[%s3 + $0xf0] sm:$0xf]
      %v1405 = vld [vmem:[%s3 + $0xf4] sm:$0xf]
      %v1406 = vld [vmem:[%s3 + $0xf8] sm:$0xf]
      %v1407 = vld [vmem:[%s3 + $0xfc] sm:$0xf]
      %v1408 = vld [vmem:[%s3 + $0x100] sm:$0xf]
      %v1409 = vld [vmem:[%s3 + $0x104] sm:$0xf]
      %v1410 = vld [vmem:[%s3 + $0x108] sm:$0xf]
      %v1411 = vld [vmem:[%s3 + $0x10c] sm:$0xf]
      %v1412 = vld [vmem:[%s3 + $0x110] sm:$0xf]
      %v1413 = vld [vmem:[%s3 + $0x114] sm:$0xf]
      %v1414 = vld [vmem:[%s3 + $0x118] sm:$0xf]
      %v1415 = vld [vmem:[%s3 + $0x11c] sm:$0xf]
      %v1416 = vld [vmem:[%s3 + $0x120] sm:$0xf]
      %v1417 = vld [vmem:[%s3 + $0x124] sm:$0xf]
      %v1418 = vld [vmem:[%s3 + $0x128] sm:$0xf]
      %v1419 = vld [vmem:[%s3 + $0x12c] sm:$0xf]
      %v1420 = vld [vmem:[%s3 + $0x130] sm:$0xf]
      %v1421 = vld [vmem:[%s3 + $0x134] sm:$0xf]
      %v1422 = vld [vmem:[%s3 + $0x138] sm:$0xf]
      %v1423 = vld [vmem:[%s3 + $0x13c] sm:$0xf]
      %v1424 = vld [vmem:[%s3 + $0x140] sm:$0xf]
      %v1425 = vld [vmem:[%s3 + $0x144] sm:$0xf]
      %v1426 = vld [vmem:[%s3 + $0x148] sm:$0xf]
      %v1427 = vld [vmem:[%s3 + $0x14c] sm:$0xf]
      %v1428 = vld [vmem:[%s3 + $0x150] sm:$0xf]
      %v1429 = vld [vmem:[%s3 + $0x154] sm:$0xf]
      %v1430 = vld [vmem:[%s3 + $0x158] sm:$0xf]
      %v1431 = vld [vmem:[%s3 + $0x15c] sm:$0xf]
      %v1432 = vld [vmem:[%s3 + $0x160] sm:$0xf]
      %v1433 = vld [vmem:[%s3 + $0x164] sm:$0xf]
      %v1434 = vld [vmem:[%s3 + $0x168] sm:$0xf]
      %v1435 = vld [vmem:[%s3 + $0x16c] sm:$0xf]
      %v1436 = vld [vmem:[%s3 + $0x170] sm:$0xf]
      %v1437 = vld [vmem:[%s3 + $0x174] sm:$0xf]
      %v1438 = vld [vmem:[%s3 + $0x178] sm:$0xf]
      %v1439 = vld [vmem:[%s3 + $0x17c] sm:$0xf]
      %v1440 = vld [vmem:[%s3 + $0x180] sm:$0xf]
      %v1441 = vld [vmem:[%s3 + $0x184] sm:$0xf]
      %v1442 = vld [vmem:[%s3 + $0x188] sm:$0xf]
      %v1443 = vld [vmem:[%s3 + $0x18c] sm:$0xf]
      %v1444 = vld [vmem:[%s3 + $0x190] sm:$0xf]
      %v1445 = vld [vmem:[%s3 + $0x194] sm:$0xf]
      %v1446 = vld [vmem:[%s3 + $0x198] sm:$0xf]
      %v1447 = vld [vmem:[%s3 + $0x19c] sm:$0xf]
      %v1448 = vld [vmem:[%s3 + $0x1a0] sm:$0xf]
      %v1449 = vld [vmem:[%s3 + $0x1a4] sm:$0xf]
      %v1450 = vld [vmem:[%s3 + $0x1a8] sm:$0xf]
      %v1451 = vld [vmem:[%s3 + $0x1ac] sm:$0xf]
      %v1452 = vld [vmem:[%s3 + $0x1b0] sm:$0xf]
      %v1453 = vld [vmem:[%s3 + $0x1b4] sm:$0xf]
      %v1454 = vld [vmem:[%s3 + $0x1b8] sm:$0xf]
      %v1455 = vld [vmem:[%s3 + $0x1bc] sm:$0xf]
      %v1456 = vld [vmem:[%s3 + $0x1c0] sm:$0xf]
      %v1457 = vld [vmem:[%s3 + $0x1c4] sm:$0xf]
      %v1458 = vld [vmem:[%s3 + $0x1c8] sm:$0xf]
      %v1459 = vld [vmem:[%s3 + $0x1cc] sm:$0xf]
      %v1460 = vld [vmem:[%s3 + $0x1d0] sm:$0xf]
      %v1461 = vld [vmem:[%s3 + $0x1d4] sm:$0xf]
      %v1462 = vld [vmem:[%s3 + $0x1d8] sm:$0xf]
      %v1463 = vld [vmem:[%s3 + $0x1dc] sm:$0xf]
      %v1464 = vld [vmem:[%s3 + $0x1e0] sm:$0xf]
      %v1465 = vld [vmem:[%s3 + $0x1e4] sm:$0xf]
      %v1466 = vld [vmem:[%s3 + $0x1e8] sm:$0xf]
      %v1467 = vld [vmem:[%s3 + $0x1ec] sm:$0xf]
      %v1468 = vld [vmem:[%s3 + $0x1f0] sm:$0xf]
      %v1469 = vld [vmem:[%s3 + $0x1f4] sm:$0xf]
      %v1470 = vld [vmem:[%s3 + $0x1f8] sm:$0xf]
      %v1471 = vld [vmem:[%s3 + $0x1fc] sm:$0xf]
      %v1472 = vld [vmem:[%s3 + $0x200] sm:$0xf]
      %v1473 = vld [vmem:[%s3 + $0x204] sm:$0xf]
      %v1474 = vld [vmem:[%s3 + $0x208] sm:$0xf]
      %v1475 = vld [vmem:[%s3 + $0x20c] sm:$0xf]
      %v1476 = vld [vmem:[%s3 + $0x210] sm:$0xf]
      %v1477 = vld [vmem:[%s3 + $0x214] sm:$0xf]
      %v1478 = vld [vmem:[%s3 + $0x218] sm:$0xf]
      %v1479 = vld [vmem:[%s3 + $0x21c] sm:$0xf]
      %v1480 = vld [vmem:[%s3 + $0x220] sm:$0xf]
      %v1481 = vld [vmem:[%s3 + $0x224] sm:$0xf]
      %v1482 = vld [vmem:[%s3 + $0x228] sm:$0xf]
      %v1483 = vld [vmem:[%s3 + $0x22c] sm:$0xf]
      %v1484 = vld [vmem:[%s3 + $0x230] sm:$0xf]
      %v1485 = vld [vmem:[%s3 + $0x234] sm:$0xf]
      %v1486 = vld [vmem:[%s3 + $0x238] sm:$0xf]
      %v1487 = vld [vmem:[%s3 + $0x23c] sm:$0xf]
      %v1528 = vunpack.c.l.b16 %v1304
      %v1529 = vunpack.c.h.b16 %v1304
      %v1530 = vunpack.c.l.b16 %v1305
      %v1531 = vunpack.c.h.b16 %v1305
      %v1532 = vunpack.c.l.b16 %v1306
      %v1533 = vunpack.c.h.b16 %v1306
      %v1534 = vunpack.c.l.b16 %v1307
      %v1535 = vunpack.c.h.b16 %v1307
      %v1536 = vunpack.c.l.b16 %v1308
      %v1537 = vunpack.c.l.b16 %v1309
      %v1538 = vunpack.c.h.b16 %v1309
      %v1539 = vunpack.c.l.b16 %v1310
      %v1540 = vunpack.c.h.b16 %v1310
      %v1541 = vunpack.c.l.b16 %v1311
      %v1542 = vunpack.c.h.b16 %v1311
      %v1543 = vunpack.c.l.b16 %v1312
      %v1544 = vunpack.c.h.b16 %v1312
      %v1545 = vunpack.c.l.b16 %v1313
      %v1546 = vunpack.c.l.b16 %v1314
      %v1547 = vunpack.c.h.b16 %v1314
      %v1548 = vunpack.c.l.b16 %v1315
      %v1549 = vunpack.c.h.b16 %v1315
      %v1550 = vunpack.c.l.b16 %v1316
      %v1551 = vunpack.c.h.b16 %v1316
      %v1552 = vunpack.c.l.b16 %v1317
      %v1553 = vunpack.c.h.b16 %v1317
      %v1554 = vunpack.c.l.b16 %v1318
      %v1555 = vunpack.c.l.b16 %v1319
      %v1556 = vunpack.c.h.b16 %v1319
      %v1557 = vunpack.c.l.b16 %v1320
      %v1558 = vunpack.c.h.b16 %v1320
      %v1559 = vunpack.c.l.b16 %v1321
      %v1560 = vunpack.c.h.b16 %v1321
      %v1561 = vunpack.c.l.b16 %v1322
      %v1562 = vunpack.c.h.b16 %v1322
      %v1563 = vunpack.c.l.b16 %v1323
      %v1564 = vunpack.c.l.b16 %v1324
      %v1565 = vunpack.c.h.b16 %v1324
      %v1566 = vunpack.c.l.b16 %v1325
      %v1567 = vunpack.c.h.b16 %v1325
      %v1568 = vunpack.c.l.b16 %v1326
      %v1569 = vunpack.c.h.b16 %v1326
      %v1570 = vunpack.c.l.b16 %v1327
      %v1571 = vunpack.c.h.b16 %v1327
      %v1572 = vunpack.c.l.b16 %v1328
      %v1573 = vunpack.c.l.b16 %v1329
      %v1574 = vunpack.c.h.b16 %v1329
      %v1575 = vunpack.c.l.b16 %v1330
      %v1576 = vunpack.c.h.b16 %v1330
      %v1577 = vunpack.c.l.b16 %v1331
      %v1578 = vunpack.c.h.b16 %v1331
      %v1579 = vunpack.c.l.b16 %v1332
      %v1580 = vunpack.c.h.b16 %v1332
      %v1581 = vunpack.c.l.b16 %v1333
      %v1582 = vunpack.c.l.b16 %v1334
      %v1583 = vunpack.c.h.b16 %v1334
      %v1584 = vunpack.c.l.b16 %v1335
      %v1585 = vunpack.c.h.b16 %v1335
      %v1586 = vunpack.c.l.b16 %v1336
      %v1587 = vunpack.c.h.b16 %v1336
      %v1588 = vunpack.c.l.b16 %v1337
      %v1589 = vunpack.c.h.b16 %v1337
      %v1590 = vunpack.c.l.b16 %v1338
      %v1591 = vunpack.c.l.b16 %v1339
      %v1592 = vunpack.c.h.b16 %v1339
      %v1593 = vunpack.c.l.b16 %v1340
      %v1594 = vunpack.c.h.b16 %v1340
      %v1595 = vunpack.c.l.b16 %v1341
      %v1596 = vunpack.c.h.b16 %v1341
      %v1597 = vunpack.c.l.b16 %v1342
      %v1598 = vunpack.c.h.b16 %v1342
      %v1599 = vunpack.c.l.b16 %v1343
      %v1600 = vpack.c.b16 %v1537, %v1528
      %v1601 = vpack.c.b16 %v1538, %v1529
      %v1602 = vpack.c.b16 %v1539, %v1530
      %v1603 = vpack.c.b16 %v1540, %v1531
      %v1604 = vpack.c.b16 %v1541, %v1532
      %v1605 = vpack.c.b16 %v1542, %v1533
      %v1606 = vpack.c.b16 %v1543, %v1534
      %v1607 = vpack.c.b16 %v1544, %v1535
      %v1608 = vpack.c.b16 %v1545, %v1536
      %v1609 = vpack.c.b16 %v1555, %v1546
      %v1610 = vpack.c.b16 %v1556, %v1547
      %v1611 = vpack.c.b16 %v1557, %v1548
      %v1612 = vpack.c.b16 %v1558, %v1549
      %v1613 = vpack.c.b16 %v1559, %v1550
      %v1614 = vpack.c.b16 %v1560, %v1551
      %v1615 = vpack.c.b16 %v1561, %v1552
      %v1616 = vpack.c.b16 %v1562, %v1553
      %v1617 = vpack.c.b16 %v1563, %v1554
      %v1618 = vpack.c.b16 %v1573, %v1564
      %v1619 = vpack.c.b16 %v1574, %v1565
      %v1620 = vpack.c.b16 %v1575, %v1566
      %v1621 = vpack.c.b16 %v1576, %v1567
      %v1622 = vpack.c.b16 %v1577, %v1568
      %v1623 = vpack.c.b16 %v1578, %v1569
      %v1624 = vpack.c.b16 %v1579, %v1570
      %v1625 = vpack.c.b16 %v1580, %v1571
      %v1626 = vpack.c.b16 %v1581, %v1572
      %v1627 = vpack.c.b16 %v1591, %v1582
      %v1628 = vpack.c.b16 %v1592, %v1583
      %v1629 = vpack.c.b16 %v1593, %v1584
      %v1630 = vpack.c.b16 %v1594, %v1585
      %v1631 = vpack.c.b16 %v1595, %v1586
      %v1632 = vpack.c.b16 %v1596, %v1587
      %v1633 = vpack.c.b16 %v1597, %v1588
      %v1634 = vpack.c.b16 %v1598, %v1589
      %v1635 = vpack.c.b16 %v1599, %v1590
      %v1816 = vunpack.c.l.b16 %v1344
      %v1817 = vunpack.c.l.b16 %v1345
      %v1818 = vunpack.c.l.b16 %v1346
      %v1819 = vunpack.c.l.b16 %v1347
      %v1820 = vunpack.c.l.b16 %v1348
      %v1821 = vunpack.c.l.b16 %v1349
      %v1822 = vunpack.c.l.b16 %v1350
      %v1823 = vunpack.c.l.b16 %v1351
      %v1824 = vunpack.c.l.b16 %v1352
      %v1825 = vunpack.c.l.b16 %v1353
      %v1826 = vunpack.c.l.b16 %v1354
      %v1827 = vunpack.c.l.b16 %v1355
      %v1828 = vunpack.c.l.b16 %v1356
      %v1829 = vunpack.c.l.b16 %v1357
      %v1830 = vunpack.c.l.b16 %v1358
      %v1831 = vunpack.c.l.b16 %v1359
      %v1832 = vunpack.c.l.b16 %v1360
      %v1833 = vunpack.c.l.b16 %v1361
      %v1834 = vunpack.c.l.b16 %v1362
      %v1835 = vunpack.c.l.b16 %v1363
      %v1836 = vunpack.c.l.b16 %v1364
      %v1837 = vunpack.c.l.b16 %v1365
      %v1838 = vunpack.c.l.b16 %v1366
      %v1839 = vunpack.c.l.b16 %v1367
      %v1840 = vunpack.c.l.b16 %v1368
      %v1841 = vunpack.c.l.b16 %v1369
      %v1842 = vunpack.c.l.b16 %v1370
      %v1843 = vunpack.c.l.b16 %v1371
      %v1844 = vunpack.c.l.b16 %v1372
      %v1845 = vunpack.c.l.b16 %v1373
      %v1846 = vunpack.c.l.b16 %v1374
      %v1847 = vunpack.c.l.b16 %v1375
      %v1848 = vunpack.c.l.b16 %v1376
      %v1849 = vunpack.c.l.b16 %v1377
      %v1850 = vunpack.c.l.b16 %v1378
      %v1851 = vunpack.c.l.b16 %v1379
      %v1852 = vunpack.c.l.b16 %v1380
      %v1853 = vunpack.c.l.b16 %v1381
      %v1854 = vunpack.c.l.b16 %v1382
      %v1855 = vunpack.c.l.b16 %v1383
      %v1856 = vunpack.c.l.b16 %v1384
      %v1857 = vunpack.c.l.b16 %v1385
      %v1858 = vunpack.c.l.b16 %v1386
      %v1859 = vunpack.c.l.b16 %v1387
      %v1860 = vunpack.c.l.b16 %v1388
      %v1861 = vunpack.c.l.b16 %v1389
      %v1862 = vunpack.c.l.b16 %v1390
      %v1863 = vunpack.c.l.b16 %v1391
      %v1864 = vunpack.c.l.b16 %v1392
      %v1865 = vunpack.c.l.b16 %v1393
      %v1866 = vunpack.c.l.b16 %v1394
      %v1867 = vunpack.c.l.b16 %v1395
      %v1868 = vunpack.c.l.b16 %v1396
      %v1869 = vunpack.c.l.b16 %v1397
      %v1870 = vunpack.c.l.b16 %v1398
      %v1871 = vunpack.c.l.b16 %v1399
      %v1872 = vunpack.c.l.b16 %v1400
      %v1873 = vunpack.c.l.b16 %v1401
      %v1874 = vunpack.c.l.b16 %v1402
      %v1875 = vunpack.c.l.b16 %v1403
      %v1876 = vunpack.c.l.b16 %v1404
      %v1877 = vunpack.c.l.b16 %v1405
      %v1878 = vunpack.c.l.b16 %v1406
      %v1879 = vunpack.c.l.b16 %v1407
      %v1880 = vunpack.c.l.b16 %v1408
      %v1881 = vunpack.c.l.b16 %v1409
      %v1882 = vunpack.c.l.b16 %v1410
      %v1883 = vunpack.c.l.b16 %v1411
      %v1884 = vunpack.c.l.b16 %v1412
      %v1885 = vunpack.c.l.b16 %v1413
      %v1886 = vunpack.c.l.b16 %v1414
      %v1887 = vunpack.c.l.b16 %v1415
      %v1888 = vunpack.c.l.b16 %v1416
      %v1889 = vunpack.c.l.b16 %v1417
      %v1890 = vunpack.c.l.b16 %v1418
      %v1891 = vunpack.c.l.b16 %v1419
      %v1892 = vunpack.c.l.b16 %v1420
      %v1893 = vunpack.c.l.b16 %v1421
      %v1894 = vunpack.c.l.b16 %v1422
      %v1895 = vunpack.c.l.b16 %v1423
      %v1896 = vunpack.c.l.b16 %v1424
      %v1897 = vunpack.c.l.b16 %v1425
      %v1898 = vunpack.c.l.b16 %v1426
      %v1899 = vunpack.c.l.b16 %v1427
      %v1900 = vunpack.c.l.b16 %v1428
      %v1901 = vunpack.c.l.b16 %v1429
      %v1902 = vunpack.c.l.b16 %v1430
      %v1903 = vunpack.c.l.b16 %v1431
      %v1904 = vunpack.c.l.b16 %v1432
      %v1905 = vunpack.c.l.b16 %v1433
      %v1906 = vunpack.c.l.b16 %v1434
      %v1907 = vunpack.c.l.b16 %v1435
      %v1908 = vunpack.c.l.b16 %v1436
      %v1909 = vunpack.c.l.b16 %v1437
      %v1910 = vunpack.c.l.b16 %v1438
      %v1911 = vunpack.c.l.b16 %v1439
      %v1912 = vunpack.c.l.b16 %v1440
      %v1913 = vunpack.c.l.b16 %v1441
      %v1914 = vunpack.c.l.b16 %v1442
      %v1915 = vunpack.c.l.b16 %v1443
      %v1916 = vunpack.c.l.b16 %v1444
      %v1917 = vunpack.c.l.b16 %v1445
      %v1918 = vunpack.c.l.b16 %v1446
      %v1919 = vunpack.c.l.b16 %v1447
      %v1920 = vunpack.c.l.b16 %v1448
      %v1921 = vunpack.c.l.b16 %v1449
      %v1922 = vunpack.c.l.b16 %v1450
      %v1923 = vunpack.c.l.b16 %v1451
      %v1924 = vunpack.c.l.b16 %v1452
      %v1925 = vunpack.c.l.b16 %v1453
      %v1926 = vunpack.c.l.b16 %v1454
      %v1927 = vunpack.c.l.b16 %v1455
      %v1928 = vunpack.c.l.b16 %v1456
      %v1929 = vunpack.c.l.b16 %v1457
      %v1930 = vunpack.c.l.b16 %v1458
      %v1931 = vunpack.c.l.b16 %v1459
      %v1932 = vunpack.c.l.b16 %v1460
      %v1933 = vunpack.c.l.b16 %v1461
      %v1934 = vunpack.c.l.b16 %v1462
      %v1935 = vunpack.c.l.b16 %v1463
      %v1936 = vunpack.c.l.b16 %v1464
      %v1937 = vunpack.c.l.b16 %v1465
      %v1938 = vunpack.c.l.b16 %v1466
      %v1939 = vunpack.c.l.b16 %v1467
      %v1940 = vunpack.c.l.b16 %v1468
      %v1941 = vunpack.c.l.b16 %v1469
      %v1942 = vunpack.c.l.b16 %v1470
      %v1943 = vunpack.c.l.b16 %v1471
      %v1944 = vunpack.c.l.b16 %v1472
      %v1945 = vunpack.c.l.b16 %v1473
      %v1946 = vunpack.c.l.b16 %v1474
      %v1947 = vunpack.c.l.b16 %v1475
      %v1948 = vunpack.c.l.b16 %v1476
      %v1949 = vunpack.c.l.b16 %v1477
      %v1950 = vunpack.c.l.b16 %v1478
      %v1951 = vunpack.c.l.b16 %v1479
      %v1952 = vunpack.c.l.b16 %v1480
      %v1953 = vunpack.c.l.b16 %v1481
      %v1954 = vunpack.c.l.b16 %v1482
      %v1955 = vunpack.c.l.b16 %v1483
      %v1956 = vunpack.c.l.b16 %v1484
      %v1957 = vunpack.c.l.b16 %v1485
      %v1958 = vunpack.c.l.b16 %v1486
      %v1959 = vunpack.c.l.b16 %v1487
      %v1960 = vpack.c.b16 %v1817, %v1816
      %v1961 = vpack.c.b16 %v1819, %v1818
      %v1962 = vpack.c.b16 %v1821, %v1820
      %v1963 = vpack.c.b16 %v1823, %v1822
      %v1964 = vpack.c.b16 %v1825, %v1824
      %v1965 = vpack.c.b16 %v1827, %v1826
      %v1966 = vpack.c.b16 %v1829, %v1828
      %v1967 = vpack.c.b16 %v1831, %v1830
      %v1968 = vpack.c.b16 %v1833, %v1832
      %v1969 = vpack.c.b16 %v1835, %v1834
      %v1970 = vpack.c.b16 %v1837, %v1836
      %v1971 = vpack.c.b16 %v1839, %v1838
      %v1972 = vpack.c.b16 %v1841, %v1840
      %v1973 = vpack.c.b16 %v1843, %v1842
      %v1974 = vpack.c.b16 %v1845, %v1844
      %v1975 = vpack.c.b16 %v1847, %v1846
      %v1976 = vpack.c.b16 %v1849, %v1848
      %v1977 = vpack.c.b16 %v1851, %v1850
      %v1978 = vpack.c.b16 %v1853, %v1852
      %v1979 = vpack.c.b16 %v1855, %v1854
      %v1980 = vpack.c.b16 %v1857, %v1856
      %v1981 = vpack.c.b16 %v1859, %v1858
      %v1982 = vpack.c.b16 %v1861, %v1860
      %v1983 = vpack.c.b16 %v1863, %v1862
      %v1984 = vpack.c.b16 %v1865, %v1864
      %v1985 = vpack.c.b16 %v1867, %v1866
      %v1986 = vpack.c.b16 %v1869, %v1868
      %v1987 = vpack.c.b16 %v1871, %v1870
      %v1988 = vpack.c.b16 %v1873, %v1872
      %v1989 = vpack.c.b16 %v1875, %v1874
      %v1990 = vpack.c.b16 %v1877, %v1876
      %v1991 = vpack.c.b16 %v1879, %v1878
      %v1992 = vpack.c.b16 %v1881, %v1880
      %v1993 = vpack.c.b16 %v1883, %v1882
      %v1994 = vpack.c.b16 %v1885, %v1884
      %v1995 = vpack.c.b16 %v1887, %v1886
      %v1996 = vpack.c.b16 %v1889, %v1888
      %v1997 = vpack.c.b16 %v1891, %v1890
      %v1998 = vpack.c.b16 %v1893, %v1892
      %v1999 = vpack.c.b16 %v1895, %v1894
      %v2000 = vpack.c.b16 %v1897, %v1896
      %v2001 = vpack.c.b16 %v1899, %v1898
      %v2002 = vpack.c.b16 %v1901, %v1900
      %v2003 = vpack.c.b16 %v1903, %v1902
      %v2004 = vpack.c.b16 %v1905, %v1904
      %v2005 = vpack.c.b16 %v1907, %v1906
      %v2006 = vpack.c.b16 %v1909, %v1908
      %v2007 = vpack.c.b16 %v1911, %v1910
      %v2008 = vpack.c.b16 %v1913, %v1912
      %v2009 = vpack.c.b16 %v1915, %v1914
      %v2010 = vpack.c.b16 %v1917, %v1916
      %v2011 = vpack.c.b16 %v1919, %v1918
      %v2012 = vpack.c.b16 %v1921, %v1920
      %v2013 = vpack.c.b16 %v1923, %v1922
      %v2014 = vpack.c.b16 %v1925, %v1924
      %v2015 = vpack.c.b16 %v1927, %v1926
      %v2016 = vpack.c.b16 %v1929, %v1928
      %v2017 = vpack.c.b16 %v1931, %v1930
      %v2018 = vpack.c.b16 %v1933, %v1932
      %v2019 = vpack.c.b16 %v1935, %v1934
      %v2020 = vpack.c.b16 %v1937, %v1936
      %v2021 = vpack.c.b16 %v1939, %v1938
      %v2022 = vpack.c.b16 %v1941, %v1940
      %v2023 = vpack.c.b16 %v1943, %v1942
      %v2024 = vpack.c.b16 %v1945, %v1944
      %v2025 = vpack.c.b16 %v1947, %v1946
      %v2026 = vpack.c.b16 %v1949, %v1948
      %v2027 = vpack.c.b16 %v1951, %v1950
      %v2028 = vpack.c.b16 %v1953, %v1952
      %v2029 = vpack.c.b16 %v1955, %v1954
      %v2030 = vpack.c.b16 %v1957, %v1956
      %v2031 = vpack.c.b16 %v1959, %v1958
      %2104 = vmatpush.bf16.msra.mxu0 %v1967
      %2105 = vmatpush.bf16.msra.mxu0 %v1966
      %2106 = vmatpush.bf16.msra.mxu0 %v1965
      %2107 = vmatpush.bf16.msra.mxu0 %v1964
      %2108 = vmatpush.bf16.msra.mxu0 %v1963
      %2109 = vmatpush.bf16.msra.mxu0 %v1962
      %2110 = vmatpush.bf16.msra.mxu0 %v1961
      %2111 = vmatpush.bf16.msra.mxu0 %v1960
      %2112 = vmatmul.bf16.gmra.mxu0 %v1600
      %v2113 = vpop.f32.mrf.mxu0
      %v2114 = vadd.f32 0.0, %v2113
      %v2115 = vpop.f32.mrf.mxu0
      %v2116 = vadd.f32 0.0, %v2115
      %2117 = vmatmul.bf16.gmra.mxu0 %v1609
      %v2118 = vpop.f32.mrf.mxu0
      %v2119 = vadd.f32 0.0, %v2118
      %v2120 = vpop.f32.mrf.mxu0
      %v2121 = vadd.f32 0.0, %v2120
      %2122 = vmatmul.bf16.gmra.mxu0 %v1618
      %v2123 = vpop.f32.mrf.mxu0
      %v2124 = vadd.f32 0.0, %v2123
      %v2125 = vpop.f32.mrf.mxu0
      %v2126 = vadd.f32 0.0, %v2125
      %2127 = vmatmul.bf16.gmra.mxu0 %v1627
      %v2128 = vpop.f32.mrf.mxu0
      %v2129 = vadd.f32 0.0, %v2128
      %v2130 = vpop.f32.mrf.mxu0
      %v2131 = vadd.f32 0.0, %v2130
      %2132 = vdwg.mxu0
      %2133 = vmatpush.bf16.msra.mxu0 %v1975
      %2134 = vmatpush.bf16.msra.mxu0 %v1974
      %2135 = vmatpush.bf16.msra.mxu0 %v1973
      %2136 = vmatpush.bf16.msra.mxu0 %v1972
      %2137 = vmatpush.bf16.msra.mxu0 %v1971
      %2138 = vmatpush.bf16.msra.mxu0 %v1970
      %2139 = vmatpush.bf16.msra.mxu0 %v1969
      %2140 = vmatpush.bf16.msra.mxu0 %v1968
      %2141 = vmatmul.bf16.gmra.mxu0 %v1601
      %v2142 = vpop.f32.mrf.mxu0
      %v2143 = vadd.f32 %v2114, %v2142
      %v2144 = vpop.f32.mrf.mxu0
      %v2145 = vadd.f32 %v2116, %v2144
      %2146 = vmatmul.bf16.gmra.mxu0 %v1610
      %v2147 = vpop.f32.mrf.mxu0
      %v2148 = vadd.f32 %v2119, %v2147
      %v2149 = vpop.f32.mrf.mxu0
      %v2150 = vadd.f32 %v2121, %v2149
      %2151 = vmatmul.bf16.gmra.mxu0 %v1619
      %v2152 = vpop.f32.mrf.mxu0
      %v2153 = vadd.f32 %v2124, %v2152
      %v2154 = vpop.f32.mrf.mxu0
      %v2155 = vadd.f32 %v2126, %v2154
      %2156 = vmatmul.bf16.gmra.mxu0 %v1628
      %v2157 = vpop.f32.mrf.mxu0
      %v2158 = vadd.f32 %v2129, %v2157
      %v2159 = vpop.f32.mrf.mxu0
      %v2160 = vadd.f32 %v2131, %v2159
      %2161 = vdwg.mxu0
      %2162 = vmatpush.bf16.msra.mxu0 %v1983
      %2163 = vmatpush.bf16.msra.mxu0 %v1982
      %2164 = vmatpush.bf16.msra.mxu0 %v1981
      %2165 = vmatpush.bf16.msra.mxu0 %v1980
      %2166 = vmatpush.bf16.msra.mxu0 %v1979
      %2167 = vmatpush.bf16.msra.mxu0 %v1978
      %2168 = vmatpush.bf16.msra.mxu0 %v1977
      %2169 = vmatpush.bf16.msra.mxu0 %v1976
      %2170 = vmatmul.bf16.gmra.mxu0 %v1602
      %v2171 = vpop.f32.mrf.mxu0
      %v2172 = vadd.f32 %v2143, %v2171
      %v2173 = vpop.f32.mrf.mxu0
      %v2174 = vadd.f32 %v2145, %v2173
      %2175 = vmatmul.bf16.gmra.mxu0 %v1611
      %v2176 = vpop.f32.mrf.mxu0
      %v2177 = vadd.f32 %v2148, %v2176
      %v2178 = vpop.f32.mrf.mxu0
      %v2179 = vadd.f32 %v2150, %v2178
      %2180 = vmatmul.bf16.gmra.mxu0 %v1620
      %v2181 = vpop.f32.mrf.mxu0
      %v2182 = vadd.f32 %v2153, %v2181
      %v2183 = vpop.f32.mrf.mxu0
      %v2184 = vadd.f32 %v2155, %v2183
      %2185 = vmatmul.bf16.gmra.mxu0 %v1629
      %v2186 = vpop.f32.mrf.mxu0
      %v2187 = vadd.f32 %v2158, %v2186
      %v2188 = vpop.f32.mrf.mxu0
      %v2189 = vadd.f32 %v2160, %v2188
      %2190 = vdwg.mxu0
      %2191 = vmatpush.bf16.msra.mxu0 %v1991
      %2192 = vmatpush.bf16.msra.mxu0 %v1990
      %2193 = vmatpush.bf16.msra.mxu0 %v1989
      %2194 = vmatpush.bf16.msra.mxu0 %v1988
      %2195 = vmatpush.bf16.msra.mxu0 %v1987
      %2196 = vmatpush.bf16.msra.mxu0 %v1986
      %2197 = vmatpush.bf16.msra.mxu0 %v1985
      %2198 = vmatpush.bf16.msra.mxu0 %v1984
      %2199 = vmatmul.bf16.gmra.mxu0 %v1603
      %v2200 = vpop.f32.mrf.mxu0
      %v2201 = vadd.f32 %v2172, %v2200
      %v2202 = vpop.f32.mrf.mxu0
      %v2203 = vadd.f32 %v2174, %v2202
      %2204 = vmatmul.bf16.gmra.mxu0 %v1612
      %v2205 = vpop.f32.mrf.mxu0
      %v2206 = vadd.f32 %v2177, %v2205
      %v2207 = vpop.f32.mrf.mxu0
      %v2208 = vadd.f32 %v2179, %v2207
      %2209 = vmatmul.bf16.gmra.mxu0 %v1621
      %v2210 = vpop.f32.mrf.mxu0
      %v2211 = vadd.f32 %v2182, %v2210
      %v2212 = vpop.f32.mrf.mxu0
      %v2213 = vadd.f32 %v2184, %v2212
      %2214 = vmatmul.bf16.gmra.mxu0 %v1630
      %v2215 = vpop.f32.mrf.mxu0
      %v2216 = vadd.f32 %v2187, %v2215
      %v2217 = vpop.f32.mrf.mxu0
      %v2218 = vadd.f32 %v2189, %v2217
      %2219 = vdwg.mxu0
      %2220 = vmatpush.bf16.msra.mxu0 %v1999
      %2221 = vmatpush.bf16.msra.mxu0 %v1998
      %2222 = vmatpush.bf16.msra.mxu0 %v1997
      %2223 = vmatpush.bf16.msra.mxu0 %v1996
      %2224 = vmatpush.bf16.msra.mxu0 %v1995
      %2225 = vmatpush.bf16.msra.mxu0 %v1994
      %2226 = vmatpush.bf16.msra.mxu0 %v1993
      %2227 = vmatpush.bf16.msra.mxu0 %v1992
      %2228 = vmatmul.bf16.gmra.mxu0 %v1604
      %v2229 = vpop.f32.mrf.mxu0
      %v2230 = vadd.f32 %v2201, %v2229
      %v2231 = vpop.f32.mrf.mxu0
      %v2232 = vadd.f32 %v2203, %v2231
      %2233 = vmatmul.bf16.gmra.mxu0 %v1613
      %v2234 = vpop.f32.mrf.mxu0
      %v2235 = vadd.f32 %v2206, %v2234
      %v2236 = vpop.f32.mrf.mxu0
      %v2237 = vadd.f32 %v2208, %v2236
      %2238 = vmatmul.bf16.gmra.mxu0 %v1622
      %v2239 = vpop.f32.mrf.mxu0
      %v2240 = vadd.f32 %v2211, %v2239
      %v2241 = vpop.f32.mrf.mxu0
      %v2242 = vadd.f32 %v2213, %v2241
      %2243 = vmatmul.bf16.gmra.mxu0 %v1631
      %v2244 = vpop.f32.mrf.mxu0
      %v2245 = vadd.f32 %v2216, %v2244
      %v2246 = vpop.f32.mrf.mxu0
      %v2247 = vadd.f32 %v2218, %v2246
      %2248 = vdwg.mxu0
      %2249 = vmatpush.bf16.msra.mxu0 %v2007
      %2250 = vmatpush.bf16.msra.mxu0 %v2006
      %2251 = vmatpush.bf16.msra.mxu0 %v2005
      %2252 = vmatpush.bf16.msra.mxu0 %v2004
      %2253 = vmatpush.bf16.msra.mxu0 %v2003
      %2254 = vmatpush.bf16.msra.mxu0 %v2002
      %2255 = vmatpush.bf16.msra.mxu0 %v2001
      %2256 = vmatpush.bf16.msra.mxu0 %v2000
      %2257 = vmatmul.bf16.gmra.mxu0 %v1605
      %v2258 = vpop.f32.mrf.mxu0
      %v2259 = vadd.f32 %v2230, %v2258
      %v2260 = vpop.f32.mrf.mxu0
      %v2261 = vadd.f32 %v2232, %v2260
      %2262 = vmatmul.bf16.gmra.mxu0 %v1614
      %v2263 = vpop.f32.mrf.mxu0
      %v2264 = vadd.f32 %v2235, %v2263
      %v2265 = vpop.f32.mrf.mxu0
      %v2266 = vadd.f32 %v2237, %v2265
      %2267 = vmatmul.bf16.gmra.mxu0 %v1623
      %v2268 = vpop.f32.mrf.mxu0
      %v2269 = vadd.f32 %v2240, %v2268
      %v2270 = vpop.f32.mrf.mxu0
      %v2271 = vadd.f32 %v2242, %v2270
      %2272 = vmatmul.bf16.gmra.mxu0 %v1632
      %v2273 = vpop.f32.mrf.mxu0
      %v2274 = vadd.f32 %v2245, %v2273
      %v2275 = vpop.f32.mrf.mxu0
      %v2276 = vadd.f32 %v2247, %v2275
      %2277 = vdwg.mxu0
      %2278 = vmatpush.bf16.msra.mxu0 %v2015
      %2279 = vmatpush.bf16.msra.mxu0 %v2014
      %2280 = vmatpush.bf16.msra.mxu0 %v2013
      %2281 = vmatpush.bf16.msra.mxu0 %v2012
      %2282 = vmatpush.bf16.msra.mxu0 %v2011
      %2283 = vmatpush.bf16.msra.mxu0 %v2010
      %2284 = vmatpush.bf16.msra.mxu0 %v2009
      %2285 = vmatpush.bf16.msra.mxu0 %v2008
      %2286 = vmatmul.bf16.gmra.mxu0 %v1606
      %v2287 = vpop.f32.mrf.mxu0
      %v2288 = vadd.f32 %v2259, %v2287
      %v2289 = vpop.f32.mrf.mxu0
      %v2290 = vadd.f32 %v2261, %v2289
      %2291 = vmatmul.bf16.gmra.mxu0 %v1615
      %v2292 = vpop.f32.mrf.mxu0
      %v2293 = vadd.f32 %v2264, %v2292
      %v2294 = vpop.f32.mrf.mxu0
      %v2295 = vadd.f32 %v2266, %v2294
      %2296 = vmatmul.bf16.gmra.mxu0 %v1624
      %v2297 = vpop.f32.mrf.mxu0
      %v2298 = vadd.f32 %v2269, %v2297
      %v2299 = vpop.f32.mrf.mxu0
      %v2300 = vadd.f32 %v2271, %v2299
      %2301 = vmatmul.bf16.gmra.mxu0 %v1633
      %v2302 = vpop.f32.mrf.mxu0
      %v2303 = vadd.f32 %v2274, %v2302
      %v2304 = vpop.f32.mrf.mxu0
      %v2305 = vadd.f32 %v2276, %v2304
      %2306 = vdwg.mxu0
      %2307 = vmatpush.bf16.msra.mxu0 %v2023
      %2308 = vmatpush.bf16.msra.mxu0 %v2022
      %2309 = vmatpush.bf16.msra.mxu0 %v2021
      %2310 = vmatpush.bf16.msra.mxu0 %v2020
      %2311 = vmatpush.bf16.msra.mxu0 %v2019
      %2312 = vmatpush.bf16.msra.mxu0 %v2018
      %2313 = vmatpush.bf16.msra.mxu0 %v2017
      %2314 = vmatpush.bf16.msra.mxu0 %v2016
      %2315 = vmatmul.bf16.gmra.mxu0 %v1607
      %v2316 = vpop.f32.mrf.mxu0
      %v2317 = vadd.f32 %v2288, %v2316
      %v2318 = vpop.f32.mrf.mxu0
      %v2319 = vadd.f32 %v2290, %v2318
      %2320 = vmatmul.bf16.gmra.mxu0 %v1616
      %v2321 = vpop.f32.mrf.mxu0
      %v2322 = vadd.f32 %v2293, %v2321
      %v2323 = vpop.f32.mrf.mxu0
      %v2324 = vadd.f32 %v2295, %v2323
      %2325 = vmatmul.bf16.gmra.mxu0 %v1625
      %v2326 = vpop.f32.mrf.mxu0
      %v2327 = vadd.f32 %v2298, %v2326
      %v2328 = vpop.f32.mrf.mxu0
      %v2329 = vadd.f32 %v2300, %v2328
      %2330 = vmatmul.bf16.gmra.mxu0 %v1634
      %v2331 = vpop.f32.mrf.mxu0
      %v2332 = vadd.f32 %v2303, %v2331
      %v2333 = vpop.f32.mrf.mxu0
      %v2334 = vadd.f32 %v2305, %v2333
      %2335 = vdwg.mxu0
      %2336 = vmatpush.bf16.msra.mxu0 %v2031
      %2337 = vmatpush.bf16.msra.mxu0 %v2030
      %2338 = vmatpush.bf16.msra.mxu0 %v2029
      %2339 = vmatpush.bf16.msra.mxu0 %v2028
      %2340 = vmatpush.bf16.msra.mxu0 %v2027
      %2341 = vmatpush.bf16.msra.mxu0 %v2026
      %2342 = vmatpush.bf16.msra.mxu0 %v2025
      %2343 = vmatpush.bf16.msra.mxu0 %v2024
      %2344 = vmatmul.bf16.gmra.mxu0 %v1608
      %v2345 = vpop.f32.mrf.mxu0
      %v2346 = vadd.f32 %v2317, %v2345
      %v2347 = vpop.f32.mrf.mxu0
      %v2348 = vadd.f32 %v2319, %v2347
      %2349 = vmatmul.bf16.gmra.mxu0 %v1617
      %v2350 = vpop.f32.mrf.mxu0
      %v2351 = vadd.f32 %v2322, %v2350
      %v2352 = vpop.f32.mrf.mxu0
      %v2353 = vadd.f32 %v2324, %v2352
      %2354 = vmatmul.bf16.gmra.mxu0 %v1626
      %v2355 = vpop.f32.mrf.mxu0
      %v2356 = vadd.f32 %v2327, %v2355
      %v2357 = vpop.f32.mrf.mxu0
      %v2358 = vadd.f32 %v2329, %v2357
      %2359 = vmatmul.bf16.gmra.mxu0 %v1635
      %v2360 = vpop.f32.mrf.mxu0
      %v2361 = vadd.f32 %v2332, %v2360
      %v2362 = vpop.f32.mrf.mxu0
      %v2363 = vadd.f32 %v2334, %v2362
      %2364 = vdwg.mxu0
      %v2365 = vpack.c.bf16 %v2346, %v2346
      %v2366 = vpack.c.bf16 %v2348, %v2348
      %v2367 = vpack.c.bf16 %v2351, %v2351
      %v2368 = vpack.c.bf16 %v2353, %v2353
      %v2369 = vpack.c.bf16 %v2356, %v2356
      %v2370 = vpack.c.bf16 %v2358, %v2358
      %v2371 = vpack.c.bf16 %v2361, %v2361
      %v2372 = vpack.c.bf16 %v2363, %v2363
      %2373 = vst [vmem:[%s284] sm:$0xf] %v2365
      %2374 = vst [vmem:[%s284 + $0x4] sm:$0xf] %v2366
      %2375 = vst [vmem:[%s284 + $0x8] sm:$0xf] %v2367
      %2376 = vst [vmem:[%s284 + $0xc] sm:$0xf] %v2368
      %2377 = vst [vmem:[%s284 + $0x10] sm:$0xf] %v2369
      %2378 = vst [vmem:[%s284 + $0x14] sm:$0xf] %v2370
      %2379 = vst [vmem:[%s284 + $0x18] sm:$0xf] %v2371
      %2380 = vst [vmem:[%s284 + $0x1c] sm:$0xf] %v2372
      %v2381 = vadd.f32 %v2346, %v2348
      %v2382 = vadd.f32 %v2381, %v2351
      %v2383 = vadd.f32 %v2382, %v2353
      %v2384 = vadd.f32 %v2383, %v2356
      %v2385 = vadd.f32 %v2384, %v2358
      %v2386 = vadd.f32 %v2385, %v2361
      %v2387 = vadd.f32 %v2386, %v2363
      %v2388 = vrot.slane %v2387, 4
      %v2389 = vadd.f32 %v2387, %v2388
      %v2390 = vrot.slane %v2389, 2
      %v2391 = vadd.f32 %v2389, %v2390
      %v2392 = vrot.slane %v2391, 1
      %v2393 = vadd.f32 %v2391, %v2392
      %2394 = vst [vmem:[%s290] sm:$0x1] %v2393
      %v2395 = vmul.f32 %v2346, %v2346
      %v2396 = vmul.f32 %v2348, %v2348
      %v2397 = vmul.f32 %v2351, %v2351
      %v2398 = vmul.f32 %v2353, %v2353
      %v2399 = vmul.f32 %v2356, %v2356
      %v2400 = vmul.f32 %v2358, %v2358
      %v2401 = vmul.f32 %v2361, %v2361
      %v2402 = vmul.f32 %v2363, %v2363
      %v2403 = vadd.f32 %v2395, %v2396
      %v2404 = vadd.f32 %v2403, %v2397
      %v2405 = vadd.f32 %v2404, %v2398
      %v2406 = vadd.f32 %v2405, %v2399
      %v2407 = vadd.f32 %v2406, %v2400
      %v2408 = vadd.f32 %v2407, %v2401
      %v2409 = vadd.f32 %v2408, %v2402
      %v2410 = vrot.slane %v2409, 4
      %v2411 = vadd.f32 %v2409, %v2410
      %v2412 = vrot.slane %v2411, 2
      %v2413 = vadd.f32 %v2411, %v2412
      %v2414 = vrot.slane %v2413, 1
      %v2415 = vadd.f32 %v2413, %v2414
      %2416 = vst [vmem:[%s295] sm:$0x1] %v2415
      %s2417 = sadd.s32 %s22, %s23
      %s2418 = smul.u32 8, %s2417
      %p2419 = scmp.lt.s32.totalorder %s2418, 15
      %s2420 = scalar_select %p2419, %s2418, 15
      %s2421 = smul.addr %s2420, 4
      %s2422 = scalar_lea.vmem %s4, %s2421
      %s2423 = sadd.s32 %s22, %s23
      %p2424 = scmp.lt.s32.totalorder %s2423, 1
      %s2425 = scalar_select %p2424, %s2423, 1
      %s2426 = scalar_lea.vmem %s5, %s2425
      %s2427 = sadd.s32 %s22, %s23
      %p2428 = scmp.lt.s32.totalorder %s2427, 1
      %s2429 = scalar_select %p2428, %s2427, 1
      %s2430 = scalar_lea.vmem %s6, %s2429
      // Predicated region
      $region37: #{conv_cell_forward.4} parent=35 // pred_check
        %p2431 = pneg %p139
      $region38: #{conv_cell_forward.4} parent=35 // pred_check_branch
        %2433 = sbr.rel (%p2431) target = $region40
      $region39: #{conv_cell_forward.4} parent=35 // pred_region
        %s2434 = sadd.s32 %s22, %s23
        %s2435 = smul.u32 8, %s2434
      $region40: #{conv_cell_forward.4} parent=35 // pred_fallthru
        _
      // Predicated region
      $region41: #{conv_cell_forward.4} parent=35 // pred_check
        %p2436 = pneg %p167
      $region42: #{conv_cell_forward.4} parent=35 // pred_check_branch
        %2438 = sbr.rel (%p2436) target = $region44
      $region43: #{conv_cell_forward.4} parent=35 // pred_region
        %s2439 = sadd.s32 %s22, %s23
      $region44: #{conv_cell_forward.4} parent=35 // pred_fallthru
        _
      // Predicated region
      $region45: #{conv_cell_forward.4} parent=35 // pred_check
        %p2440 = pneg %p195
      $region46: #{conv_cell_forward.4} parent=35 // pred_check_branch
        %2442 = sbr.rel (%p2440) target = $region48
      $region47: #{conv_cell_forward.4} parent=35 // pred_region
        %s2443 = sadd.s32 %s22, %s23
      $region48: #{conv_cell_forward.4} parent=35 // pred_fallthru
        _
    $region36: #{conv_cell_forward.4} parent=5 // pred_fallthru
      _
    %p2444 = scmp.le.s32.totalorder 2, %s13
    // Predicated region
    $region49: #{conv_cell_forward.4} parent=5 // pred_check
      %p2445 = pneg %p2444
    $region50: #{conv_cell_forward.4} parent=5 // pred_check_branch
      %2447 = sbr.rel (%p2445) target = $region52
    $region51: #{conv_cell_forward.4} parent=5 // pred_region
      %s2448 = ssub.s32 %s13, 2
      // Predicated region
      $region53: #{conv_cell_forward.4} parent=51 // pred_check
        %p2449 = pneg %p145
      $region54: #{conv_cell_forward.4} parent=51 // pred_check_branch
        %2451 = sbr.rel (%p2449) target = $region56
      $region55: #{conv_cell_forward.4} parent=51 // pred_region
        %s2452 = sadd.s32 %s24, %s25
        %s2453 = smul.u32 8, %s2452
        %p2454 = scmp.lt.s32.totalorder %s2453, 15
        %s2455 = scalar_select %p2454, %s2453, 15
        %s2456 = smul.addr %s2455, 4
        %s2457 = scalar_lea.vmem %s4, %s2456
      $region56: #{conv_cell_forward.4} parent=51 // pred_fallthru
        _
      // Predicated region
      $region57: #{conv_cell_forward.4} parent=51 // pred_check
        %p2458 = pneg %p173
      $region58: #{conv_cell_forward.4} parent=51 // pred_check_branch
        %2460 = sbr.rel (%p2458) target = $region60
      $region59: #{conv_cell_forward.4} parent=51 // pred_region
        %s2461 = sadd.s32 %s24, %s25
        %p2462 = scmp.lt.s32.totalorder %s2461, 1
        %s2463 = scalar_select %p2462, %s2461, 1
        %s2464 = scalar_lea.vmem %s5, %s2463
      $region60: #{conv_cell_forward.4} parent=51 // pred_fallthru
        _
      // Predicated region
      $region61: #{conv_cell_forward.4} parent=51 // pred_check
        %p2465 = pneg %p201
      $region62: #{conv_cell_forward.4} parent=51 // pred_check_branch
        %2467 = sbr.rel (%p2465) target = $region64
      $region63: #{conv_cell_forward.4} parent=51 // pred_region
        %s2468 = sadd.s32 %s24, %s25
        %p2469 = scmp.lt.s32.totalorder %s2468, 1
        %s2470 = scalar_select %p2469, %s2468, 1
        %s2471 = scalar_lea.vmem %s6, %s2470
      $region64: #{conv_cell_forward.4} parent=51 // pred_fallthru
        _
    $region52: #{conv_cell_forward.4} parent=5 // pred_fallthru
      _
  $region6: #{conv_cell_forward.4} parent=0 // loop_footer
    %s17 = sadd.s32 1, %s13
  $region7: #{conv_cell_forward.4} parent=0 // loop_footer_branch
    %12 = sbr.rel target = $region3
  $region8: #{conv_cell_forward.4} parent=0 // loop_exit
    _

</llo_original>
